<compile_context>
chip_gen: v7x
topology: tpu7x:2x2x1
jax: 0.10.0
libtpu: 0.0.40
codegen_flags: <defaults>
</compile_context>

<pallas_src>
import math
import os

import jax
import jax.numpy as jnp
from jax.experimental import pallas as pl
from jax.experimental.pallas import tpu as pltpu


_LANE = 128                  # TPU lane width
_MAX_FLAT_LANE = 1024        # cap on lcm(D,128) for the flattened layout
_TARGET_IN_BLOCK = 4 << 20   # ~4 MiB of input per grid step (HBM-bound)
_VMEM_FLOOR = 32 << 20       # never below the common scoped default
_VMEM_CAP = 48 << 20         # stays under every chip's physical VMEM (v7x: 64 MiB)


# ---------------------------------------------------------------------------
# Shared math: the sequential masked-assignment cascades of the torch forward.
# ---------------------------------------------------------------------------
def _cascades(x, m, a, b):
    rm = jnp.where(x > m, 1.0, x)
    rm = jnp.where(rm < m, 0.0, rm)
    rs = jnp.where(x > a, 1.0, x)
    rs = jnp.where(rs < b, 1.0, rs)
    rs = jnp.where(rs < a, 0.0, rs)
    rs = jnp.where(rs > b, 0.0, rs)
    return rm, rs


# ---------------------------------------------------------------------------
# Kernels
# ---------------------------------------------------------------------------
def _fused_kernel(x_ref, m_ref, a_ref, b_ref, o_ref):
    x = x_ref[...]                                  # (tm, tl)
    rm, rs = _cascades(x, m_ref[...], a_ref[...], b_ref[...])
    r, c = x.shape
    # Lane interleave on the otherwise-idle XLU: o[:, 2j] = rm_j, o[:, 2j+1] = rs_j
    # TODO(synk): for 16-bit dtypes a pack-to-u32 store would skip the XLU shuffle.
    o_ref[...] = jnp.stack([rm, rs], axis=-1).reshape(r, 2 * c).astype(o_ref.dtype)


def _split_kernel(x_ref, m_ref, a_ref, b_ref, rm_ref, rs_ref):
    x = x_ref[...]
    rm, rs = _cascades(x, m_ref[...], a_ref[...], b_ref[...])
    rm_ref[...] = rm.astype(rm_ref.dtype)
    rs_ref[...] = rs.astype(rs_ref.dtype)


# ---------------------------------------------------------------------------
# Tiling / layout planning
# ---------------------------------------------------------------------------
def _num_tensorcores():
    """Heuristic TC-per-device count (only used for the grid-step floor)."""
    try:
        kind = jax.devices()[0].device_kind.lower()
    except Exception:
        return 2
    if any(t in kind for t in ("lite", "v5e", "v6e", "v2", "v3")):
        return 1          # single-TensorCore chips
    return 2              # v4 / v5p megacore, v7x


def _sublane_align(itemsize):
    # 8 rows for 32-bit, 16 for 16-bit, 32 for 8-bit (sublane packing).
    return max(8, (8 * 4) // max(1, itemsize))


def _plan_tiles(rows, lane, itemsize):
    align = _sublane_align(itemsize)
    # Lane tile: whole width unless a single (align, lane) slab already blows
    # the block budget (very wide D).
    tl = lane
    if align * tl * itemsize > _TARGET_IN_BLOCK:
        tl = max(_LANE,
                 ((_TARGET_IN_BLOCK // (align * itemsize)) // _LANE) * _LANE)
    # Row tile: ~_TARGET_IN_BLOCK bytes of input per step, keeping >=2
    # pipelined steps per TensorCore when there is enough work.
    tm = max(align, _TARGET_IN_BLOCK // max(1, tl * itemsize))
    min_steps = 2 * _num_tensorcores()
    if rows >= min_steps * align:
        tm = min(tm, pl.cdiv(rows, min_steps))
    tm = min(tm, rows)
    if tm < rows:
        tm = max(align, (tm // align) * align)   # sublane-aligned blocks
    return tm, tl


def _vmem_limit(tm, tl, itemsize):
    # Double-buffered: input block + 2x-wide output block + three (1, tl)
    # parameter blocks (padded to 8 sublanes), plus compiler scratch margin.
    per_step = (3 * tm * tl + 3 * 8 * tl) * itemsize
    return int(min(_VMEM_CAP, max(_VMEM_FLOOR, 2 * per_step + (4 << 20))))


def _in_specs(tm, tl):
    return [
        pl.BlockSpec((tm, tl), lambda i, j: (i, j)),
        pl.BlockSpec((1, tl), lambda i, j: (0, j)),
        pl.BlockSpec((1, tl), lambda i, j: (0, j)),
        pl.BlockSpec((1, tl), lambda i, j: (0, j)),
    ]


# ---------------------------------------------------------------------------
# pallas_call wrappers
# ---------------------------------------------------------------------------
def _encode_fused(x2, m2, a2, b2):
    rows, lane = x2.shape
    item = x2.dtype.itemsize
    tm, tl = _plan_tiles(rows, lane, item)
    return pl.pallas_call(
        _fused_kernel,
        out_shape=jax.ShapeDtypeStruct((rows, 2 * lane), x2.dtype),
        grid=(pl.cdiv(rows, tm), pl.cdiv(lane, tl)),
        in_specs=_in_specs(tm, tl),
        out_specs=pl.BlockSpec((tm, 2 * tl), lambda i, j: (i, j)),
        compiler_params=pltpu.CompilerParams(
            dimension_semantics=("parallel", "parallel"),
            vmem_limit_bytes=_vmem_limit(tm, tl, item)),
        cost_estimate=pl.CostEstimate(
            flops=12 * rows * lane, transcendentals=0,
            bytes_accessed=(3 * rows * lane + 3 * lane) * item),
    )(x2, m2, a2, b2)


def _encode_split(x2, m2, a2, b2):
    rows, lane = x2.shape
    item = x2.dtype.itemsize
    tm, tl = _plan_tiles(rows, lane, item)
    rm, rs = pl.pallas_call(
        _split_kernel,
        out_shape=(jax.ShapeDtypeStruct((rows, lane), x2.dtype),
                   jax.ShapeDtypeStruct((rows, lane), x2.dtype)),
        grid=(pl.cdiv(rows, tm), pl.cdiv(lane, tl)),
        in_specs=_in_specs(tm, tl),
        out_specs=(pl.BlockSpec((tm, tl), lambda i, j: (i, j)),
                   pl.BlockSpec((tm, tl), lambda i, j: (i, j))),
        compiler_params=pltpu.CompilerParams(
            dimension_semantics=("parallel", "parallel"),
            vmem_limit_bytes=_vmem_limit(tm, tl, item)),
        cost_estimate=pl.CostEstimate(
            flops=12 * rows * lane, transcendentals=0,
            bytes_accessed=(5 * rows * lane + 3 * lane) * item),
    )(x2, m2, a2, b2)
    # XLA-side interleave (one extra HBM round trip of the output); only used
    # if the fused in-kernel interleave fails to compile or is forced off.
    return jnp.stack([rm, rs], axis=-1).reshape(rows, 2 * lane)


_FUSED_OK = None   # tri-state: None = untried, True/False = cached decision


def _encode(x2, m2, a2, b2):
    global _FUSED_OK
    if os.environ.get("SCARF_FORCE_SPLIT") or _FUSED_OK is False:
        return _encode_split(x2, m2, a2, b2)
    try:
        out = _encode_fused(x2, m2, a2, b2)
        _FUSED_OK = True
        return out
    except Exception:
        # Compile-time fallback only (no eager device probe / host round-trip).
        _FUSED_OK = False
        return _encode_split(x2, m2, a2, b2)


# ---------------------------------------------------------------------------
# Public forward
# ---------------------------------------------------------------------------
def scarf_encode(x, mean, sigma):
    """Pallas version of standard_code.forward. Returns (N, 2*D)."""
    n, d = x.shape
    dtype = x.dtype
    mean = mean.astype(dtype)
    sigma = sigma.astype(dtype)
    a = sigma + mean            # precomputed once (removes per-step VPU adds)
    b = sigma - mean

    if d % _LANE == 0:
        # Already lane dense as (N, D).
        out2 = _encode(x, mean.reshape(1, d), a.reshape(1, d), b.reshape(1, d))
        return out2.reshape(n, 2 * d)

    lane = (d * _LANE) // math.gcd(d, _LANE)    # lcm(D, 128)
    if lane <= _MAX_FLAT_LANE:
        # Lane-dense flattened view: column of flat index f is f % D, so the
        # per-column constants tile along lanes with period D.
        reps = lane // d
        rows = pl.cdiv(n * d, lane)
        flat = x.reshape(-1)
        pad = rows * lane - n * d
        if pad:
            flat = jnp.pad(flat, (0, pad))      # only for ragged N*D
        x2 = flat.reshape(rows, lane)
        m2 = jnp.tile(mean, reps).reshape(1, lane)
        a2 = jnp.tile(a, reps).reshape(1, lane)
        b2 = jnp.tile(b, reps).reshape(1, lane)
        out2 = _encode(x2, m2, a2, b2)
        return out2.reshape(-1)[: 2 * n * d].reshape(n, 2 * d)

    # Awkward D (lcm too wide): pad columns up to the next multiple of 128 so
    # loads/stores stay full-lane, then slice the padding off the output.
    dp = pl.cdiv(d, _LANE) * _LANE
    x2 = jnp.pad(x, ((0, 0), (0, dp - d)))
    m2 = jnp.pad(mean, (0, dp - d)).reshape(1, dp)
    a2 = jnp.pad(a, (0, dp - d)).reshape(1, dp)
    b2 = jnp.pad(b, (0, dp - d)).reshape(1, dp)
    out2 = _encode(x2, m2, a2, b2)
    return out2.reshape(n, dp, 2)[:, :d, :].reshape(n, 2 * d)


class StandardCode:
    """JAX port of the PyTorch standard_code module."""

    def __init__(self, input_x):
        self.mean = jnp.mean(input_x, axis=0)
        # torch.std defaults to the unbiased estimator (ddof=1)
        self.sigma = jnp.std(input_x, axis=0, ddof=1)

    def __call__(self, x):
        return scarf_encode(x, self.mean, self.sigma)

    def get_encoder_dim(self, input_dim):
        return input_dim * 2


def _reference(x, mean, sigma):
    """Pure-JAX mirror of the PyTorch forward (vectorized over columns)."""
    m = mean[None, :].astype(x.dtype)
    s = sigma[None, :].astype(x.dtype)
    rm, rs = _cascades(x, m, s + m, s - m)
    return jnp.stack([rm, rs], axis=-1).reshape(x.shape[0], -1)


if __name__ == "__main__":
    key = jax.random.PRNGKey(0)

    # (N, D) configs: flattened lane-dense path (D=8), native lane-dense path
    # (D=128), a ragged flattened shape (D=5), and an awkward-D padded shape (D=9).
    for n, d in ((256, 8), (32, 128), (16, 5), (8, 9)):
        key, k_init, k_fwd = jax.random.split(key, 3)
        init_x = jax.random.normal(k_init, (n, d), dtype=jnp.float32)
        x = jax.random.normal(k_fwd, (n, d), dtype=jnp.float32)

        model = StandardCode(init_x)
        out = jax.block_until_ready(model(x))

        expected = _reference(x, model.mean, model.sigma)
        assert out.shape == (n, model.get_encoder_dim(d)), out.shape
        assert jnp.allclose(out, expected, atol=1e-6), (
            f"Pallas output mismatch vs reference for shape {(n, d)}")

    print("KERNEL_OK")
</pallas_src>

<mosaic_0001>
module attributes {stable_mosaic.version = 11 : i64} {
  func.func @_fused_kernel(%arg0: i32, %arg1: i32, %arg2: memref<16x128xf32, #tpu.memory_space<vmem>>, %arg3: memref<1x128xf32, #tpu.memory_space<vmem>>, %arg4: memref<1x128xf32, #tpu.memory_space<vmem>>, %arg5: memref<1x128xf32, #tpu.memory_space<vmem>>, %arg6: memref<16x256xf32, #tpu.memory_space<vmem>>) attributes {dimension_semantics = [#tpu.dimension_semantics<parallel>, #tpu.dimension_semantics<parallel>], iteration_bounds = array<i64: 1, 1>, scalar_prefetch = 0 : i64, scratch_operands = 0 : i64, tpu.core_type = #tpu.core_type<tc>, window_params = [{transform_indices = @transform_0, window_bounds = array<i64: 16, 128>}, {transform_indices = @transform_1, window_bounds = array<i64: 1, 128>}, {transform_indices = @transform_2, window_bounds = array<i64: 1, 128>}, {transform_indices = @transform_3, window_bounds = array<i64: 1, 128>}, {transform_indices = @transform_4, window_bounds = array<i64: 16, 256>}]} {
    %c0 = arith.constant 0 : index
    %c0_0 = arith.constant 0 : index
    %0 = vector.load %arg2[%c0, %c0_0] : memref<16x128xf32, #tpu.memory_space<vmem>>, vector<16x128xf32>
    %c0_1 = arith.constant 0 : index
    %c0_2 = arith.constant 0 : index
    %1 = vector.load %arg3[%c0_1, %c0_2] : memref<1x128xf32, #tpu.memory_space<vmem>>, vector<1x128xf32>
    %c0_3 = arith.constant 0 : index
    %c0_4 = arith.constant 0 : index
    %2 = vector.load %arg4[%c0_3, %c0_4] : memref<1x128xf32, #tpu.memory_space<vmem>>, vector<1x128xf32>
    %c0_5 = arith.constant 0 : index
    %c0_6 = arith.constant 0 : index
    %3 = vector.load %arg5[%c0_5, %c0_6] : memref<1x128xf32, #tpu.memory_space<vmem>>, vector<1x128xf32>
    %4 = vector.broadcast %1 : vector<1x128xf32> to vector<16x128xf32>
    %5 = arith.cmpf ogt, %0, %4 : vector<16x128xf32>
    %cst = arith.constant 1.000000e+00 : f32
    %6 = vector.broadcast %cst : f32 to vector<16x128xf32>
    %7 = arith.select %5, %6, %0 : vector<16x128xi1>, vector<16x128xf32>
    %8 = vector.broadcast %1 : vector<1x128xf32> to vector<16x128xf32>
    %9 = arith.cmpf olt, %7, %8 : vector<16x128xf32>
    %cst_7 = arith.constant 0.000000e+00 : f32
    %10 = vector.broadcast %cst_7 : f32 to vector<16x128xf32>
    %11 = arith.select %9, %10, %7 : vector<16x128xi1>, vector<16x128xf32>
    %12 = vector.broadcast %2 : vector<1x128xf32> to vector<16x128xf32>
    %13 = arith.cmpf ogt, %0, %12 : vector<16x128xf32>
    %cst_8 = arith.constant 1.000000e+00 : f32
    %14 = vector.broadcast %cst_8 : f32 to vector<16x128xf32>
    %15 = arith.select %13, %14, %0 : vector<16x128xi1>, vector<16x128xf32>
    %16 = vector.broadcast %3 : vector<1x128xf32> to vector<16x128xf32>
    %17 = arith.cmpf olt, %15, %16 : vector<16x128xf32>
    %cst_9 = arith.constant 1.000000e+00 : f32
    %18 = vector.broadcast %cst_9 : f32 to vector<16x128xf32>
    %19 = arith.select %17, %18, %15 : vector<16x128xi1>, vector<16x128xf32>
    %20 = vector.broadcast %2 : vector<1x128xf32> to vector<16x128xf32>
    %21 = arith.cmpf olt, %19, %20 : vector<16x128xf32>
    %cst_10 = arith.constant 0.000000e+00 : f32
    %22 = vector.broadcast %cst_10 : f32 to vector<16x128xf32>
    %23 = arith.select %21, %22, %19 : vector<16x128xi1>, vector<16x128xf32>
    %24 = vector.broadcast %3 : vector<1x128xf32> to vector<16x128xf32>
    %25 = arith.cmpf ogt, %23, %24 : vector<16x128xf32>
    %cst_11 = arith.constant 0.000000e+00 : f32
    %26 = vector.broadcast %cst_11 : f32 to vector<16x128xf32>
    %27 = arith.select %25, %26, %23 : vector<16x128xi1>, vector<16x128xf32>
    %28 = vector.shape_cast %11 : vector<16x128xf32> to vector<16x128x1xf32>
    %29 = vector.shape_cast %27 : vector<16x128xf32> to vector<16x128x1xf32>
    %30 = tpu.concatenate %28, %29 in 2 : vector<16x128x1xf32>, vector<16x128x1xf32> -> vector<16x128x2xf32>
    %31 = vector.shape_cast %30 : vector<16x128x2xf32> to vector<16x256xf32>
    %c0_12 = arith.constant 0 : index
    %c0_13 = arith.constant 0 : index
    %32 = vector.load %arg6[%c0_12, %c0_13] : memref<16x256xf32, #tpu.memory_space<vmem>>, vector<16x256xf32>
    tpu.vector_store %arg6[%c0_12, %c0_13], %31 {strides = array<i32>} : memref<16x256xf32, #tpu.memory_space<vmem>>, vector<16x256xf32>,
    return
  }
  func.func @transform_0(%arg0: i32, %arg1: i32) -> (i32, i32) {
    %c0_i32 = arith.constant 0 : i32
    return %arg0, %arg1 : i32, i32
  }
  func.func @transform_1(%arg0: i32, %arg1: i32) -> (i32, i32) {
    %c0_i32 = arith.constant 0 : i32
    %c0_i32_0 = arith.constant 0 : i32
    return %c0_i32, %arg1 : i32, i32
  }
  func.func @transform_2(%arg0: i32, %arg1: i32) -> (i32, i32) {
    %c0_i32 = arith.constant 0 : i32
    %c0_i32_0 = arith.constant 0 : i32
    return %c0_i32, %arg1 : i32, i32
  }
  func.func @transform_3(%arg0: i32, %arg1: i32) -> (i32, i32) {
    %c0_i32 = arith.constant 0 : i32
    %c0_i32_0 = arith.constant 0 : i32
    return %c0_i32, %arg1 : i32, i32
  }
  func.func @transform_4(%arg0: i32, %arg1: i32) -> (i32, i32) {
    %c0_i32 = arith.constant 0 : i32
    return %arg0, %arg1 : i32, i32
  }
}

module attributes {stable_mosaic.version = 11 : i64} {
  func.func @_split_kernel(%arg0: i32, %arg1: i32, %arg2: memref<16x128xf32, #tpu.memory_space<vmem>>, %arg3: memref<1x128xf32, #tpu.memory_space<vmem>>, %arg4: memref<1x128xf32, #tpu.memory_space<vmem>>, %arg5: memref<1x128xf32, #tpu.memory_space<vmem>>, %arg6: memref<16x128xf32, #tpu.memory_space<vmem>>, %arg7: memref<16x128xf32, #tpu.memory_space<vmem>>) attributes {dimension_semantics = [#tpu.dimension_semantics<parallel>, #tpu.dimension_semantics<parallel>], iteration_bounds = array<i64: 1, 1>, scalar_prefetch = 0 : i64, scratch_operands = 0 : i64, tpu.core_type = #tpu.core_type<tc>, window_params = [{transform_indices = @transform_0, window_bounds = array<i64: 16, 128>}, {transform_indices = @transform_1, window_bounds = array<i64: 1, 128>}, {transform_indices = @transform_2, window_bounds = array<i64: 1, 128>}, {transform_indices = @transform_3, window_bounds = array<i64: 1, 128>}, {transform_indices = @transform_4, window_bounds = array<i64: 16, 128>}, {transform_indices = @transform_5, window_bounds = array<i64: 16, 128>}]} {
    %c0 = arith.constant 0 : index
    %c0_0 = arith.constant 0 : index
    %0 = vector.load %arg2[%c0, %c0_0] : memref<16x128xf32, #tpu.memory_space<vmem>>, vector<16x128xf32>
    %c0_1 = arith.constant 0 : index
    %c0_2 = arith.constant 0 : index
    %1 = vector.load %arg3[%c0_1, %c0_2] : memref<1x128xf32, #tpu.memory_space<vmem>>, vector<1x128xf32>
    %c0_3 = arith.constant 0 : index
    %c0_4 = arith.constant 0 : index
    %2 = vector.load %arg4[%c0_3, %c0_4] : memref<1x128xf32, #tpu.memory_space<vmem>>, vector<1x128xf32>
    %c0_5 = arith.constant 0 : index
    %c0_6 = arith.constant 0 : index
    %3 = vector.load %arg5[%c0_5, %c0_6] : memref<1x128xf32, #tpu.memory_space<vmem>>, vector<1x128xf32>
    %4 = vector.broadcast %1 : vector<1x128xf32> to vector<16x128xf32>
    %5 = arith.cmpf ogt, %0, %4 : vector<16x128xf32>
    %cst = arith.constant 1.000000e+00 : f32
    %6 = vector.broadcast %cst : f32 to vector<16x128xf32>
    %7 = arith.select %5, %6, %0 : vector<16x128xi1>, vector<16x128xf32>
    %8 = vector.broadcast %1 : vector<1x128xf32> to vector<16x128xf32>
    %9 = arith.cmpf olt, %7, %8 : vector<16x128xf32>
    %cst_7 = arith.constant 0.000000e+00 : f32
    %10 = vector.broadcast %cst_7 : f32 to vector<16x128xf32>
    %11 = arith.select %9, %10, %7 : vector<16x128xi1>, vector<16x128xf32>
    %12 = vector.broadcast %2 : vector<1x128xf32> to vector<16x128xf32>
    %13 = arith.cmpf ogt, %0, %12 : vector<16x128xf32>
    %cst_8 = arith.constant 1.000000e+00 : f32
    %14 = vector.broadcast %cst_8 : f32 to vector<16x128xf32>
    %15 = arith.select %13, %14, %0 : vector<16x128xi1>, vector<16x128xf32>
    %16 = vector.broadcast %3 : vector<1x128xf32> to vector<16x128xf32>
    %17 = arith.cmpf olt, %15, %16 : vector<16x128xf32>
    %cst_9 = arith.constant 1.000000e+00 : f32
    %18 = vector.broadcast %cst_9 : f32 to vector<16x128xf32>
    %19 = arith.select %17, %18, %15 : vector<16x128xi1>, vector<16x128xf32>
    %20 = vector.broadcast %2 : vector<1x128xf32> to vector<16x128xf32>
    %21 = arith.cmpf olt, %19, %20 : vector<16x128xf32>
    %cst_10 = arith.constant 0.000000e+00 : f32
    %22 = vector.broadcast %cst_10 : f32 to vector<16x128xf32>
    %23 = arith.select %21, %22, %19 : vector<16x128xi1>, vector<16x128xf32>
    %24 = vector.broadcast %3 : vector<1x128xf32> to vector<16x128xf32>
    %25 = arith.cmpf ogt, %23, %24 : vector<16x128xf32>
    %cst_11 = arith.constant 0.000000e+00 : f32
    %26 = vector.broadcast %cst_11 : f32 to vector<16x128xf32>
    %27 = arith.select %25, %26, %23 : vector<16x128xi1>, vector<16x128xf32>
    %c0_12 = arith.constant 0 : index
    %c0_13 = arith.constant 0 : index
    %28 = vector.load %arg6[%c0_12, %c0_13] : memref<16x128xf32, #tpu.memory_space<vmem>>, vector<16x128xf32>
    tpu.vector_store %arg6[%c0_12, %c0_13], %11 {strides = array<i32>} : memref<16x128xf32, #tpu.memory_space<vmem>>, vector<16x128xf32>,
    %c0_14 = arith.constant 0 : index
    %c0_15 = arith.constant 0 : index
    %29 = vector.load %arg7[%c0_14, %c0_15] : memref<16x128xf32, #tpu.memory_space<vmem>>, vector<16x128xf32>
    tpu.vector_store %arg7[%c0_14, %c0_15], %27 {strides = array<i32>} : memref<16x128xf32, #tpu.memory_space<vmem>>, vector<16x128xf32>,
    return
  }
  func.func @transform_0(%arg0: i32, %arg1: i32) -> (i32, i32) {
    %c0_i32 = arith.constant 0 : i32
    return %arg0, %arg1 : i32, i32
  }
  func.func @transform_1(%arg0: i32, %arg1: i32) -> (i32, i32) {
    %c0_i32 = arith.constant 0 : i32
    %c0_i32_0 = arith.constant 0 : i32
    return %c0_i32, %arg1 : i32, i32
  }
  func.func @transform_2(%arg0: i32, %arg1: i32) -> (i32, i32) {
    %c0_i32 = arith.constant 0 : i32
    %c0_i32_0 = arith.constant 0 : i32
    return %c0_i32, %arg1 : i32, i32
  }
  func.func @transform_3(%arg0: i32, %arg1: i32) -> (i32, i32) {
    %c0_i32 = arith.constant 0 : i32
    %c0_i32_0 = arith.constant 0 : i32
    return %c0_i32, %arg1 : i32, i32
  }
  func.func @transform_4(%arg0: i32, %arg1: i32) -> (i32, i32) {
    %c0_i32 = arith.constant 0 : i32
    return %arg0, %arg1 : i32, i32
  }
  func.func @transform_5(%arg0: i32, %arg1: i32) -> (i32, i32) {
    %c0_i32 = arith.constant 0 : i32
    return %arg0, %arg1 : i32, i32
  }
}

</mosaic_0001>

<llo_original>
// kernel: tpu_custom_call.1
$region0: #{tpu_custom_call.1}
  #allocation0 [shape = 'u32[]', space=smem, size = 0x4, offset = 0x4, fixed_abs, tag = 'smem constant byte address 0x4 - core index']
  #allocation1 [shape = 'u32[144,128]{1,0:T(1,128)}', space=vmem, size = 0x12000, scoped, tag = 'internal scratch']
  %s0 = inlined_call_operand.hbm [shape: f32[16,128], index: 0, kind: input, shape index: {}]
  %s1 = inlined_call_operand.vmem [shape: f32[1,128], index: 1, kind: input, shape index: {}]
  %s2 = inlined_call_operand.vmem [shape: f32[1,128], index: 2, kind: input, shape index: {}]
  %s3 = inlined_call_operand.vmem [shape: f32[1,128], index: 3, kind: input, shape index: {}]
  %s4 = inlined_call_operand.hbm [shape: f32[16,256], index: 4, kind: output, shape index: {}]
  %s5 = sld [smem:[#allocation0]]
  $region30: #{tpu_custom_call.1} parent=0
    _
  %s7 = ssub.s32 1, %s5
  %s8 = scalar_select 0, %s7, %s5
  $region1: #{tpu_custom_call.1} parent=0
    #allocation2 [shape = 'u8[8192]{0}', space=vmem, size = 0x2000, scoped, tag = 'input window, operand 0, single buffered']
    #allocation3 [shape = 's32[1]{0}', space=sflag, size = 0x4, scoped, tag = 'scoped memory for tpu_custom_call.1']
    #allocation4 [shape = 's32[1]{0}', space=sflag, size = 0x4, scoped, tag = 'scoped memory for tpu_custom_call.1']
    #allocation5 [shape = 'u8[16384]{0}', space=vmem, size = 0x4000, scoped, tag = 'output window, operand 0, single buffered']
    %9 = vsyncpa [#allocation3], 0
    %10 = vsyncpa [#allocation4], 0
    // Predicated region
    $region2: #{tpu_custom_call.1} parent=1 // pred_check
      _
    $region3: #{tpu_custom_call.1} parent=1 // pred_check_branch
      %12 = sbr.rel (0) target = $region5
    $region4: #{tpu_custom_call.1} parent=1 // pred_region
      %s14 = ssub.s32 256, 256
      %15 = vsyncadd [#allocation3], %s14
      %s16 = sshll.u32 [#allocation2], 4
      %s17 = int_to_ptr.vmem [resolvable:$true] %s16
      %22 = dma.hbm_to_vmem [thread:$0]  %s0, 256, %s17, [#allocation3], 128, 128, 8
    $region5: #{tpu_custom_call.1} parent=1 // pred_fallthru
      _
    // Predicated region
    $region6: #{tpu_custom_call.1} parent=1 // pred_check
      _
    $region7: #{tpu_custom_call.1} parent=1 // pred_check_branch
      %24 = sbr.rel (0) target = $region9
    $region8: #{tpu_custom_call.1} parent=1 // pred_region
      _
    $region9: #{tpu_custom_call.1} parent=1 // pred_fallthru
      _
    // Predicated region
    $region10: #{tpu_custom_call.1} parent=1 // pred_check
      _
    $region11: #{tpu_custom_call.1} parent=1 // pred_check_branch
      %26 = sbr.rel (0) target = $region13
    $region12: #{tpu_custom_call.1} parent=1 // pred_region
      _
    $region13: #{tpu_custom_call.1} parent=1 // pred_fallthru
      _
    // Predicated region
    $region14: #{tpu_custom_call.1} parent=1 // pred_check
      _
    $region15: #{tpu_custom_call.1} parent=1 // pred_check_branch
      %28 = sbr.rel (0) target = $region17
    $region16: #{tpu_custom_call.1} parent=1 // pred_region
      _
    $region17: #{tpu_custom_call.1} parent=1 // pred_fallthru
      _
    // Predicated region
    $region18: #{tpu_custom_call.1} parent=1 // pred_check
      _
    $region19: #{tpu_custom_call.1} parent=1 // pred_check_branch
      %30 = sbr.rel (0) target = $region21
    $region20: #{tpu_custom_call.1} parent=1 // pred_region
      %31 = dma.done [#allocation3], 256
    $region21: #{tpu_custom_call.1} parent=1 // pred_fallthru
      _
    %v32 = vld [vmem:[#allocation2] sm:$0xff]
    %v33 = vld [vmem:[#allocation2 + $0x8] sm:$0xff]
    %v34 = vld [vmem:[%s1] sm:$0x1]
    %v35 = vld [vmem:[%s2] sm:$0x1]
    %v36 = vld [vmem:[%s3] sm:$0x1]
    %v38 = vlaneseq
    %v39 = vshrl.u32 %v38, 7
    %v40 = vsub.s32 0, %v39
    %v41 = vrot.slane %v34, %v40
    %vm43 = vcmp.gt.f32.partialorder %v32, %v41
    %vm44 = vcmp.gt.f32.partialorder %v33, %v41
    %v45 = vsel %vm43, 1.0, %v32
    %v46 = vsel %vm44, 1.0, %v33
    %vm47 = vcmp.lt.f32.partialorder %v45, %v41
    %vm48 = vcmp.lt.f32.partialorder %v46, %v41
    %v49 = vsel %vm47, 0.0, %v45
    %v50 = vsel %vm48, 0.0, %v46
    %v52 = vlaneseq
    %v53 = vshrl.u32 %v52, 7
    %v54 = vsub.s32 0, %v53
    %v55 = vrot.slane %v35, %v54
    %vm57 = vcmp.gt.f32.partialorder %v32, %v55
    %vm58 = vcmp.gt.f32.partialorder %v33, %v55
    %v59 = vsel %vm57, 1.0, %v32
    %v60 = vsel %vm58, 1.0, %v33
    %v62 = vlaneseq
    %v63 = vshrl.u32 %v62, 7
    %v64 = vsub.s32 0, %v63
    %v65 = vrot.slane %v36, %v64
    %vm67 = vcmp.lt.f32.partialorder %v59, %v65
    %vm68 = vcmp.lt.f32.partialorder %v60, %v65
    %v69 = vsel %vm67, 1.0, %v59
    %v70 = vsel %vm68, 1.0, %v60
    %vm71 = vcmp.lt.f32.partialorder %v69, %v55
    %vm72 = vcmp.lt.f32.partialorder %v70, %v55
    %v73 = vsel %vm71, 0.0, %v69
    %v74 = vsel %vm72, 0.0, %v70
    %vm75 = vcmp.gt.f32.partialorder %v73, %v65
    %vm76 = vcmp.gt.f32.partialorder %v74, %v65
    %v77 = vsel %vm75, 0.0, %v73
    %v78 = vsel %vm76, 0.0, %v74
    %v79 = vlaneseq
    %v80 = vshrl.u32 %v79, 7
    %v81 = vsub.s32 0, %v80
    %v82 = vrot.slane %v49, %v81
    %84 = vbcast.lane.b32.xlu0 %v82, 256
    %v85 = vpop.permute.xlu0 %84
    %s87 = sor.u32 256, 8
    %88 = vbcast.lane.b32.xlu0 %v82, %s87
    %v89 = vpop.permute.xlu0 %88
    %s91 = sor.u32 256, 16
    %92 = vbcast.lane.b32.xlu0 %v82, %s91
    %v93 = vpop.permute.xlu0 %92
    %s95 = sor.u32 256, 24
    %96 = vbcast.lane.b32.xlu0 %v82, %s95
    %v97 = vpop.permute.xlu0 %96
    %s99 = sor.u32 256, 32
    %100 = vbcast.lane.b32.xlu0 %v82, %s99
    %v101 = vpop.permute.xlu0 %100
    %s103 = sor.u32 256, 40
    %104 = vbcast.lane.b32.xlu0 %v82, %s103
    %v105 = vpop.permute.xlu0 %104
    %s107 = sor.u32 256, 48
    %108 = vbcast.lane.b32.xlu0 %v82, %s107
    %v109 = vpop.permute.xlu0 %108
    %s111 = sor.u32 256, 56
    %112 = vbcast.lane.b32.xlu0 %v82, %s111
    %v113 = vpop.permute.xlu0 %112
    %s115 = sor.u32 256, 64
    %116 = vbcast.lane.b32.xlu0 %v82, %s115
    %v117 = vpop.permute.xlu0 %116
    %s119 = sor.u32 256, 72
    %120 = vbcast.lane.b32.xlu0 %v82, %s119
    %v121 = vpop.permute.xlu0 %120
    %s123 = sor.u32 256, 80
    %124 = vbcast.lane.b32.xlu0 %v82, %s123
    %v125 = vpop.permute.xlu0 %124
    %s127 = sor.u32 256, 88
    %128 = vbcast.lane.b32.xlu0 %v82, %s127
    %v129 = vpop.permute.xlu0 %128
    %s131 = sor.u32 256, 96
    %132 = vbcast.lane.b32.xlu0 %v82, %s131
    %v133 = vpop.permute.xlu0 %132
    %s135 = sor.u32 256, 104
    %136 = vbcast.lane.b32.xlu0 %v82, %s135
    %v137 = vpop.permute.xlu0 %136
    %s139 = sor.u32 256, 112
    %140 = vbcast.lane.b32.xlu0 %v82, %s139
    %v141 = vpop.permute.xlu0 %140
    %s143 = sor.u32 256, 120
    %144 = vbcast.lane.b32.xlu0 %v82, %s143
    %v145 = vpop.permute.xlu0 %144
    %v146 = vlaneseq
    %v147 = vshrl.u32 %v146, 7
    %v148 = vsub.s32 1, %v147
    %v149 = vrot.slane %v49, %v148
    %151 = vbcast.lane.b32.xlu0 %v149, 256
    %v152 = vpop.permute.xlu0 %151
    %s154 = sor.u32 256, 8
    %155 = vbcast.lane.b32.xlu0 %v149, %s154
    %v156 = vpop.permute.xlu0 %155
    %s158 = sor.u32 256, 16
    %159 = vbcast.lane.b32.xlu0 %v149, %s158
    %v160 = vpop.permute.xlu0 %159
    %s162 = sor.u32 256, 24
    %163 = vbcast.lane.b32.xlu0 %v149, %s162
    %v164 = vpop.permute.xlu0 %163
    %s166 = sor.u32 256, 32
    %167 = vbcast.lane.b32.xlu0 %v149, %s166
    %v168 = vpop.permute.xlu0 %167
    %s170 = sor.u32 256, 40
    %171 = vbcast.lane.b32.xlu0 %v149, %s170
    %v172 = vpop.permute.xlu0 %171
    %s174 = sor.u32 256, 48
    %175 = vbcast.lane.b32.xlu0 %v149, %s174
    %v176 = vpop.permute.xlu0 %175
    %s178 = sor.u32 256, 56
    %179 = vbcast.lane.b32.xlu0 %v149, %s178
    %v180 = vpop.permute.xlu0 %179
    %s182 = sor.u32 256, 64
    %183 = vbcast.lane.b32.xlu0 %v149, %s182
    %v184 = vpop.permute.xlu0 %183
    %s186 = sor.u32 256, 72
    %187 = vbcast.lane.b32.xlu0 %v149, %s186
    %v188 = vpop.permute.xlu0 %187
    %s190 = sor.u32 256, 80
    %191 = vbcast.lane.b32.xlu0 %v149, %s190
    %v192 = vpop.permute.xlu0 %191
    %s194 = sor.u32 256, 88
    %195 = vbcast.lane.b32.xlu0 %v149, %s194
    %v196 = vpop.permute.xlu0 %195
    %s198 = sor.u32 256, 96
    %199 = vbcast.lane.b32.xlu0 %v149, %s198
    %v200 = vpop.permute.xlu0 %199
    %s202 = sor.u32 256, 104
    %203 = vbcast.lane.b32.xlu0 %v149, %s202
    %v204 = vpop.permute.xlu0 %203
    %s206 = sor.u32 256, 112
    %207 = vbcast.lane.b32.xlu0 %v149, %s206
    %v208 = vpop.permute.xlu0 %207
    %s210 = sor.u32 256, 120
    %211 = vbcast.lane.b32.xlu0 %v149, %s210
    %v212 = vpop.permute.xlu0 %211
    %v213 = vlaneseq
    %v214 = vshrl.u32 %v213, 7
    %v215 = vsub.s32 2, %v214
    %v216 = vrot.slane %v49, %v215
    %218 = vbcast.lane.b32.xlu0 %v216, 256
    %v219 = vpop.permute.xlu0 %218
    %s221 = sor.u32 256, 8
    %222 = vbcast.lane.b32.xlu0 %v216, %s221
    %v223 = vpop.permute.xlu0 %222
    %s225 = sor.u32 256, 16
    %226 = vbcast.lane.b32.xlu0 %v216, %s225
    %v227 = vpop.permute.xlu0 %226
    %s229 = sor.u32 256, 24
    %230 = vbcast.lane.b32.xlu0 %v216, %s229
    %v231 = vpop.permute.xlu0 %230
    %s233 = sor.u32 256, 32
    %234 = vbcast.lane.b32.xlu0 %v216, %s233
    %v235 = vpop.permute.xlu0 %234
    %s237 = sor.u32 256, 40
    %238 = vbcast.lane.b32.xlu0 %v216, %s237
    %v239 = vpop.permute.xlu0 %238
    %s241 = sor.u32 256, 48
    %242 = vbcast.lane.b32.xlu0 %v216, %s241
    %v243 = vpop.permute.xlu0 %242
    %s245 = sor.u32 256, 56
    %246 = vbcast.lane.b32.xlu0 %v216, %s245
    %v247 = vpop.permute.xlu0 %246
    %s249 = sor.u32 256, 64
    %250 = vbcast.lane.b32.xlu0 %v216, %s249
    %v251 = vpop.permute.xlu0 %250
    %s253 = sor.u32 256, 72
    %254 = vbcast.lane.b32.xlu0 %v216, %s253
    %v255 = vpop.permute.xlu0 %254
    %s257 = sor.u32 256, 80
    %258 = vbcast.lane.b32.xlu0 %v216, %s257
    %v259 = vpop.permute.xlu0 %258
    %s261 = sor.u32 256, 88
    %262 = vbcast.lane.b32.xlu0 %v216, %s261
    %v263 = vpop.permute.xlu0 %262
    %s265 = sor.u32 256, 96
    %266 = vbcast.lane.b32.xlu0 %v216, %s265
    %v267 = vpop.permute.xlu0 %266
    %s269 = sor.u32 256, 104
    %270 = vbcast.lane.b32.xlu0 %v216, %s269
    %v271 = vpop.permute.xlu0 %270
    %s273 = sor.u32 256, 112
    %274 = vbcast.lane.b32.xlu0 %v216, %s273
    %v275 = vpop.permute.xlu0 %274
    %s277 = sor.u32 256, 120
    %278 = vbcast.lane.b32.xlu0 %v216, %s277
    %v279 = vpop.permute.xlu0 %278
    %v280 = vlaneseq
    %v281 = vshrl.u32 %v280, 7
    %v282 = vsub.s32 3, %v281
    %v283 = vrot.slane %v49, %v282
    %285 = vbcast.lane.b32.xlu0 %v283, 256
    %v286 = vpop.permute.xlu0 %285
    %s288 = sor.u32 256, 8
    %289 = vbcast.lane.b32.xlu0 %v283, %s288
    %v290 = vpop.permute.xlu0 %289
    %s292 = sor.u32 256, 16
    %293 = vbcast.lane.b32.xlu0 %v283, %s292
    %v294 = vpop.permute.xlu0 %293
    %s296 = sor.u32 256, 24
    %297 = vbcast.lane.b32.xlu0 %v283, %s296
    %v298 = vpop.permute.xlu0 %297
    %s300 = sor.u32 256, 32
    %301 = vbcast.lane.b32.xlu0 %v283, %s300
    %v302 = vpop.permute.xlu0 %301
    %s304 = sor.u32 256, 40
    %305 = vbcast.lane.b32.xlu0 %v283, %s304
    %v306 = vpop.permute.xlu0 %305
    %s308 = sor.u32 256, 48
    %309 = vbcast.lane.b32.xlu0 %v283, %s308
    %v310 = vpop.permute.xlu0 %309
    %s312 = sor.u32 256, 56
    %313 = vbcast.lane.b32.xlu0 %v283, %s312
    %v314 = vpop.permute.xlu0 %313
    %s316 = sor.u32 256, 64
    %317 = vbcast.lane.b32.xlu0 %v283, %s316
    %v318 = vpop.permute.xlu0 %317
    %s320 = sor.u32 256, 72
    %321 = vbcast.lane.b32.xlu0 %v283, %s320
    %v322 = vpop.permute.xlu0 %321
    %s324 = sor.u32 256, 80
    %325 = vbcast.lane.b32.xlu0 %v283, %s324
    %v326 = vpop.permute.xlu0 %325
    %s328 = sor.u32 256, 88
    %329 = vbcast.lane.b32.xlu0 %v283, %s328
    %v330 = vpop.permute.xlu0 %329
    %s332 = sor.u32 256, 96
    %333 = vbcast.lane.b32.xlu0 %v283, %s332
    %v334 = vpop.permute.xlu0 %333
    %s336 = sor.u32 256, 104
    %337 = vbcast.lane.b32.xlu0 %v283, %s336
    %v338 = vpop.permute.xlu0 %337
    %s340 = sor.u32 256, 112
    %341 = vbcast.lane.b32.xlu0 %v283, %s340
    %v342 = vpop.permute.xlu0 %341
    %s344 = sor.u32 256, 120
    %345 = vbcast.lane.b32.xlu0 %v283, %s344
    %v346 = vpop.permute.xlu0 %345
    %v347 = vlaneseq
    %v348 = vshrl.u32 %v347, 7
    %v349 = vsub.s32 4, %v348
    %v350 = vrot.slane %v49, %v349
    %352 = vbcast.lane.b32.xlu0 %v350, 256
    %v353 = vpop.permute.xlu0 %352
    %s355 = sor.u32 256, 8
    %356 = vbcast.lane.b32.xlu0 %v350, %s355
    %v357 = vpop.permute.xlu0 %356
    %s359 = sor.u32 256, 16
    %360 = vbcast.lane.b32.xlu0 %v350, %s359
    %v361 = vpop.permute.xlu0 %360
    %s363 = sor.u32 256, 24
    %364 = vbcast.lane.b32.xlu0 %v350, %s363
    %v365 = vpop.permute.xlu0 %364
    %s367 = sor.u32 256, 32
    %368 = vbcast.lane.b32.xlu0 %v350, %s367
    %v369 = vpop.permute.xlu0 %368
    %s371 = sor.u32 256, 40
    %372 = vbcast.lane.b32.xlu0 %v350, %s371
    %v373 = vpop.permute.xlu0 %372
    %s375 = sor.u32 256, 48
    %376 = vbcast.lane.b32.xlu0 %v350, %s375
    %v377 = vpop.permute.xlu0 %376
    %s379 = sor.u32 256, 56
    %380 = vbcast.lane.b32.xlu0 %v350, %s379
    %v381 = vpop.permute.xlu0 %380
    %s383 = sor.u32 256, 64
    %384 = vbcast.lane.b32.xlu0 %v350, %s383
    %v385 = vpop.permute.xlu0 %384
    %s387 = sor.u32 256, 72
    %388 = vbcast.lane.b32.xlu0 %v350, %s387
    %v389 = vpop.permute.xlu0 %388
    %s391 = sor.u32 256, 80
    %392 = vbcast.lane.b32.xlu0 %v350, %s391
    %v393 = vpop.permute.xlu0 %392
    %s395 = sor.u32 256, 88
    %396 = vbcast.lane.b32.xlu0 %v350, %s395
    %v397 = vpop.permute.xlu0 %396
    %s399 = sor.u32 256, 96
    %400 = vbcast.lane.b32.xlu0 %v350, %s399
    %v401 = vpop.permute.xlu0 %400
    %s403 = sor.u32 256, 104
    %404 = vbcast.lane.b32.xlu0 %v350, %s403
    %v405 = vpop.permute.xlu0 %404
    %s407 = sor.u32 256, 112
    %408 = vbcast.lane.b32.xlu0 %v350, %s407
    %v409 = vpop.permute.xlu0 %408
    %s411 = sor.u32 256, 120
    %412 = vbcast.lane.b32.xlu0 %v350, %s411
    %v413 = vpop.permute.xlu0 %412
    %v414 = vlaneseq
    %v415 = vshrl.u32 %v414, 7
    %v416 = vsub.s32 5, %v415
    %v417 = vrot.slane %v49, %v416
    %419 = vbcast.lane.b32.xlu0 %v417, 256
    %v420 = vpop.permute.xlu0 %419
    %s422 = sor.u32 256, 8
    %423 = vbcast.lane.b32.xlu0 %v417, %s422
    %v424 = vpop.permute.xlu0 %423
    %s426 = sor.u32 256, 16
    %427 = vbcast.lane.b32.xlu0 %v417, %s426
    %v428 = vpop.permute.xlu0 %427
    %s430 = sor.u32 256, 24
    %431 = vbcast.lane.b32.xlu0 %v417, %s430
    %v432 = vpop.permute.xlu0 %431
    %s434 = sor.u32 256, 32
    %435 = vbcast.lane.b32.xlu0 %v417, %s434
    %v436 = vpop.permute.xlu0 %435
    %s438 = sor.u32 256, 40
    %439 = vbcast.lane.b32.xlu0 %v417, %s438
    %v440 = vpop.permute.xlu0 %439
    %s442 = sor.u32 256, 48
    %443 = vbcast.lane.b32.xlu0 %v417, %s442
    %v444 = vpop.permute.xlu0 %443
    %s446 = sor.u32 256, 56
    %447 = vbcast.lane.b32.xlu0 %v417, %s446
    %v448 = vpop.permute.xlu0 %447
    %s450 = sor.u32 256, 64
    %451 = vbcast.lane.b32.xlu0 %v417, %s450
    %v452 = vpop.permute.xlu0 %451
    %s454 = sor.u32 256, 72
    %455 = vbcast.lane.b32.xlu0 %v417, %s454
    %v456 = vpop.permute.xlu0 %455
    %s458 = sor.u32 256, 80
    %459 = vbcast.lane.b32.xlu0 %v417, %s458
    %v460 = vpop.permute.xlu0 %459
    %s462 = sor.u32 256, 88
    %463 = vbcast.lane.b32.xlu0 %v417, %s462
    %v464 = vpop.permute.xlu0 %463
    %s466 = sor.u32 256, 96
    %467 = vbcast.lane.b32.xlu0 %v417, %s466
    %v468 = vpop.permute.xlu0 %467
    %s470 = sor.u32 256, 104
    %471 = vbcast.lane.b32.xlu0 %v417, %s470
    %v472 = vpop.permute.xlu0 %471
    %s474 = sor.u32 256, 112
    %475 = vbcast.lane.b32.xlu0 %v417, %s474
    %v476 = vpop.permute.xlu0 %475
    %s478 = sor.u32 256, 120
    %479 = vbcast.lane.b32.xlu0 %v417, %s478
    %v480 = vpop.permute.xlu0 %479
    %v481 = vlaneseq
    %v482 = vshrl.u32 %v481, 7
    %v483 = vsub.s32 6, %v482
    %v484 = vrot.slane %v49, %v483
    %486 = vbcast.lane.b32.xlu0 %v484, 256
    %v487 = vpop.permute.xlu0 %486
    %s489 = sor.u32 256, 8
    %490 = vbcast.lane.b32.xlu0 %v484, %s489
    %v491 = vpop.permute.xlu0 %490
    %s493 = sor.u32 256, 16
    %494 = vbcast.lane.b32.xlu0 %v484, %s493
    %v495 = vpop.permute.xlu0 %494
    %s497 = sor.u32 256, 24
    %498 = vbcast.lane.b32.xlu0 %v484, %s497
    %v499 = vpop.permute.xlu0 %498
    %s501 = sor.u32 256, 32
    %502 = vbcast.lane.b32.xlu0 %v484, %s501
    %v503 = vpop.permute.xlu0 %502
    %s505 = sor.u32 256, 40
    %506 = vbcast.lane.b32.xlu0 %v484, %s505
    %v507 = vpop.permute.xlu0 %506
    %s509 = sor.u32 256, 48
    %510 = vbcast.lane.b32.xlu0 %v484, %s509
    %v511 = vpop.permute.xlu0 %510
    %s513 = sor.u32 256, 56
    %514 = vbcast.lane.b32.xlu0 %v484, %s513
    %v515 = vpop.permute.xlu0 %514
    %s517 = sor.u32 256, 64
    %518 = vbcast.lane.b32.xlu0 %v484, %s517
    %v519 = vpop.permute.xlu0 %518
    %s521 = sor.u32 256, 72
    %522 = vbcast.lane.b32.xlu0 %v484, %s521
    %v523 = vpop.permute.xlu0 %522
    %s525 = sor.u32 256, 80
    %526 = vbcast.lane.b32.xlu0 %v484, %s525
    %v527 = vpop.permute.xlu0 %526
    %s529 = sor.u32 256, 88
    %530 = vbcast.lane.b32.xlu0 %v484, %s529
    %v531 = vpop.permute.xlu0 %530
    %s533 = sor.u32 256, 96
    %534 = vbcast.lane.b32.xlu0 %v484, %s533
    %v535 = vpop.permute.xlu0 %534
    %s537 = sor.u32 256, 104
    %538 = vbcast.lane.b32.xlu0 %v484, %s537
    %v539 = vpop.permute.xlu0 %538
    %s541 = sor.u32 256, 112
    %542 = vbcast.lane.b32.xlu0 %v484, %s541
    %v543 = vpop.permute.xlu0 %542
    %s545 = sor.u32 256, 120
    %546 = vbcast.lane.b32.xlu0 %v484, %s545
    %v547 = vpop.permute.xlu0 %546
    %v548 = vlaneseq
    %v549 = vshrl.u32 %v548, 7
    %v550 = vsub.s32 7, %v549
    %v551 = vrot.slane %v49, %v550
    %553 = vbcast.lane.b32.xlu0 %v551, 256
    %v554 = vpop.permute.xlu0 %553
    %s556 = sor.u32 256, 8
    %557 = vbcast.lane.b32.xlu0 %v551, %s556
    %v558 = vpop.permute.xlu0 %557
    %s560 = sor.u32 256, 16
    %561 = vbcast.lane.b32.xlu0 %v551, %s560
    %v562 = vpop.permute.xlu0 %561
    %s564 = sor.u32 256, 24
    %565 = vbcast.lane.b32.xlu0 %v551, %s564
    %v566 = vpop.permute.xlu0 %565
    %s568 = sor.u32 256, 32
    %569 = vbcast.lane.b32.xlu0 %v551, %s568
    %v570 = vpop.permute.xlu0 %569
    %s572 = sor.u32 256, 40
    %573 = vbcast.lane.b32.xlu0 %v551, %s572
    %v574 = vpop.permute.xlu0 %573
    %s576 = sor.u32 256, 48
    %577 = vbcast.lane.b32.xlu0 %v551, %s576
    %v578 = vpop.permute.xlu0 %577
    %s580 = sor.u32 256, 56
    %581 = vbcast.lane.b32.xlu0 %v551, %s580
    %v582 = vpop.permute.xlu0 %581
    %s584 = sor.u32 256, 64
    %585 = vbcast.lane.b32.xlu0 %v551, %s584
    %v586 = vpop.permute.xlu0 %585
    %s588 = sor.u32 256, 72
    %589 = vbcast.lane.b32.xlu0 %v551, %s588
    %v590 = vpop.permute.xlu0 %589
    %s592 = sor.u32 256, 80
    %593 = vbcast.lane.b32.xlu0 %v551, %s592
    %v594 = vpop.permute.xlu0 %593
    %s596 = sor.u32 256, 88
    %597 = vbcast.lane.b32.xlu0 %v551, %s596
    %v598 = vpop.permute.xlu0 %597
    %s600 = sor.u32 256, 96
    %601 = vbcast.lane.b32.xlu0 %v551, %s600
    %v602 = vpop.permute.xlu0 %601
    %s604 = sor.u32 256, 104
    %605 = vbcast.lane.b32.xlu0 %v551, %s604
    %v606 = vpop.permute.xlu0 %605
    %s608 = sor.u32 256, 112
    %609 = vbcast.lane.b32.xlu0 %v551, %s608
    %v610 = vpop.permute.xlu0 %609
    %s612 = sor.u32 256, 120
    %613 = vbcast.lane.b32.xlu0 %v551, %s612
    %v614 = vpop.permute.xlu0 %613
    %v615 = vlaneseq
    %v616 = vshrl.u32 %v615, 7
    %v617 = vsub.s32 0, %v616
    %v618 = vrot.slane %v50, %v617
    %620 = vbcast.lane.b32.xlu0 %v618, 256
    %v621 = vpop.permute.xlu0 %620
    %s623 = sor.u32 256, 8
    %624 = vbcast.lane.b32.xlu0 %v618, %s623
    %v625 = vpop.permute.xlu0 %624
    %s627 = sor.u32 256, 16
    %628 = vbcast.lane.b32.xlu0 %v618, %s627
    %v629 = vpop.permute.xlu0 %628
    %s631 = sor.u32 256, 24
    %632 = vbcast.lane.b32.xlu0 %v618, %s631
    %v633 = vpop.permute.xlu0 %632
    %s635 = sor.u32 256, 32
    %636 = vbcast.lane.b32.xlu0 %v618, %s635
    %v637 = vpop.permute.xlu0 %636
    %s639 = sor.u32 256, 40
    %640 = vbcast.lane.b32.xlu0 %v618, %s639
    %v641 = vpop.permute.xlu0 %640
    %s643 = sor.u32 256, 48
    %644 = vbcast.lane.b32.xlu0 %v618, %s643
    %v645 = vpop.permute.xlu0 %644
    %s647 = sor.u32 256, 56
    %648 = vbcast.lane.b32.xlu0 %v618, %s647
    %v649 = vpop.permute.xlu0 %648
    %s651 = sor.u32 256, 64
    %652 = vbcast.lane.b32.xlu0 %v618, %s651
    %v653 = vpop.permute.xlu0 %652
    %s655 = sor.u32 256, 72
    %656 = vbcast.lane.b32.xlu0 %v618, %s655
    %v657 = vpop.permute.xlu0 %656
    %s659 = sor.u32 256, 80
    %660 = vbcast.lane.b32.xlu0 %v618, %s659
    %v661 = vpop.permute.xlu0 %660
    %s663 = sor.u32 256, 88
    %664 = vbcast.lane.b32.xlu0 %v618, %s663
    %v665 = vpop.permute.xlu0 %664
    %s667 = sor.u32 256, 96
    %668 = vbcast.lane.b32.xlu0 %v618, %s667
    %v669 = vpop.permute.xlu0 %668
    %s671 = sor.u32 256, 104
    %672 = vbcast.lane.b32.xlu0 %v618, %s671
    %v673 = vpop.permute.xlu0 %672
    %s675 = sor.u32 256, 112
    %676 = vbcast.lane.b32.xlu0 %v618, %s675
    %v677 = vpop.permute.xlu0 %676
    %s679 = sor.u32 256, 120
    %680 = vbcast.lane.b32.xlu0 %v618, %s679
    %v681 = vpop.permute.xlu0 %680
    %v682 = vlaneseq
    %v683 = vshrl.u32 %v682, 7
    %v684 = vsub.s32 1, %v683
    %v685 = vrot.slane %v50, %v684
    %687 = vbcast.lane.b32.xlu0 %v685, 256
    %v688 = vpop.permute.xlu0 %687
    %s690 = sor.u32 256, 8
    %691 = vbcast.lane.b32.xlu0 %v685, %s690
    %v692 = vpop.permute.xlu0 %691
    %s694 = sor.u32 256, 16
    %695 = vbcast.lane.b32.xlu0 %v685, %s694
    %v696 = vpop.permute.xlu0 %695
    %s698 = sor.u32 256, 24
    %699 = vbcast.lane.b32.xlu0 %v685, %s698
    %v700 = vpop.permute.xlu0 %699
    %s702 = sor.u32 256, 32
    %703 = vbcast.lane.b32.xlu0 %v685, %s702
    %v704 = vpop.permute.xlu0 %703
    %s706 = sor.u32 256, 40
    %707 = vbcast.lane.b32.xlu0 %v685, %s706
    %v708 = vpop.permute.xlu0 %707
    %s710 = sor.u32 256, 48
    %711 = vbcast.lane.b32.xlu0 %v685, %s710
    %v712 = vpop.permute.xlu0 %711
    %s714 = sor.u32 256, 56
    %715 = vbcast.lane.b32.xlu0 %v685, %s714
    %v716 = vpop.permute.xlu0 %715
    %s718 = sor.u32 256, 64
    %719 = vbcast.lane.b32.xlu0 %v685, %s718
    %v720 = vpop.permute.xlu0 %719
    %s722 = sor.u32 256, 72
    %723 = vbcast.lane.b32.xlu0 %v685, %s722
    %v724 = vpop.permute.xlu0 %723
    %s726 = sor.u32 256, 80
    %727 = vbcast.lane.b32.xlu0 %v685, %s726
    %v728 = vpop.permute.xlu0 %727
    %s730 = sor.u32 256, 88
    %731 = vbcast.lane.b32.xlu0 %v685, %s730
    %v732 = vpop.permute.xlu0 %731
    %s734 = sor.u32 256, 96
    %735 = vbcast.lane.b32.xlu0 %v685, %s734
    %v736 = vpop.permute.xlu0 %735
    %s738 = sor.u32 256, 104
    %739 = vbcast.lane.b32.xlu0 %v685, %s738
    %v740 = vpop.permute.xlu0 %739
    %s742 = sor.u32 256, 112
    %743 = vbcast.lane.b32.xlu0 %v685, %s742
    %v744 = vpop.permute.xlu0 %743
    %s746 = sor.u32 256, 120
    %747 = vbcast.lane.b32.xlu0 %v685, %s746
    %v748 = vpop.permute.xlu0 %747
    %v749 = vlaneseq
    %v750 = vshrl.u32 %v749, 7
    %v751 = vsub.s32 2, %v750
    %v752 = vrot.slane %v50, %v751
    %754 = vbcast.lane.b32.xlu0 %v752, 256
    %v755 = vpop.permute.xlu0 %754
    %s757 = sor.u32 256, 8
    %758 = vbcast.lane.b32.xlu0 %v752, %s757
    %v759 = vpop.permute.xlu0 %758
    %s761 = sor.u32 256, 16
    %762 = vbcast.lane.b32.xlu0 %v752, %s761
    %v763 = vpop.permute.xlu0 %762
    %s765 = sor.u32 256, 24
    %766 = vbcast.lane.b32.xlu0 %v752, %s765
    %v767 = vpop.permute.xlu0 %766
    %s769 = sor.u32 256, 32
    %770 = vbcast.lane.b32.xlu0 %v752, %s769
    %v771 = vpop.permute.xlu0 %770
    %s773 = sor.u32 256, 40
    %774 = vbcast.lane.b32.xlu0 %v752, %s773
    %v775 = vpop.permute.xlu0 %774
    %s777 = sor.u32 256, 48
    %778 = vbcast.lane.b32.xlu0 %v752, %s777
    %v779 = vpop.permute.xlu0 %778
    %s781 = sor.u32 256, 56
    %782 = vbcast.lane.b32.xlu0 %v752, %s781
    %v783 = vpop.permute.xlu0 %782
    %s785 = sor.u32 256, 64
    %786 = vbcast.lane.b32.xlu0 %v752, %s785
    %v787 = vpop.permute.xlu0 %786
    %s789 = sor.u32 256, 72
    %790 = vbcast.lane.b32.xlu0 %v752, %s789
    %v791 = vpop.permute.xlu0 %790
    %s793 = sor.u32 256, 80
    %794 = vbcast.lane.b32.xlu0 %v752, %s793
    %v795 = vpop.permute.xlu0 %794
    %s797 = sor.u32 256, 88
    %798 = vbcast.lane.b32.xlu0 %v752, %s797
    %v799 = vpop.permute.xlu0 %798
    %s801 = sor.u32 256, 96
    %802 = vbcast.lane.b32.xlu0 %v752, %s801
    %v803 = vpop.permute.xlu0 %802
    %s805 = sor.u32 256, 104
    %806 = vbcast.lane.b32.xlu0 %v752, %s805
    %v807 = vpop.permute.xlu0 %806
    %s809 = sor.u32 256, 112
    %810 = vbcast.lane.b32.xlu0 %v752, %s809
    %v811 = vpop.permute.xlu0 %810
    %s813 = sor.u32 256, 120
    %814 = vbcast.lane.b32.xlu0 %v752, %s813
    %v815 = vpop.permute.xlu0 %814
    %v816 = vlaneseq
    %v817 = vshrl.u32 %v816, 7
    %v818 = vsub.s32 3, %v817
    %v819 = vrot.slane %v50, %v818
    %821 = vbcast.lane.b32.xlu0 %v819, 256
    %v822 = vpop.permute.xlu0 %821
    %s824 = sor.u32 256, 8
    %825 = vbcast.lane.b32.xlu0 %v819, %s824
    %v826 = vpop.permute.xlu0 %825
    %s828 = sor.u32 256, 16
    %829 = vbcast.lane.b32.xlu0 %v819, %s828
    %v830 = vpop.permute.xlu0 %829
    %s832 = sor.u32 256, 24
    %833 = vbcast.lane.b32.xlu0 %v819, %s832
    %v834 = vpop.permute.xlu0 %833
    %s836 = sor.u32 256, 32
    %837 = vbcast.lane.b32.xlu0 %v819, %s836
    %v838 = vpop.permute.xlu0 %837
    %s840 = sor.u32 256, 40
    %841 = vbcast.lane.b32.xlu0 %v819, %s840
    %v842 = vpop.permute.xlu0 %841
    %s844 = sor.u32 256, 48
    %845 = vbcast.lane.b32.xlu0 %v819, %s844
    %v846 = vpop.permute.xlu0 %845
    %s848 = sor.u32 256, 56
    %849 = vbcast.lane.b32.xlu0 %v819, %s848
    %v850 = vpop.permute.xlu0 %849
    %s852 = sor.u32 256, 64
    %853 = vbcast.lane.b32.xlu0 %v819, %s852
    %v854 = vpop.permute.xlu0 %853
    %s856 = sor.u32 256, 72
    %857 = vbcast.lane.b32.xlu0 %v819, %s856
    %v858 = vpop.permute.xlu0 %857
    %s860 = sor.u32 256, 80
    %861 = vbcast.lane.b32.xlu0 %v819, %s860
    %v862 = vpop.permute.xlu0 %861
    %s864 = sor.u32 256, 88
    %865 = vbcast.lane.b32.xlu0 %v819, %s864
    %v866 = vpop.permute.xlu0 %865
    %s868 = sor.u32 256, 96
    %869 = vbcast.lane.b32.xlu0 %v819, %s868
    %v870 = vpop.permute.xlu0 %869
    %s872 = sor.u32 256, 104
    %873 = vbcast.lane.b32.xlu0 %v819, %s872
    %v874 = vpop.permute.xlu0 %873
    %s876 = sor.u32 256, 112
    %877 = vbcast.lane.b32.xlu0 %v819, %s876
    %v878 = vpop.permute.xlu0 %877
    %s880 = sor.u32 256, 120
    %881 = vbcast.lane.b32.xlu0 %v819, %s880
    %v882 = vpop.permute.xlu0 %881
    %v883 = vlaneseq
    %v884 = vshrl.u32 %v883, 7
    %v885 = vsub.s32 4, %v884
    %v886 = vrot.slane %v50, %v885
    %888 = vbcast.lane.b32.xlu0 %v886, 256
    %v889 = vpop.permute.xlu0 %888
    %s891 = sor.u32 256, 8
    %892 = vbcast.lane.b32.xlu0 %v886, %s891
    %v893 = vpop.permute.xlu0 %892
    %s895 = sor.u32 256, 16
    %896 = vbcast.lane.b32.xlu0 %v886, %s895
    %v897 = vpop.permute.xlu0 %896
    %s899 = sor.u32 256, 24
    %900 = vbcast.lane.b32.xlu0 %v886, %s899
    %v901 = vpop.permute.xlu0 %900
    %s903 = sor.u32 256, 32
    %904 = vbcast.lane.b32.xlu0 %v886, %s903
    %v905 = vpop.permute.xlu0 %904
    %s907 = sor.u32 256, 40
    %908 = vbcast.lane.b32.xlu0 %v886, %s907
    %v909 = vpop.permute.xlu0 %908
    %s911 = sor.u32 256, 48
    %912 = vbcast.lane.b32.xlu0 %v886, %s911
    %v913 = vpop.permute.xlu0 %912
    %s915 = sor.u32 256, 56
    %916 = vbcast.lane.b32.xlu0 %v886, %s915
    %v917 = vpop.permute.xlu0 %916
    %s919 = sor.u32 256, 64
    %920 = vbcast.lane.b32.xlu0 %v886, %s919
    %v921 = vpop.permute.xlu0 %920
    %s923 = sor.u32 256, 72
    %924 = vbcast.lane.b32.xlu0 %v886, %s923
    %v925 = vpop.permute.xlu0 %924
    %s927 = sor.u32 256, 80
    %928 = vbcast.lane.b32.xlu0 %v886, %s927
    %v929 = vpop.permute.xlu0 %928
    %s931 = sor.u32 256, 88
    %932 = vbcast.lane.b32.xlu0 %v886, %s931
    %v933 = vpop.permute.xlu0 %932
    %s935 = sor.u32 256, 96
    %936 = vbcast.lane.b32.xlu0 %v886, %s935
    %v937 = vpop.permute.xlu0 %936
    %s939 = sor.u32 256, 104
    %940 = vbcast.lane.b32.xlu0 %v886, %s939
    %v941 = vpop.permute.xlu0 %940
    %s943 = sor.u32 256, 112
    %944 = vbcast.lane.b32.xlu0 %v886, %s943
    %v945 = vpop.permute.xlu0 %944
    %s947 = sor.u32 256, 120
    %948 = vbcast.lane.b32.xlu0 %v886, %s947
    %v949 = vpop.permute.xlu0 %948
    %v950 = vlaneseq
    %v951 = vshrl.u32 %v950, 7
    %v952 = vsub.s32 5, %v951
    %v953 = vrot.slane %v50, %v952
    %955 = vbcast.lane.b32.xlu0 %v953, 256
    %v956 = vpop.permute.xlu0 %955
    %s958 = sor.u32 256, 8
    %959 = vbcast.lane.b32.xlu0 %v953, %s958
    %v960 = vpop.permute.xlu0 %959
    %s962 = sor.u32 256, 16
    %963 = vbcast.lane.b32.xlu0 %v953, %s962
    %v964 = vpop.permute.xlu0 %963
    %s966 = sor.u32 256, 24
    %967 = vbcast.lane.b32.xlu0 %v953, %s966
    %v968 = vpop.permute.xlu0 %967
    %s970 = sor.u32 256, 32
    %971 = vbcast.lane.b32.xlu0 %v953, %s970
    %v972 = vpop.permute.xlu0 %971
    %s974 = sor.u32 256, 40
    %975 = vbcast.lane.b32.xlu0 %v953, %s974
    %v976 = vpop.permute.xlu0 %975
    %s978 = sor.u32 256, 48
    %979 = vbcast.lane.b32.xlu0 %v953, %s978
    %v980 = vpop.permute.xlu0 %979
    %s982 = sor.u32 256, 56
    %983 = vbcast.lane.b32.xlu0 %v953, %s982
    %v984 = vpop.permute.xlu0 %983
    %s986 = sor.u32 256, 64
    %987 = vbcast.lane.b32.xlu0 %v953, %s986
    %v988 = vpop.permute.xlu0 %987
    %s990 = sor.u32 256, 72
    %991 = vbcast.lane.b32.xlu0 %v953, %s990
    %v992 = vpop.permute.xlu0 %991
    %s994 = sor.u32 256, 80
    %995 = vbcast.lane.b32.xlu0 %v953, %s994
    %v996 = vpop.permute.xlu0 %995
    %s998 = sor.u32 256, 88
    %999 = vbcast.lane.b32.xlu0 %v953, %s998
    %v1000 = vpop.permute.xlu0 %999
    %s1002 = sor.u32 256, 96
    %1003 = vbcast.lane.b32.xlu0 %v953, %s1002
    %v1004 = vpop.permute.xlu0 %1003
    %s1006 = sor.u32 256, 104
    %1007 = vbcast.lane.b32.xlu0 %v953, %s1006
    %v1008 = vpop.permute.xlu0 %1007
    %s1010 = sor.u32 256, 112
    %1011 = vbcast.lane.b32.xlu0 %v953, %s1010
    %v1012 = vpop.permute.xlu0 %1011
    %s1014 = sor.u32 256, 120
    %1015 = vbcast.lane.b32.xlu0 %v953, %s1014
    %v1016 = vpop.permute.xlu0 %1015
    %v1017 = vlaneseq
    %v1018 = vshrl.u32 %v1017, 7
    %v1019 = vsub.s32 6, %v1018
    %v1020 = vrot.slane %v50, %v1019
    %1022 = vbcast.lane.b32.xlu0 %v1020, 256
    %v1023 = vpop.permute.xlu0 %1022
    %s1025 = sor.u32 256, 8
    %1026 = vbcast.lane.b32.xlu0 %v1020, %s1025
    %v1027 = vpop.permute.xlu0 %1026
    %s1029 = sor.u32 256, 16
    %1030 = vbcast.lane.b32.xlu0 %v1020, %s1029
    %v1031 = vpop.permute.xlu0 %1030
    %s1033 = sor.u32 256, 24
    %1034 = vbcast.lane.b32.xlu0 %v1020, %s1033
    %v1035 = vpop.permute.xlu0 %1034
    %s1037 = sor.u32 256, 32
    %1038 = vbcast.lane.b32.xlu0 %v1020, %s1037
    %v1039 = vpop.permute.xlu0 %1038
    %s1041 = sor.u32 256, 40
    %1042 = vbcast.lane.b32.xlu0 %v1020, %s1041
    %v1043 = vpop.permute.xlu0 %1042
    %s1045 = sor.u32 256, 48
    %1046 = vbcast.lane.b32.xlu0 %v1020, %s1045
    %v1047 = vpop.permute.xlu0 %1046
    %s1049 = sor.u32 256, 56
    %1050 = vbcast.lane.b32.xlu0 %v1020, %s1049
    %v1051 = vpop.permute.xlu0 %1050
    %s1053 = sor.u32 256, 64
    %1054 = vbcast.lane.b32.xlu0 %v1020, %s1053
    %v1055 = vpop.permute.xlu0 %1054
    %s1057 = sor.u32 256, 72
    %1058 = vbcast.lane.b32.xlu0 %v1020, %s1057
    %v1059 = vpop.permute.xlu0 %1058
    %s1061 = sor.u32 256, 80
    %1062 = vbcast.lane.b32.xlu0 %v1020, %s1061
    %v1063 = vpop.permute.xlu0 %1062
    %s1065 = sor.u32 256, 88
    %1066 = vbcast.lane.b32.xlu0 %v1020, %s1065
    %v1067 = vpop.permute.xlu0 %1066
    %s1069 = sor.u32 256, 96
    %1070 = vbcast.lane.b32.xlu0 %v1020, %s1069
    %v1071 = vpop.permute.xlu0 %1070
    %s1073 = sor.u32 256, 104
    %1074 = vbcast.lane.b32.xlu0 %v1020, %s1073
    %v1075 = vpop.permute.xlu0 %1074
    %s1077 = sor.u32 256, 112
    %1078 = vbcast.lane.b32.xlu0 %v1020, %s1077
    %v1079 = vpop.permute.xlu0 %1078
    %s1081 = sor.u32 256, 120
    %1082 = vbcast.lane.b32.xlu0 %v1020, %s1081
    %v1083 = vpop.permute.xlu0 %1082
    %v1084 = vlaneseq
    %v1085 = vshrl.u32 %v1084, 7
    %v1086 = vsub.s32 7, %v1085
    %v1087 = vrot.slane %v50, %v1086
    %1089 = vbcast.lane.b32.xlu0 %v1087, 256
    %v1090 = vpop.permute.xlu0 %1089
    %s1092 = sor.u32 256, 8
    %1093 = vbcast.lane.b32.xlu0 %v1087, %s1092
    %v1094 = vpop.permute.xlu0 %1093
    %s1096 = sor.u32 256, 16
    %1097 = vbcast.lane.b32.xlu0 %v1087, %s1096
    %v1098 = vpop.permute.xlu0 %1097
    %s1100 = sor.u32 256, 24
    %1101 = vbcast.lane.b32.xlu0 %v1087, %s1100
    %v1102 = vpop.permute.xlu0 %1101
    %s1104 = sor.u32 256, 32
    %1105 = vbcast.lane.b32.xlu0 %v1087, %s1104
    %v1106 = vpop.permute.xlu0 %1105
    %s1108 = sor.u32 256, 40
    %1109 = vbcast.lane.b32.xlu0 %v1087, %s1108
    %v1110 = vpop.permute.xlu0 %1109
    %s1112 = sor.u32 256, 48
    %1113 = vbcast.lane.b32.xlu0 %v1087, %s1112
    %v1114 = vpop.permute.xlu0 %1113
    %s1116 = sor.u32 256, 56
    %1117 = vbcast.lane.b32.xlu0 %v1087, %s1116
    %v1118 = vpop.permute.xlu0 %1117
    %s1120 = sor.u32 256, 64
    %1121 = vbcast.lane.b32.xlu0 %v1087, %s1120
    %v1122 = vpop.permute.xlu0 %1121
    %s1124 = sor.u32 256, 72
    %1125 = vbcast.lane.b32.xlu0 %v1087, %s1124
    %v1126 = vpop.permute.xlu0 %1125
    %s1128 = sor.u32 256, 80
    %1129 = vbcast.lane.b32.xlu0 %v1087, %s1128
    %v1130 = vpop.permute.xlu0 %1129
    %s1132 = sor.u32 256, 88
    %1133 = vbcast.lane.b32.xlu0 %v1087, %s1132
    %v1134 = vpop.permute.xlu0 %1133
    %s1136 = sor.u32 256, 96
    %1137 = vbcast.lane.b32.xlu0 %v1087, %s1136
    %v1138 = vpop.permute.xlu0 %1137
    %s1140 = sor.u32 256, 104
    %1141 = vbcast.lane.b32.xlu0 %v1087, %s1140
    %v1142 = vpop.permute.xlu0 %1141
    %s1144 = sor.u32 256, 112
    %1145 = vbcast.lane.b32.xlu0 %v1087, %s1144
    %v1146 = vpop.permute.xlu0 %1145
    %s1148 = sor.u32 256, 120
    %1149 = vbcast.lane.b32.xlu0 %v1087, %s1148
    %v1150 = vpop.permute.xlu0 %1149
    %v1151 = vlaneseq
    %v1152 = vshrl.u32 %v1151, 7
    %v1153 = vsub.s32 0, %v1152
    %v1154 = vrot.slane %v77, %v1153
    %1156 = vbcast.lane.b32.xlu0 %v1154, 256
    %v1157 = vpop.permute.xlu0 %1156
    %s1159 = sor.u32 256, 8
    %1160 = vbcast.lane.b32.xlu0 %v1154, %s1159
    %v1161 = vpop.permute.xlu0 %1160
    %s1163 = sor.u32 256, 16
    %1164 = vbcast.lane.b32.xlu0 %v1154, %s1163
    %v1165 = vpop.permute.xlu0 %1164
    %s1167 = sor.u32 256, 24
    %1168 = vbcast.lane.b32.xlu0 %v1154, %s1167
    %v1169 = vpop.permute.xlu0 %1168
    %s1171 = sor.u32 256, 32
    %1172 = vbcast.lane.b32.xlu0 %v1154, %s1171
    %v1173 = vpop.permute.xlu0 %1172
    %s1175 = sor.u32 256, 40
    %1176 = vbcast.lane.b32.xlu0 %v1154, %s1175
    %v1177 = vpop.permute.xlu0 %1176
    %s1179 = sor.u32 256, 48
    %1180 = vbcast.lane.b32.xlu0 %v1154, %s1179
    %v1181 = vpop.permute.xlu0 %1180
    %s1183 = sor.u32 256, 56
    %1184 = vbcast.lane.b32.xlu0 %v1154, %s1183
    %v1185 = vpop.permute.xlu0 %1184
    %s1187 = sor.u32 256, 64
    %1188 = vbcast.lane.b32.xlu0 %v1154, %s1187
    %v1189 = vpop.permute.xlu0 %1188
    %s1191 = sor.u32 256, 72
    %1192 = vbcast.lane.b32.xlu0 %v1154, %s1191
    %v1193 = vpop.permute.xlu0 %1192
    %s1195 = sor.u32 256, 80
    %1196 = vbcast.lane.b32.xlu0 %v1154, %s1195
    %v1197 = vpop.permute.xlu0 %1196
    %s1199 = sor.u32 256, 88
    %1200 = vbcast.lane.b32.xlu0 %v1154, %s1199
    %v1201 = vpop.permute.xlu0 %1200
    %s1203 = sor.u32 256, 96
    %1204 = vbcast.lane.b32.xlu0 %v1154, %s1203
    %v1205 = vpop.permute.xlu0 %1204
    %s1207 = sor.u32 256, 104
    %1208 = vbcast.lane.b32.xlu0 %v1154, %s1207
    %v1209 = vpop.permute.xlu0 %1208
    %s1211 = sor.u32 256, 112
    %1212 = vbcast.lane.b32.xlu0 %v1154, %s1211
    %v1213 = vpop.permute.xlu0 %1212
    %s1215 = sor.u32 256, 120
    %1216 = vbcast.lane.b32.xlu0 %v1154, %s1215
    %v1217 = vpop.permute.xlu0 %1216
    %v1218 = vlaneseq
    %v1219 = vshrl.u32 %v1218, 7
    %v1220 = vsub.s32 1, %v1219
    %v1221 = vrot.slane %v77, %v1220
    %1223 = vbcast.lane.b32.xlu0 %v1221, 256
    %v1224 = vpop.permute.xlu0 %1223
    %s1226 = sor.u32 256, 8
    %1227 = vbcast.lane.b32.xlu0 %v1221, %s1226
    %v1228 = vpop.permute.xlu0 %1227
    %s1230 = sor.u32 256, 16
    %1231 = vbcast.lane.b32.xlu0 %v1221, %s1230
    %v1232 = vpop.permute.xlu0 %1231
    %s1234 = sor.u32 256, 24
    %1235 = vbcast.lane.b32.xlu0 %v1221, %s1234
    %v1236 = vpop.permute.xlu0 %1235
    %s1238 = sor.u32 256, 32
    %1239 = vbcast.lane.b32.xlu0 %v1221, %s1238
    %v1240 = vpop.permute.xlu0 %1239
    %s1242 = sor.u32 256, 40
    %1243 = vbcast.lane.b32.xlu0 %v1221, %s1242
    %v1244 = vpop.permute.xlu0 %1243
    %s1246 = sor.u32 256, 48
    %1247 = vbcast.lane.b32.xlu0 %v1221, %s1246
    %v1248 = vpop.permute.xlu0 %1247
    %s1250 = sor.u32 256, 56
    %1251 = vbcast.lane.b32.xlu0 %v1221, %s1250
    %v1252 = vpop.permute.xlu0 %1251
    %s1254 = sor.u32 256, 64
    %1255 = vbcast.lane.b32.xlu0 %v1221, %s1254
    %v1256 = vpop.permute.xlu0 %1255
    %s1258 = sor.u32 256, 72
    %1259 = vbcast.lane.b32.xlu0 %v1221, %s1258
    %v1260 = vpop.permute.xlu0 %1259
    %s1262 = sor.u32 256, 80
    %1263 = vbcast.lane.b32.xlu0 %v1221, %s1262
    %v1264 = vpop.permute.xlu0 %1263
    %s1266 = sor.u32 256, 88
    %1267 = vbcast.lane.b32.xlu0 %v1221, %s1266
    %v1268 = vpop.permute.xlu0 %1267
    %s1270 = sor.u32 256, 96
    %1271 = vbcast.lane.b32.xlu0 %v1221, %s1270
    %v1272 = vpop.permute.xlu0 %1271
    %s1274 = sor.u32 256, 104
    %1275 = vbcast.lane.b32.xlu0 %v1221, %s1274
    %v1276 = vpop.permute.xlu0 %1275
    %s1278 = sor.u32 256, 112
    %1279 = vbcast.lane.b32.xlu0 %v1221, %s1278
    %v1280 = vpop.permute.xlu0 %1279
    %s1282 = sor.u32 256, 120
    %1283 = vbcast.lane.b32.xlu0 %v1221, %s1282
    %v1284 = vpop.permute.xlu0 %1283
    %v1285 = vlaneseq
    %v1286 = vshrl.u32 %v1285, 7
    %v1287 = vsub.s32 2, %v1286
    %v1288 = vrot.slane %v77, %v1287
    %1290 = vbcast.lane.b32.xlu0 %v1288, 256
    %v1291 = vpop.permute.xlu0 %1290
    %s1293 = sor.u32 256, 8
    %1294 = vbcast.lane.b32.xlu0 %v1288, %s1293
    %v1295 = vpop.permute.xlu0 %1294
    %s1297 = sor.u32 256, 16
    %1298 = vbcast.lane.b32.xlu0 %v1288, %s1297
    %v1299 = vpop.permute.xlu0 %1298
    %s1301 = sor.u32 256, 24
    %1302 = vbcast.lane.b32.xlu0 %v1288, %s1301
    %v1303 = vpop.permute.xlu0 %1302
    %s1305 = sor.u32 256, 32
    %1306 = vbcast.lane.b32.xlu0 %v1288, %s1305
    %v1307 = vpop.permute.xlu0 %1306
    %s1309 = sor.u32 256, 40
    %1310 = vbcast.lane.b32.xlu0 %v1288, %s1309
    %v1311 = vpop.permute.xlu0 %1310
    %s1313 = sor.u32 256, 48
    %1314 = vbcast.lane.b32.xlu0 %v1288, %s1313
    %v1315 = vpop.permute.xlu0 %1314
    %s1317 = sor.u32 256, 56
    %1318 = vbcast.lane.b32.xlu0 %v1288, %s1317
    %v1319 = vpop.permute.xlu0 %1318
    %s1321 = sor.u32 256, 64
    %1322 = vbcast.lane.b32.xlu0 %v1288, %s1321
    %v1323 = vpop.permute.xlu0 %1322
    %s1325 = sor.u32 256, 72
    %1326 = vbcast.lane.b32.xlu0 %v1288, %s1325
    %v1327 = vpop.permute.xlu0 %1326
    %s1329 = sor.u32 256, 80
    %1330 = vbcast.lane.b32.xlu0 %v1288, %s1329
    %v1331 = vpop.permute.xlu0 %1330
    %s1333 = sor.u32 256, 88
    %1334 = vbcast.lane.b32.xlu0 %v1288, %s1333
    %v1335 = vpop.permute.xlu0 %1334
    %s1337 = sor.u32 256, 96
    %1338 = vbcast.lane.b32.xlu0 %v1288, %s1337
    %v1339 = vpop.permute.xlu0 %1338
    %s1341 = sor.u32 256, 104
    %1342 = vbcast.lane.b32.xlu0 %v1288, %s1341
    %v1343 = vpop.permute.xlu0 %1342
    %s1345 = sor.u32 256, 112
    %1346 = vbcast.lane.b32.xlu0 %v1288, %s1345
    %v1347 = vpop.permute.xlu0 %1346
    %s1349 = sor.u32 256, 120
    %1350 = vbcast.lane.b32.xlu0 %v1288, %s1349
    %v1351 = vpop.permute.xlu0 %1350
    %v1352 = vlaneseq
    %v1353 = vshrl.u32 %v1352, 7
    %v1354 = vsub.s32 3, %v1353
    %v1355 = vrot.slane %v77, %v1354
    %1357 = vbcast.lane.b32.xlu0 %v1355, 256
    %v1358 = vpop.permute.xlu0 %1357
    %s1360 = sor.u32 256, 8
    %1361 = vbcast.lane.b32.xlu0 %v1355, %s1360
    %v1362 = vpop.permute.xlu0 %1361
    %s1364 = sor.u32 256, 16
    %1365 = vbcast.lane.b32.xlu0 %v1355, %s1364
    %v1366 = vpop.permute.xlu0 %1365
    %s1368 = sor.u32 256, 24
    %1369 = vbcast.lane.b32.xlu0 %v1355, %s1368
    %v1370 = vpop.permute.xlu0 %1369
    %s1372 = sor.u32 256, 32
    %1373 = vbcast.lane.b32.xlu0 %v1355, %s1372
    %v1374 = vpop.permute.xlu0 %1373
    %s1376 = sor.u32 256, 40
    %1377 = vbcast.lane.b32.xlu0 %v1355, %s1376
    %v1378 = vpop.permute.xlu0 %1377
    %s1380 = sor.u32 256, 48
    %1381 = vbcast.lane.b32.xlu0 %v1355, %s1380
    %v1382 = vpop.permute.xlu0 %1381
    %s1384 = sor.u32 256, 56
    %1385 = vbcast.lane.b32.xlu0 %v1355, %s1384
    %v1386 = vpop.permute.xlu0 %1385
    %s1388 = sor.u32 256, 64
    %1389 = vbcast.lane.b32.xlu0 %v1355, %s1388
    %v1390 = vpop.permute.xlu0 %1389
    %s1392 = sor.u32 256, 72
    %1393 = vbcast.lane.b32.xlu0 %v1355, %s1392
    %v1394 = vpop.permute.xlu0 %1393
    %s1396 = sor.u32 256, 80
    %1397 = vbcast.lane.b32.xlu0 %v1355, %s1396
    %v1398 = vpop.permute.xlu0 %1397
    %s1400 = sor.u32 256, 88
    %1401 = vbcast.lane.b32.xlu0 %v1355, %s1400
    %v1402 = vpop.permute.xlu0 %1401
    %s1404 = sor.u32 256, 96
    %1405 = vbcast.lane.b32.xlu0 %v1355, %s1404
    %v1406 = vpop.permute.xlu0 %1405
    %s1408 = sor.u32 256, 104
    %1409 = vbcast.lane.b32.xlu0 %v1355, %s1408
    %v1410 = vpop.permute.xlu0 %1409
    %s1412 = sor.u32 256, 112
    %1413 = vbcast.lane.b32.xlu0 %v1355, %s1412
    %v1414 = vpop.permute.xlu0 %1413
    %s1416 = sor.u32 256, 120
    %1417 = vbcast.lane.b32.xlu0 %v1355, %s1416
    %v1418 = vpop.permute.xlu0 %1417
    %v1419 = vlaneseq
    %v1420 = vshrl.u32 %v1419, 7
    %v1421 = vsub.s32 4, %v1420
    %v1422 = vrot.slane %v77, %v1421
    %1424 = vbcast.lane.b32.xlu0 %v1422, 256
    %v1425 = vpop.permute.xlu0 %1424
    %s1427 = sor.u32 256, 8
    %1428 = vbcast.lane.b32.xlu0 %v1422, %s1427
    %v1429 = vpop.permute.xlu0 %1428
    %s1431 = sor.u32 256, 16
    %1432 = vbcast.lane.b32.xlu0 %v1422, %s1431
    %v1433 = vpop.permute.xlu0 %1432
    %s1435 = sor.u32 256, 24
    %1436 = vbcast.lane.b32.xlu0 %v1422, %s1435
    %v1437 = vpop.permute.xlu0 %1436
    %s1439 = sor.u32 256, 32
    %1440 = vbcast.lane.b32.xlu0 %v1422, %s1439
    %v1441 = vpop.permute.xlu0 %1440
    %s1443 = sor.u32 256, 40
    %1444 = vbcast.lane.b32.xlu0 %v1422, %s1443
    %v1445 = vpop.permute.xlu0 %1444
    %s1447 = sor.u32 256, 48
    %1448 = vbcast.lane.b32.xlu0 %v1422, %s1447
    %v1449 = vpop.permute.xlu0 %1448
    %s1451 = sor.u32 256, 56
    %1452 = vbcast.lane.b32.xlu0 %v1422, %s1451
    %v1453 = vpop.permute.xlu0 %1452
    %s1455 = sor.u32 256, 64
    %1456 = vbcast.lane.b32.xlu0 %v1422, %s1455
    %v1457 = vpop.permute.xlu0 %1456
    %s1459 = sor.u32 256, 72
    %1460 = vbcast.lane.b32.xlu0 %v1422, %s1459
    %v1461 = vpop.permute.xlu0 %1460
    %s1463 = sor.u32 256, 80
    %1464 = vbcast.lane.b32.xlu0 %v1422, %s1463
    %v1465 = vpop.permute.xlu0 %1464
    %s1467 = sor.u32 256, 88
    %1468 = vbcast.lane.b32.xlu0 %v1422, %s1467
    %v1469 = vpop.permute.xlu0 %1468
    %s1471 = sor.u32 256, 96
    %1472 = vbcast.lane.b32.xlu0 %v1422, %s1471
    %v1473 = vpop.permute.xlu0 %1472
    %s1475 = sor.u32 256, 104
    %1476 = vbcast.lane.b32.xlu0 %v1422, %s1475
    %v1477 = vpop.permute.xlu0 %1476
    %s1479 = sor.u32 256, 112
    %1480 = vbcast.lane.b32.xlu0 %v1422, %s1479
    %v1481 = vpop.permute.xlu0 %1480
    %s1483 = sor.u32 256, 120
    %1484 = vbcast.lane.b32.xlu0 %v1422, %s1483
    %v1485 = vpop.permute.xlu0 %1484
    %v1486 = vlaneseq
    %v1487 = vshrl.u32 %v1486, 7
    %v1488 = vsub.s32 5, %v1487
    %v1489 = vrot.slane %v77, %v1488
    %1491 = vbcast.lane.b32.xlu0 %v1489, 256
    %v1492 = vpop.permute.xlu0 %1491
    %s1494 = sor.u32 256, 8
    %1495 = vbcast.lane.b32.xlu0 %v1489, %s1494
    %v1496 = vpop.permute.xlu0 %1495
    %s1498 = sor.u32 256, 16
    %1499 = vbcast.lane.b32.xlu0 %v1489, %s1498
    %v1500 = vpop.permute.xlu0 %1499
    %s1502 = sor.u32 256, 24
    %1503 = vbcast.lane.b32.xlu0 %v1489, %s1502
    %v1504 = vpop.permute.xlu0 %1503
    %s1506 = sor.u32 256, 32
    %1507 = vbcast.lane.b32.xlu0 %v1489, %s1506
    %v1508 = vpop.permute.xlu0 %1507
    %s1510 = sor.u32 256, 40
    %1511 = vbcast.lane.b32.xlu0 %v1489, %s1510
    %v1512 = vpop.permute.xlu0 %1511
    %s1514 = sor.u32 256, 48
    %1515 = vbcast.lane.b32.xlu0 %v1489, %s1514
    %v1516 = vpop.permute.xlu0 %1515
    %s1518 = sor.u32 256, 56
    %1519 = vbcast.lane.b32.xlu0 %v1489, %s1518
    %v1520 = vpop.permute.xlu0 %1519
    %s1522 = sor.u32 256, 64
    %1523 = vbcast.lane.b32.xlu0 %v1489, %s1522
    %v1524 = vpop.permute.xlu0 %1523
    %s1526 = sor.u32 256, 72
    %1527 = vbcast.lane.b32.xlu0 %v1489, %s1526
    %v1528 = vpop.permute.xlu0 %1527
    %s1530 = sor.u32 256, 80
    %1531 = vbcast.lane.b32.xlu0 %v1489, %s1530
    %v1532 = vpop.permute.xlu0 %1531
    %s1534 = sor.u32 256, 88
    %1535 = vbcast.lane.b32.xlu0 %v1489, %s1534
    %v1536 = vpop.permute.xlu0 %1535
    %s1538 = sor.u32 256, 96
    %1539 = vbcast.lane.b32.xlu0 %v1489, %s1538
    %v1540 = vpop.permute.xlu0 %1539
    %s1542 = sor.u32 256, 104
    %1543 = vbcast.lane.b32.xlu0 %v1489, %s1542
    %v1544 = vpop.permute.xlu0 %1543
    %s1546 = sor.u32 256, 112
    %1547 = vbcast.lane.b32.xlu0 %v1489, %s1546
    %v1548 = vpop.permute.xlu0 %1547
    %s1550 = sor.u32 256, 120
    %1551 = vbcast.lane.b32.xlu0 %v1489, %s1550
    %v1552 = vpop.permute.xlu0 %1551
    %v1553 = vlaneseq
    %v1554 = vshrl.u32 %v1553, 7
    %v1555 = vsub.s32 6, %v1554
    %v1556 = vrot.slane %v77, %v1555
    %1558 = vbcast.lane.b32.xlu0 %v1556, 256
    %v1559 = vpop.permute.xlu0 %1558
    %s1561 = sor.u32 256, 8
    %1562 = vbcast.lane.b32.xlu0 %v1556, %s1561
    %v1563 = vpop.permute.xlu0 %1562
    %s1565 = sor.u32 256, 16
    %1566 = vbcast.lane.b32.xlu0 %v1556, %s1565
    %v1567 = vpop.permute.xlu0 %1566
    %s1569 = sor.u32 256, 24
    %1570 = vbcast.lane.b32.xlu0 %v1556, %s1569
    %v1571 = vpop.permute.xlu0 %1570
    %s1573 = sor.u32 256, 32
    %1574 = vbcast.lane.b32.xlu0 %v1556, %s1573
    %v1575 = vpop.permute.xlu0 %1574
    %s1577 = sor.u32 256, 40
    %1578 = vbcast.lane.b32.xlu0 %v1556, %s1577
    %v1579 = vpop.permute.xlu0 %1578
    %s1581 = sor.u32 256, 48
    %1582 = vbcast.lane.b32.xlu0 %v1556, %s1581
    %v1583 = vpop.permute.xlu0 %1582
    %s1585 = sor.u32 256, 56
    %1586 = vbcast.lane.b32.xlu0 %v1556, %s1585
    %v1587 = vpop.permute.xlu0 %1586
    %s1589 = sor.u32 256, 64
    %1590 = vbcast.lane.b32.xlu0 %v1556, %s1589
    %v1591 = vpop.permute.xlu0 %1590
    %s1593 = sor.u32 256, 72
    %1594 = vbcast.lane.b32.xlu0 %v1556, %s1593
    %v1595 = vpop.permute.xlu0 %1594
    %s1597 = sor.u32 256, 80
    %1598 = vbcast.lane.b32.xlu0 %v1556, %s1597
    %v1599 = vpop.permute.xlu0 %1598
    %s1601 = sor.u32 256, 88
    %1602 = vbcast.lane.b32.xlu0 %v1556, %s1601
    %v1603 = vpop.permute.xlu0 %1602
    %s1605 = sor.u32 256, 96
    %1606 = vbcast.lane.b32.xlu0 %v1556, %s1605
    %v1607 = vpop.permute.xlu0 %1606
    %s1609 = sor.u32 256, 104
    %1610 = vbcast.lane.b32.xlu0 %v1556, %s1609
    %v1611 = vpop.permute.xlu0 %1610
    %s1613 = sor.u32 256, 112
    %1614 = vbcast.lane.b32.xlu0 %v1556, %s1613
    %v1615 = vpop.permute.xlu0 %1614
    %s1617 = sor.u32 256, 120
    %1618 = vbcast.lane.b32.xlu0 %v1556, %s1617
    %v1619 = vpop.permute.xlu0 %1618
    %v1620 = vlaneseq
    %v1621 = vshrl.u32 %v1620, 7
    %v1622 = vsub.s32 7, %v1621
    %v1623 = vrot.slane %v77, %v1622
    %1625 = vbcast.lane.b32.xlu0 %v1623, 256
    %v1626 = vpop.permute.xlu0 %1625
    %s1628 = sor.u32 256, 8
    %1629 = vbcast.lane.b32.xlu0 %v1623, %s1628
    %v1630 = vpop.permute.xlu0 %1629
    %s1632 = sor.u32 256, 16
    %1633 = vbcast.lane.b32.xlu0 %v1623, %s1632
    %v1634 = vpop.permute.xlu0 %1633
    %s1636 = sor.u32 256, 24
    %1637 = vbcast.lane.b32.xlu0 %v1623, %s1636
    %v1638 = vpop.permute.xlu0 %1637
    %s1640 = sor.u32 256, 32
    %1641 = vbcast.lane.b32.xlu0 %v1623, %s1640
    %v1642 = vpop.permute.xlu0 %1641
    %s1644 = sor.u32 256, 40
    %1645 = vbcast.lane.b32.xlu0 %v1623, %s1644
    %v1646 = vpop.permute.xlu0 %1645
    %s1648 = sor.u32 256, 48
    %1649 = vbcast.lane.b32.xlu0 %v1623, %s1648
    %v1650 = vpop.permute.xlu0 %1649
    %s1652 = sor.u32 256, 56
    %1653 = vbcast.lane.b32.xlu0 %v1623, %s1652
    %v1654 = vpop.permute.xlu0 %1653
    %s1656 = sor.u32 256, 64
    %1657 = vbcast.lane.b32.xlu0 %v1623, %s1656
    %v1658 = vpop.permute.xlu0 %1657
    %s1660 = sor.u32 256, 72
    %1661 = vbcast.lane.b32.xlu0 %v1623, %s1660
    %v1662 = vpop.permute.xlu0 %1661
    %s1664 = sor.u32 256, 80
    %1665 = vbcast.lane.b32.xlu0 %v1623, %s1664
    %v1666 = vpop.permute.xlu0 %1665
    %s1668 = sor.u32 256, 88
    %1669 = vbcast.lane.b32.xlu0 %v1623, %s1668
    %v1670 = vpop.permute.xlu0 %1669
    %s1672 = sor.u32 256, 96
    %1673 = vbcast.lane.b32.xlu0 %v1623, %s1672
    %v1674 = vpop.permute.xlu0 %1673
    %s1676 = sor.u32 256, 104
    %1677 = vbcast.lane.b32.xlu0 %v1623, %s1676
    %v1678 = vpop.permute.xlu0 %1677
    %s1680 = sor.u32 256, 112
    %1681 = vbcast.lane.b32.xlu0 %v1623, %s1680
    %v1682 = vpop.permute.xlu0 %1681
    %s1684 = sor.u32 256, 120
    %1685 = vbcast.lane.b32.xlu0 %v1623, %s1684
    %v1686 = vpop.permute.xlu0 %1685
    %v1687 = vlaneseq
    %v1688 = vshrl.u32 %v1687, 7
    %v1689 = vsub.s32 0, %v1688
    %v1690 = vrot.slane %v78, %v1689
    %1692 = vbcast.lane.b32.xlu0 %v1690, 256
    %v1693 = vpop.permute.xlu0 %1692
    %s1695 = sor.u32 256, 8
    %1696 = vbcast.lane.b32.xlu0 %v1690, %s1695
    %v1697 = vpop.permute.xlu0 %1696
    %s1699 = sor.u32 256, 16
    %1700 = vbcast.lane.b32.xlu0 %v1690, %s1699
    %v1701 = vpop.permute.xlu0 %1700
    %s1703 = sor.u32 256, 24
    %1704 = vbcast.lane.b32.xlu0 %v1690, %s1703
    %v1705 = vpop.permute.xlu0 %1704
    %s1707 = sor.u32 256, 32
    %1708 = vbcast.lane.b32.xlu0 %v1690, %s1707
    %v1709 = vpop.permute.xlu0 %1708
    %s1711 = sor.u32 256, 40
    %1712 = vbcast.lane.b32.xlu0 %v1690, %s1711
    %v1713 = vpop.permute.xlu0 %1712
    %s1715 = sor.u32 256, 48
    %1716 = vbcast.lane.b32.xlu0 %v1690, %s1715
    %v1717 = vpop.permute.xlu0 %1716
    %s1719 = sor.u32 256, 56
    %1720 = vbcast.lane.b32.xlu0 %v1690, %s1719
    %v1721 = vpop.permute.xlu0 %1720
    %s1723 = sor.u32 256, 64
    %1724 = vbcast.lane.b32.xlu0 %v1690, %s1723
    %v1725 = vpop.permute.xlu0 %1724
    %s1727 = sor.u32 256, 72
    %1728 = vbcast.lane.b32.xlu0 %v1690, %s1727
    %v1729 = vpop.permute.xlu0 %1728
    %s1731 = sor.u32 256, 80
    %1732 = vbcast.lane.b32.xlu0 %v1690, %s1731
    %v1733 = vpop.permute.xlu0 %1732
    %s1735 = sor.u32 256, 88
    %1736 = vbcast.lane.b32.xlu0 %v1690, %s1735
    %v1737 = vpop.permute.xlu0 %1736
    %s1739 = sor.u32 256, 96
    %1740 = vbcast.lane.b32.xlu0 %v1690, %s1739
    %v1741 = vpop.permute.xlu0 %1740
    %s1743 = sor.u32 256, 104
    %1744 = vbcast.lane.b32.xlu0 %v1690, %s1743
    %v1745 = vpop.permute.xlu0 %1744
    %s1747 = sor.u32 256, 112
    %1748 = vbcast.lane.b32.xlu0 %v1690, %s1747
    %v1749 = vpop.permute.xlu0 %1748
    %s1751 = sor.u32 256, 120
    %1752 = vbcast.lane.b32.xlu0 %v1690, %s1751
    %v1753 = vpop.permute.xlu0 %1752
    %v1754 = vlaneseq
    %v1755 = vshrl.u32 %v1754, 7
    %v1756 = vsub.s32 1, %v1755
    %v1757 = vrot.slane %v78, %v1756
    %1759 = vbcast.lane.b32.xlu0 %v1757, 256
    %v1760 = vpop.permute.xlu0 %1759
    %s1762 = sor.u32 256, 8
    %1763 = vbcast.lane.b32.xlu0 %v1757, %s1762
    %v1764 = vpop.permute.xlu0 %1763
    %s1766 = sor.u32 256, 16
    %1767 = vbcast.lane.b32.xlu0 %v1757, %s1766
    %v1768 = vpop.permute.xlu0 %1767
    %s1770 = sor.u32 256, 24
    %1771 = vbcast.lane.b32.xlu0 %v1757, %s1770
    %v1772 = vpop.permute.xlu0 %1771
    %s1774 = sor.u32 256, 32
    %1775 = vbcast.lane.b32.xlu0 %v1757, %s1774
    %v1776 = vpop.permute.xlu0 %1775
    %s1778 = sor.u32 256, 40
    %1779 = vbcast.lane.b32.xlu0 %v1757, %s1778
    %v1780 = vpop.permute.xlu0 %1779
    %s1782 = sor.u32 256, 48
    %1783 = vbcast.lane.b32.xlu0 %v1757, %s1782
    %v1784 = vpop.permute.xlu0 %1783
    %s1786 = sor.u32 256, 56
    %1787 = vbcast.lane.b32.xlu0 %v1757, %s1786
    %v1788 = vpop.permute.xlu0 %1787
    %s1790 = sor.u32 256, 64
    %1791 = vbcast.lane.b32.xlu0 %v1757, %s1790
    %v1792 = vpop.permute.xlu0 %1791
    %s1794 = sor.u32 256, 72
    %1795 = vbcast.lane.b32.xlu0 %v1757, %s1794
    %v1796 = vpop.permute.xlu0 %1795
    %s1798 = sor.u32 256, 80
    %1799 = vbcast.lane.b32.xlu0 %v1757, %s1798
    %v1800 = vpop.permute.xlu0 %1799
    %s1802 = sor.u32 256, 88
    %1803 = vbcast.lane.b32.xlu0 %v1757, %s1802
    %v1804 = vpop.permute.xlu0 %1803
    %s1806 = sor.u32 256, 96
    %1807 = vbcast.lane.b32.xlu0 %v1757, %s1806
    %v1808 = vpop.permute.xlu0 %1807
    %s1810 = sor.u32 256, 104
    %1811 = vbcast.lane.b32.xlu0 %v1757, %s1810
    %v1812 = vpop.permute.xlu0 %1811
    %s1814 = sor.u32 256, 112
    %1815 = vbcast.lane.b32.xlu0 %v1757, %s1814
    %v1816 = vpop.permute.xlu0 %1815
    %s1818 = sor.u32 256, 120
    %1819 = vbcast.lane.b32.xlu0 %v1757, %s1818
    %v1820 = vpop.permute.xlu0 %1819
    %v1821 = vlaneseq
    %v1822 = vshrl.u32 %v1821, 7
    %v1823 = vsub.s32 2, %v1822
    %v1824 = vrot.slane %v78, %v1823
    %1826 = vbcast.lane.b32.xlu0 %v1824, 256
    %v1827 = vpop.permute.xlu0 %1826
    %s1829 = sor.u32 256, 8
    %1830 = vbcast.lane.b32.xlu0 %v1824, %s1829
    %v1831 = vpop.permute.xlu0 %1830
    %s1833 = sor.u32 256, 16
    %1834 = vbcast.lane.b32.xlu0 %v1824, %s1833
    %v1835 = vpop.permute.xlu0 %1834
    %s1837 = sor.u32 256, 24
    %1838 = vbcast.lane.b32.xlu0 %v1824, %s1837
    %v1839 = vpop.permute.xlu0 %1838
    %s1841 = sor.u32 256, 32
    %1842 = vbcast.lane.b32.xlu0 %v1824, %s1841
    %v1843 = vpop.permute.xlu0 %1842
    %s1845 = sor.u32 256, 40
    %1846 = vbcast.lane.b32.xlu0 %v1824, %s1845
    %v1847 = vpop.permute.xlu0 %1846
    %s1849 = sor.u32 256, 48
    %1850 = vbcast.lane.b32.xlu0 %v1824, %s1849
    %v1851 = vpop.permute.xlu0 %1850
    %s1853 = sor.u32 256, 56
    %1854 = vbcast.lane.b32.xlu0 %v1824, %s1853
    %v1855 = vpop.permute.xlu0 %1854
    %s1857 = sor.u32 256, 64
    %1858 = vbcast.lane.b32.xlu0 %v1824, %s1857
    %v1859 = vpop.permute.xlu0 %1858
    %s1861 = sor.u32 256, 72
    %1862 = vbcast.lane.b32.xlu0 %v1824, %s1861
    %v1863 = vpop.permute.xlu0 %1862
    %s1865 = sor.u32 256, 80
    %1866 = vbcast.lane.b32.xlu0 %v1824, %s1865
    %v1867 = vpop.permute.xlu0 %1866
    %s1869 = sor.u32 256, 88
    %1870 = vbcast.lane.b32.xlu0 %v1824, %s1869
    %v1871 = vpop.permute.xlu0 %1870
    %s1873 = sor.u32 256, 96
    %1874 = vbcast.lane.b32.xlu0 %v1824, %s1873
    %v1875 = vpop.permute.xlu0 %1874
    %s1877 = sor.u32 256, 104
    %1878 = vbcast.lane.b32.xlu0 %v1824, %s1877
    %v1879 = vpop.permute.xlu0 %1878
    %s1881 = sor.u32 256, 112
    %1882 = vbcast.lane.b32.xlu0 %v1824, %s1881
    %v1883 = vpop.permute.xlu0 %1882
    %s1885 = sor.u32 256, 120
    %1886 = vbcast.lane.b32.xlu0 %v1824, %s1885
    %v1887 = vpop.permute.xlu0 %1886
    %v1888 = vlaneseq
    %v1889 = vshrl.u32 %v1888, 7
    %v1890 = vsub.s32 3, %v1889
    %v1891 = vrot.slane %v78, %v1890
    %1893 = vbcast.lane.b32.xlu0 %v1891, 256
    %v1894 = vpop.permute.xlu0 %1893
    %s1896 = sor.u32 256, 8
    %1897 = vbcast.lane.b32.xlu0 %v1891, %s1896
    %v1898 = vpop.permute.xlu0 %1897
    %s1900 = sor.u32 256, 16
    %1901 = vbcast.lane.b32.xlu0 %v1891, %s1900
    %v1902 = vpop.permute.xlu0 %1901
    %s1904 = sor.u32 256, 24
    %1905 = vbcast.lane.b32.xlu0 %v1891, %s1904
    %v1906 = vpop.permute.xlu0 %1905
    %s1908 = sor.u32 256, 32
    %1909 = vbcast.lane.b32.xlu0 %v1891, %s1908
    %v1910 = vpop.permute.xlu0 %1909
    %s1912 = sor.u32 256, 40
    %1913 = vbcast.lane.b32.xlu0 %v1891, %s1912
    %v1914 = vpop.permute.xlu0 %1913
    %s1916 = sor.u32 256, 48
    %1917 = vbcast.lane.b32.xlu0 %v1891, %s1916
    %v1918 = vpop.permute.xlu0 %1917
    %s1920 = sor.u32 256, 56
    %1921 = vbcast.lane.b32.xlu0 %v1891, %s1920
    %v1922 = vpop.permute.xlu0 %1921
    %s1924 = sor.u32 256, 64
    %1925 = vbcast.lane.b32.xlu0 %v1891, %s1924
    %v1926 = vpop.permute.xlu0 %1925
    %s1928 = sor.u32 256, 72
    %1929 = vbcast.lane.b32.xlu0 %v1891, %s1928
    %v1930 = vpop.permute.xlu0 %1929
    %s1932 = sor.u32 256, 80
    %1933 = vbcast.lane.b32.xlu0 %v1891, %s1932
    %v1934 = vpop.permute.xlu0 %1933
    %s1936 = sor.u32 256, 88
    %1937 = vbcast.lane.b32.xlu0 %v1891, %s1936
    %v1938 = vpop.permute.xlu0 %1937
    %s1940 = sor.u32 256, 96
    %1941 = vbcast.lane.b32.xlu0 %v1891, %s1940
    %v1942 = vpop.permute.xlu0 %1941
    %s1944 = sor.u32 256, 104
    %1945 = vbcast.lane.b32.xlu0 %v1891, %s1944
    %v1946 = vpop.permute.xlu0 %1945
    %s1948 = sor.u32 256, 112
    %1949 = vbcast.lane.b32.xlu0 %v1891, %s1948
    %v1950 = vpop.permute.xlu0 %1949
    %s1952 = sor.u32 256, 120
    %1953 = vbcast.lane.b32.xlu0 %v1891, %s1952
    %v1954 = vpop.permute.xlu0 %1953
    %v1955 = vlaneseq
    %v1956 = vshrl.u32 %v1955, 7
    %v1957 = vsub.s32 4, %v1956
    %v1958 = vrot.slane %v78, %v1957
    %1960 = vbcast.lane.b32.xlu0 %v1958, 256
    %v1961 = vpop.permute.xlu0 %1960
    %s1963 = sor.u32 256, 8
    %1964 = vbcast.lane.b32.xlu0 %v1958, %s1963
    %v1965 = vpop.permute.xlu0 %1964
    %s1967 = sor.u32 256, 16
    %1968 = vbcast.lane.b32.xlu0 %v1958, %s1967
    %v1969 = vpop.permute.xlu0 %1968
    %s1971 = sor.u32 256, 24
    %1972 = vbcast.lane.b32.xlu0 %v1958, %s1971
    %v1973 = vpop.permute.xlu0 %1972
    %s1975 = sor.u32 256, 32
    %1976 = vbcast.lane.b32.xlu0 %v1958, %s1975
    %v1977 = vpop.permute.xlu0 %1976
    %s1979 = sor.u32 256, 40
    %1980 = vbcast.lane.b32.xlu0 %v1958, %s1979
    %v1981 = vpop.permute.xlu0 %1980
    %s1983 = sor.u32 256, 48
    %1984 = vbcast.lane.b32.xlu0 %v1958, %s1983
    %v1985 = vpop.permute.xlu0 %1984
    %s1987 = sor.u32 256, 56
    %1988 = vbcast.lane.b32.xlu0 %v1958, %s1987
    %v1989 = vpop.permute.xlu0 %1988
    %s1991 = sor.u32 256, 64
    %1992 = vbcast.lane.b32.xlu0 %v1958, %s1991
    %v1993 = vpop.permute.xlu0 %1992
    %s1995 = sor.u32 256, 72
    %1996 = vbcast.lane.b32.xlu0 %v1958, %s1995
    %v1997 = vpop.permute.xlu0 %1996
    %s1999 = sor.u32 256, 80
    %2000 = vbcast.lane.b32.xlu0 %v1958, %s1999
    %v2001 = vpop.permute.xlu0 %2000
    %s2003 = sor.u32 256, 88
    %2004 = vbcast.lane.b32.xlu0 %v1958, %s2003
    %v2005 = vpop.permute.xlu0 %2004
    %s2007 = sor.u32 256, 96
    %2008 = vbcast.lane.b32.xlu0 %v1958, %s2007
    %v2009 = vpop.permute.xlu0 %2008
    %s2011 = sor.u32 256, 104
    %2012 = vbcast.lane.b32.xlu0 %v1958, %s2011
    %v2013 = vpop.permute.xlu0 %2012
    %s2015 = sor.u32 256, 112
    %2016 = vbcast.lane.b32.xlu0 %v1958, %s2015
    %v2017 = vpop.permute.xlu0 %2016
    %s2019 = sor.u32 256, 120
    %2020 = vbcast.lane.b32.xlu0 %v1958, %s2019
    %v2021 = vpop.permute.xlu0 %2020
    %v2022 = vlaneseq
    %v2023 = vshrl.u32 %v2022, 7
    %v2024 = vsub.s32 5, %v2023
    %v2025 = vrot.slane %v78, %v2024
    %2027 = vbcast.lane.b32.xlu0 %v2025, 256
    %v2028 = vpop.permute.xlu0 %2027
    %s2030 = sor.u32 256, 8
    %2031 = vbcast.lane.b32.xlu0 %v2025, %s2030
    %v2032 = vpop.permute.xlu0 %2031
    %s2034 = sor.u32 256, 16
    %2035 = vbcast.lane.b32.xlu0 %v2025, %s2034
    %v2036 = vpop.permute.xlu0 %2035
    %s2038 = sor.u32 256, 24
    %2039 = vbcast.lane.b32.xlu0 %v2025, %s2038
    %v2040 = vpop.permute.xlu0 %2039
    %s2042 = sor.u32 256, 32
    %2043 = vbcast.lane.b32.xlu0 %v2025, %s2042
    %v2044 = vpop.permute.xlu0 %2043
    %s2046 = sor.u32 256, 40
    %2047 = vbcast.lane.b32.xlu0 %v2025, %s2046
    %v2048 = vpop.permute.xlu0 %2047
    %s2050 = sor.u32 256, 48
    %2051 = vbcast.lane.b32.xlu0 %v2025, %s2050
    %v2052 = vpop.permute.xlu0 %2051
    %s2054 = sor.u32 256, 56
    %2055 = vbcast.lane.b32.xlu0 %v2025, %s2054
    %v2056 = vpop.permute.xlu0 %2055
    %s2058 = sor.u32 256, 64
    %2059 = vbcast.lane.b32.xlu0 %v2025, %s2058
    %v2060 = vpop.permute.xlu0 %2059
    %s2062 = sor.u32 256, 72
    %2063 = vbcast.lane.b32.xlu0 %v2025, %s2062
    %v2064 = vpop.permute.xlu0 %2063
    %s2066 = sor.u32 256, 80
    %2067 = vbcast.lane.b32.xlu0 %v2025, %s2066
    %v2068 = vpop.permute.xlu0 %2067
    %s2070 = sor.u32 256, 88
    %2071 = vbcast.lane.b32.xlu0 %v2025, %s2070
    %v2072 = vpop.permute.xlu0 %2071
    %s2074 = sor.u32 256, 96
    %2075 = vbcast.lane.b32.xlu0 %v2025, %s2074
    %v2076 = vpop.permute.xlu0 %2075
    %s2078 = sor.u32 256, 104
    %2079 = vbcast.lane.b32.xlu0 %v2025, %s2078
    %v2080 = vpop.permute.xlu0 %2079
    %s2082 = sor.u32 256, 112
    %2083 = vbcast.lane.b32.xlu0 %v2025, %s2082
    %v2084 = vpop.permute.xlu0 %2083
    %s2086 = sor.u32 256, 120
    %2087 = vbcast.lane.b32.xlu0 %v2025, %s2086
    %v2088 = vpop.permute.xlu0 %2087
    %v2089 = vlaneseq
    %v2090 = vshrl.u32 %v2089, 7
    %v2091 = vsub.s32 6, %v2090
    %v2092 = vrot.slane %v78, %v2091
    %2094 = vbcast.lane.b32.xlu0 %v2092, 256
    %v2095 = vpop.permute.xlu0 %2094
    %s2097 = sor.u32 256, 8
    %2098 = vbcast.lane.b32.xlu0 %v2092, %s2097
    %v2099 = vpop.permute.xlu0 %2098
    %s2101 = sor.u32 256, 16
    %2102 = vbcast.lane.b32.xlu0 %v2092, %s2101
    %v2103 = vpop.permute.xlu0 %2102
    %s2105 = sor.u32 256, 24
    %2106 = vbcast.lane.b32.xlu0 %v2092, %s2105
    %v2107 = vpop.permute.xlu0 %2106
    %s2109 = sor.u32 256, 32
    %2110 = vbcast.lane.b32.xlu0 %v2092, %s2109
    %v2111 = vpop.permute.xlu0 %2110
    %s2113 = sor.u32 256, 40
    %2114 = vbcast.lane.b32.xlu0 %v2092, %s2113
    %v2115 = vpop.permute.xlu0 %2114
    %s2117 = sor.u32 256, 48
    %2118 = vbcast.lane.b32.xlu0 %v2092, %s2117
    %v2119 = vpop.permute.xlu0 %2118
    %s2121 = sor.u32 256, 56
    %2122 = vbcast.lane.b32.xlu0 %v2092, %s2121
    %v2123 = vpop.permute.xlu0 %2122
    %s2125 = sor.u32 256, 64
    %2126 = vbcast.lane.b32.xlu0 %v2092, %s2125
    %v2127 = vpop.permute.xlu0 %2126
    %s2129 = sor.u32 256, 72
    %2130 = vbcast.lane.b32.xlu0 %v2092, %s2129
    %v2131 = vpop.permute.xlu0 %2130
    %s2133 = sor.u32 256, 80
    %2134 = vbcast.lane.b32.xlu0 %v2092, %s2133
    %v2135 = vpop.permute.xlu0 %2134
    %s2137 = sor.u32 256, 88
    %2138 = vbcast.lane.b32.xlu0 %v2092, %s2137
    %v2139 = vpop.permute.xlu0 %2138
    %s2141 = sor.u32 256, 96
    %2142 = vbcast.lane.b32.xlu0 %v2092, %s2141
    %v2143 = vpop.permute.xlu0 %2142
    %s2145 = sor.u32 256, 104
    %2146 = vbcast.lane.b32.xlu0 %v2092, %s2145
    %v2147 = vpop.permute.xlu0 %2146
    %s2149 = sor.u32 256, 112
    %2150 = vbcast.lane.b32.xlu0 %v2092, %s2149
    %v2151 = vpop.permute.xlu0 %2150
    %s2153 = sor.u32 256, 120
    %2154 = vbcast.lane.b32.xlu0 %v2092, %s2153
    %v2155 = vpop.permute.xlu0 %2154
    %v2156 = vlaneseq
    %v2157 = vshrl.u32 %v2156, 7
    %v2158 = vsub.s32 7, %v2157
    %v2159 = vrot.slane %v78, %v2158
    %2161 = vbcast.lane.b32.xlu0 %v2159, 256
    %v2162 = vpop.permute.xlu0 %2161
    %s2164 = sor.u32 256, 8
    %2165 = vbcast.lane.b32.xlu0 %v2159, %s2164
    %v2166 = vpop.permute.xlu0 %2165
    %s2168 = sor.u32 256, 16
    %2169 = vbcast.lane.b32.xlu0 %v2159, %s2168
    %v2170 = vpop.permute.xlu0 %2169
    %s2172 = sor.u32 256, 24
    %2173 = vbcast.lane.b32.xlu0 %v2159, %s2172
    %v2174 = vpop.permute.xlu0 %2173
    %s2176 = sor.u32 256, 32
    %2177 = vbcast.lane.b32.xlu0 %v2159, %s2176
    %v2178 = vpop.permute.xlu0 %2177
    %s2180 = sor.u32 256, 40
    %2181 = vbcast.lane.b32.xlu0 %v2159, %s2180
    %v2182 = vpop.permute.xlu0 %2181
    %s2184 = sor.u32 256, 48
    %2185 = vbcast.lane.b32.xlu0 %v2159, %s2184
    %v2186 = vpop.permute.xlu0 %2185
    %s2188 = sor.u32 256, 56
    %2189 = vbcast.lane.b32.xlu0 %v2159, %s2188
    %v2190 = vpop.permute.xlu0 %2189
    %s2192 = sor.u32 256, 64
    %2193 = vbcast.lane.b32.xlu0 %v2159, %s2192
    %v2194 = vpop.permute.xlu0 %2193
    %s2196 = sor.u32 256, 72
    %2197 = vbcast.lane.b32.xlu0 %v2159, %s2196
    %v2198 = vpop.permute.xlu0 %2197
    %s2200 = sor.u32 256, 80
    %2201 = vbcast.lane.b32.xlu0 %v2159, %s2200
    %v2202 = vpop.permute.xlu0 %2201
    %s2204 = sor.u32 256, 88
    %2205 = vbcast.lane.b32.xlu0 %v2159, %s2204
    %v2206 = vpop.permute.xlu0 %2205
    %s2208 = sor.u32 256, 96
    %2209 = vbcast.lane.b32.xlu0 %v2159, %s2208
    %v2210 = vpop.permute.xlu0 %2209
    %s2212 = sor.u32 256, 104
    %2213 = vbcast.lane.b32.xlu0 %v2159, %s2212
    %v2214 = vpop.permute.xlu0 %2213
    %s2216 = sor.u32 256, 112
    %2217 = vbcast.lane.b32.xlu0 %v2159, %s2216
    %v2218 = vpop.permute.xlu0 %2217
    %s2220 = sor.u32 256, 120
    %2221 = vbcast.lane.b32.xlu0 %v2159, %s2220
    %v2222 = vpop.permute.xlu0 %2221
    %vm2223 = vcmask 7168
    %v2224 = vsel %vm2223, %v85, %v1157
    %v2225 = vsel %vm2223, %v89, %v1161
    %v2226 = vsel %vm2223, %v93, %v1165
    %v2227 = vsel %vm2223, %v97, %v1169
    %v2228 = vsel %vm2223, %v101, %v1173
    %v2229 = vsel %vm2223, %v105, %v1177
    %v2230 = vsel %vm2223, %v109, %v1181
    %v2231 = vsel %vm2223, %v113, %v1185
    %v2232 = vsel %vm2223, %v117, %v1189
    %v2233 = vsel %vm2223, %v121, %v1193
    %v2234 = vsel %vm2223, %v125, %v1197
    %v2235 = vsel %vm2223, %v129, %v1201
    %v2236 = vsel %vm2223, %v133, %v1205
    %v2237 = vsel %vm2223, %v137, %v1209
    %v2238 = vsel %vm2223, %v141, %v1213
    %v2239 = vsel %vm2223, %v145, %v1217
    %v2240 = vsel %vm2223, %v152, %v1224
    %v2241 = vsel %vm2223, %v156, %v1228
    %v2242 = vsel %vm2223, %v160, %v1232
    %v2243 = vsel %vm2223, %v164, %v1236
    %v2244 = vsel %vm2223, %v168, %v1240
    %v2245 = vsel %vm2223, %v172, %v1244
    %v2246 = vsel %vm2223, %v176, %v1248
    %v2247 = vsel %vm2223, %v180, %v1252
    %v2248 = vsel %vm2223, %v184, %v1256
    %v2249 = vsel %vm2223, %v188, %v1260
    %v2250 = vsel %vm2223, %v192, %v1264
    %v2251 = vsel %vm2223, %v196, %v1268
    %v2252 = vsel %vm2223, %v200, %v1272
    %v2253 = vsel %vm2223, %v204, %v1276
    %v2254 = vsel %vm2223, %v208, %v1280
    %v2255 = vsel %vm2223, %v212, %v1284
    %v2256 = vsel %vm2223, %v219, %v1291
    %v2257 = vsel %vm2223, %v223, %v1295
    %v2258 = vsel %vm2223, %v227, %v1299
    %v2259 = vsel %vm2223, %v231, %v1303
    %v2260 = vsel %vm2223, %v235, %v1307
    %v2261 = vsel %vm2223, %v239, %v1311
    %v2262 = vsel %vm2223, %v243, %v1315
    %v2263 = vsel %vm2223, %v247, %v1319
    %v2264 = vsel %vm2223, %v251, %v1323
    %v2265 = vsel %vm2223, %v255, %v1327
    %v2266 = vsel %vm2223, %v259, %v1331
    %v2267 = vsel %vm2223, %v263, %v1335
    %v2268 = vsel %vm2223, %v267, %v1339
    %v2269 = vsel %vm2223, %v271, %v1343
    %v2270 = vsel %vm2223, %v275, %v1347
    %v2271 = vsel %vm2223, %v279, %v1351
    %v2272 = vsel %vm2223, %v286, %v1358
    %v2273 = vsel %vm2223, %v290, %v1362
    %v2274 = vsel %vm2223, %v294, %v1366
    %v2275 = vsel %vm2223, %v298, %v1370
    %v2276 = vsel %vm2223, %v302, %v1374
    %v2277 = vsel %vm2223, %v306, %v1378
    %v2278 = vsel %vm2223, %v310, %v1382
    %v2279 = vsel %vm2223, %v314, %v1386
    %v2280 = vsel %vm2223, %v318, %v1390
    %v2281 = vsel %vm2223, %v322, %v1394
    %v2282 = vsel %vm2223, %v326, %v1398
    %v2283 = vsel %vm2223, %v330, %v1402
    %v2284 = vsel %vm2223, %v334, %v1406
    %v2285 = vsel %vm2223, %v338, %v1410
    %v2286 = vsel %vm2223, %v342, %v1414
    %v2287 = vsel %vm2223, %v346, %v1418
    %v2288 = vsel %vm2223, %v353, %v1425
    %v2289 = vsel %vm2223, %v357, %v1429
    %v2290 = vsel %vm2223, %v361, %v1433
    %v2291 = vsel %vm2223, %v365, %v1437
    %v2292 = vsel %vm2223, %v369, %v1441
    %v2293 = vsel %vm2223, %v373, %v1445
    %v2294 = vsel %vm2223, %v377, %v1449
    %v2295 = vsel %vm2223, %v381, %v1453
    %v2296 = vsel %vm2223, %v385, %v1457
    %v2297 = vsel %vm2223, %v389, %v1461
    %v2298 = vsel %vm2223, %v393, %v1465
    %v2299 = vsel %vm2223, %v397, %v1469
    %v2300 = vsel %vm2223, %v401, %v1473
    %v2301 = vsel %vm2223, %v405, %v1477
    %v2302 = vsel %vm2223, %v409, %v1481
    %v2303 = vsel %vm2223, %v413, %v1485
    %v2304 = vsel %vm2223, %v420, %v1492
    %v2305 = vsel %vm2223, %v424, %v1496
    %v2306 = vsel %vm2223, %v428, %v1500
    %v2307 = vsel %vm2223, %v432, %v1504
    %v2308 = vsel %vm2223, %v436, %v1508
    %v2309 = vsel %vm2223, %v440, %v1512
    %v2310 = vsel %vm2223, %v444, %v1516
    %v2311 = vsel %vm2223, %v448, %v1520
    %v2312 = vsel %vm2223, %v452, %v1524
    %v2313 = vsel %vm2223, %v456, %v1528
    %v2314 = vsel %vm2223, %v460, %v1532
    %v2315 = vsel %vm2223, %v464, %v1536
    %v2316 = vsel %vm2223, %v468, %v1540
    %v2317 = vsel %vm2223, %v472, %v1544
    %v2318 = vsel %vm2223, %v476, %v1548
    %v2319 = vsel %vm2223, %v480, %v1552
    %v2320 = vsel %vm2223, %v487, %v1559
    %v2321 = vsel %vm2223, %v491, %v1563
    %v2322 = vsel %vm2223, %v495, %v1567
    %v2323 = vsel %vm2223, %v499, %v1571
    %v2324 = vsel %vm2223, %v503, %v1575
    %v2325 = vsel %vm2223, %v507, %v1579
    %v2326 = vsel %vm2223, %v511, %v1583
    %v2327 = vsel %vm2223, %v515, %v1587
    %v2328 = vsel %vm2223, %v519, %v1591
    %v2329 = vsel %vm2223, %v523, %v1595
    %v2330 = vsel %vm2223, %v527, %v1599
    %v2331 = vsel %vm2223, %v531, %v1603
    %v2332 = vsel %vm2223, %v535, %v1607
    %v2333 = vsel %vm2223, %v539, %v1611
    %v2334 = vsel %vm2223, %v543, %v1615
    %v2335 = vsel %vm2223, %v547, %v1619
    %v2336 = vsel %vm2223, %v554, %v1626
    %v2337 = vsel %vm2223, %v558, %v1630
    %v2338 = vsel %vm2223, %v562, %v1634
    %v2339 = vsel %vm2223, %v566, %v1638
    %v2340 = vsel %vm2223, %v570, %v1642
    %v2341 = vsel %vm2223, %v574, %v1646
    %v2342 = vsel %vm2223, %v578, %v1650
    %v2343 = vsel %vm2223, %v582, %v1654
    %v2344 = vsel %vm2223, %v586, %v1658
    %v2345 = vsel %vm2223, %v590, %v1662
    %v2346 = vsel %vm2223, %v594, %v1666
    %v2347 = vsel %vm2223, %v598, %v1670
    %v2348 = vsel %vm2223, %v602, %v1674
    %v2349 = vsel %vm2223, %v606, %v1678
    %v2350 = vsel %vm2223, %v610, %v1682
    %v2351 = vsel %vm2223, %v614, %v1686
    %v2352 = vsel %vm2223, %v621, %v1693
    %v2353 = vsel %vm2223, %v625, %v1697
    %v2354 = vsel %vm2223, %v629, %v1701
    %v2355 = vsel %vm2223, %v633, %v1705
    %v2356 = vsel %vm2223, %v637, %v1709
    %v2357 = vsel %vm2223, %v641, %v1713
    %v2358 = vsel %vm2223, %v645, %v1717
    %v2359 = vsel %vm2223, %v649, %v1721
    %v2360 = vsel %vm2223, %v653, %v1725
    %v2361 = vsel %vm2223, %v657, %v1729
    %v2362 = vsel %vm2223, %v661, %v1733
    %v2363 = vsel %vm2223, %v665, %v1737
    %v2364 = vsel %vm2223, %v669, %v1741
    %v2365 = vsel %vm2223, %v673, %v1745
    %v2366 = vsel %vm2223, %v677, %v1749
    %v2367 = vsel %vm2223, %v681, %v1753
    %v2368 = vsel %vm2223, %v688, %v1760
    %v2369 = vsel %vm2223, %v692, %v1764
    %v2370 = vsel %vm2223, %v696, %v1768
    %v2371 = vsel %vm2223, %v700, %v1772
    %v2372 = vsel %vm2223, %v704, %v1776
    %v2373 = vsel %vm2223, %v708, %v1780
    %v2374 = vsel %vm2223, %v712, %v1784
    %v2375 = vsel %vm2223, %v716, %v1788
    %v2376 = vsel %vm2223, %v720, %v1792
    %v2377 = vsel %vm2223, %v724, %v1796
    %v2378 = vsel %vm2223, %v728, %v1800
    %v2379 = vsel %vm2223, %v732, %v1804
    %v2380 = vsel %vm2223, %v736, %v1808
    %v2381 = vsel %vm2223, %v740, %v1812
    %v2382 = vsel %vm2223, %v744, %v1816
    %v2383 = vsel %vm2223, %v748, %v1820
    %v2384 = vsel %vm2223, %v755, %v1827
    %v2385 = vsel %vm2223, %v759, %v1831
    %v2386 = vsel %vm2223, %v763, %v1835
    %v2387 = vsel %vm2223, %v767, %v1839
    %v2388 = vsel %vm2223, %v771, %v1843
    %v2389 = vsel %vm2223, %v775, %v1847
    %v2390 = vsel %vm2223, %v779, %v1851
    %v2391 = vsel %vm2223, %v783, %v1855
    %v2392 = vsel %vm2223, %v787, %v1859
    %v2393 = vsel %vm2223, %v791, %v1863
    %v2394 = vsel %vm2223, %v795, %v1867
    %v2395 = vsel %vm2223, %v799, %v1871
    %v2396 = vsel %vm2223, %v803, %v1875
    %v2397 = vsel %vm2223, %v807, %v1879
    %v2398 = vsel %vm2223, %v811, %v1883
    %v2399 = vsel %vm2223, %v815, %v1887
    %v2400 = vsel %vm2223, %v822, %v1894
    %v2401 = vsel %vm2223, %v826, %v1898
    %v2402 = vsel %vm2223, %v830, %v1902
    %v2403 = vsel %vm2223, %v834, %v1906
    %v2404 = vsel %vm2223, %v838, %v1910
    %v2405 = vsel %vm2223, %v842, %v1914
    %v2406 = vsel %vm2223, %v846, %v1918
    %v2407 = vsel %vm2223, %v850, %v1922
    %v2408 = vsel %vm2223, %v854, %v1926
    %v2409 = vsel %vm2223, %v858, %v1930
    %v2410 = vsel %vm2223, %v862, %v1934
    %v2411 = vsel %vm2223, %v866, %v1938
    %v2412 = vsel %vm2223, %v870, %v1942
    %v2413 = vsel %vm2223, %v874, %v1946
    %v2414 = vsel %vm2223, %v878, %v1950
    %v2415 = vsel %vm2223, %v882, %v1954
    %v2416 = vsel %vm2223, %v889, %v1961
    %v2417 = vsel %vm2223, %v893, %v1965
    %v2418 = vsel %vm2223, %v897, %v1969
    %v2419 = vsel %vm2223, %v901, %v1973
    %v2420 = vsel %vm2223, %v905, %v1977
    %v2421 = vsel %vm2223, %v909, %v1981
    %v2422 = vsel %vm2223, %v913, %v1985
    %v2423 = vsel %vm2223, %v917, %v1989
    %v2424 = vsel %vm2223, %v921, %v1993
    %v2425 = vsel %vm2223, %v925, %v1997
    %v2426 = vsel %vm2223, %v929, %v2001
    %v2427 = vsel %vm2223, %v933, %v2005
    %v2428 = vsel %vm2223, %v937, %v2009
    %v2429 = vsel %vm2223, %v941, %v2013
    %v2430 = vsel %vm2223, %v945, %v2017
    %v2431 = vsel %vm2223, %v949, %v2021
    %v2432 = vsel %vm2223, %v956, %v2028
    %v2433 = vsel %vm2223, %v960, %v2032
    %v2434 = vsel %vm2223, %v964, %v2036
    %v2435 = vsel %vm2223, %v968, %v2040
    %v2436 = vsel %vm2223, %v972, %v2044
    %v2437 = vsel %vm2223, %v976, %v2048
    %v2438 = vsel %vm2223, %v980, %v2052
    %v2439 = vsel %vm2223, %v984, %v2056
    %v2440 = vsel %vm2223, %v988, %v2060
    %v2441 = vsel %vm2223, %v992, %v2064
    %v2442 = vsel %vm2223, %v996, %v2068
    %v2443 = vsel %vm2223, %v1000, %v2072
    %v2444 = vsel %vm2223, %v1004, %v2076
    %v2445 = vsel %vm2223, %v1008, %v2080
    %v2446 = vsel %vm2223, %v1012, %v2084
    %v2447 = vsel %vm2223, %v1016, %v2088
    %v2448 = vsel %vm2223, %v1023, %v2095
    %v2449 = vsel %vm2223, %v1027, %v2099
    %v2450 = vsel %vm2223, %v1031, %v2103
    %v2451 = vsel %vm2223, %v1035, %v2107
    %v2452 = vsel %vm2223, %v1039, %v2111
    %v2453 = vsel %vm2223, %v1043, %v2115
    %v2454 = vsel %vm2223, %v1047, %v2119
    %v2455 = vsel %vm2223, %v1051, %v2123
    %v2456 = vsel %vm2223, %v1055, %v2127
    %v2457 = vsel %vm2223, %v1059, %v2131
    %v2458 = vsel %vm2223, %v1063, %v2135
    %v2459 = vsel %vm2223, %v1067, %v2139
    %v2460 = vsel %vm2223, %v1071, %v2143
    %v2461 = vsel %vm2223, %v1075, %v2147
    %v2462 = vsel %vm2223, %v1079, %v2151
    %v2463 = vsel %vm2223, %v1083, %v2155
    %v2464 = vsel %vm2223, %v1090, %v2162
    %v2465 = vsel %vm2223, %v1094, %v2166
    %v2466 = vsel %vm2223, %v1098, %v2170
    %v2467 = vsel %vm2223, %v1102, %v2174
    %v2468 = vsel %vm2223, %v1106, %v2178
    %v2469 = vsel %vm2223, %v1110, %v2182
    %v2470 = vsel %vm2223, %v1114, %v2186
    %v2471 = vsel %vm2223, %v1118, %v2190
    %v2472 = vsel %vm2223, %v1122, %v2194
    %v2473 = vsel %vm2223, %v1126, %v2198
    %v2474 = vsel %vm2223, %v1130, %v2202
    %v2475 = vsel %vm2223, %v1134, %v2206
    %v2476 = vsel %vm2223, %v1138, %v2210
    %v2477 = vsel %vm2223, %v1142, %v2214
    %v2478 = vsel %vm2223, %v1146, %v2218
    %v2479 = vsel %vm2223, %v1150, %v2222
    %v2480 = vcombine.low %v2224, %v2256
    %v2481 = vcombine.high %v2224, %v2256
    %v2483 = vunpack.c.l.s4 1983009808
    %v2484 = vunpack.c.0.s8 %v2483
    %v2485 = vlaneseq
    %v2486 = vshrl.u32 %v2485, 7
    %v2487 = vsub.s32 %v2484, %v2486
    %v2488 = vrot.slane %v2480, %v2487
    %v2490 = vunpack.c.l.s4 1983009808
    %v2491 = vunpack.c.0.s8 %v2490
    %v2492 = vlaneseq
    %v2493 = vshrl.u32 %v2492, 7
    %v2494 = vsub.s32 %v2491, %v2493
    %v2495 = vrot.slane %v2481, %v2494
    %v2496 = vcombine.low %v2240, %v2272
    %v2497 = vcombine.high %v2240, %v2272
    %v2499 = vunpack.c.l.s4 1983009808
    %v2500 = vunpack.c.0.s8 %v2499
    %v2501 = vlaneseq
    %v2502 = vshrl.u32 %v2501, 7
    %v2503 = vsub.s32 %v2500, %v2502
    %v2504 = vrot.slane %v2496, %v2503
    %v2506 = vunpack.c.l.s4 1983009808
    %v2507 = vunpack.c.0.s8 %v2506
    %v2508 = vlaneseq
    %v2509 = vshrl.u32 %v2508, 7
    %v2510 = vsub.s32 %v2507, %v2509
    %v2511 = vrot.slane %v2497, %v2510
    %v2512 = vcombine.low %v2288, %v2320
    %v2513 = vcombine.high %v2288, %v2320
    %v2515 = vunpack.c.l.s4 1983009808
    %v2516 = vunpack.c.0.s8 %v2515
    %v2517 = vlaneseq
    %v2518 = vshrl.u32 %v2517, 7
    %v2519 = vsub.s32 %v2516, %v2518
    %v2520 = vrot.slane %v2512, %v2519
    %v2522 = vunpack.c.l.s4 1983009808
    %v2523 = vunpack.c.0.s8 %v2522
    %v2524 = vlaneseq
    %v2525 = vshrl.u32 %v2524, 7
    %v2526 = vsub.s32 %v2523, %v2525
    %v2527 = vrot.slane %v2513, %v2526
    %v2528 = vcombine.low %v2304, %v2336
    %v2529 = vcombine.high %v2304, %v2336
    %v2531 = vunpack.c.l.s4 1983009808
    %v2532 = vunpack.c.0.s8 %v2531
    %v2533 = vlaneseq
    %v2534 = vshrl.u32 %v2533, 7
    %v2535 = vsub.s32 %v2532, %v2534
    %v2536 = vrot.slane %v2528, %v2535
    %v2538 = vunpack.c.l.s4 1983009808
    %v2539 = vunpack.c.0.s8 %v2538
    %v2540 = vlaneseq
    %v2541 = vshrl.u32 %v2540, 7
    %v2542 = vsub.s32 %v2539, %v2541
    %v2543 = vrot.slane %v2529, %v2542
    %v2544 = vcombine.low %v2488, %v2504
    %v2545 = vcombine.high %v2488, %v2504
    %v2547 = vunpack.c.l.s4 1934713408
    %v2548 = vunpack.c.0.s8 %v2547
    %v2549 = vlaneseq
    %v2550 = vshrl.u32 %v2549, 7
    %v2551 = vsub.s32 %v2548, %v2550
    %v2552 = vrot.slane %v2544, %v2551
    %v2554 = vunpack.c.l.s4 1934713408
    %v2555 = vunpack.c.0.s8 %v2554
    %v2556 = vlaneseq
    %v2557 = vshrl.u32 %v2556, 7
    %v2558 = vsub.s32 %v2555, %v2557
    %v2559 = vrot.slane %v2545, %v2558
    %v2560 = vcombine.low %v2495, %v2511
    %v2561 = vcombine.high %v2495, %v2511
    %v2563 = vunpack.c.l.s4 1934713408
    %v2564 = vunpack.c.0.s8 %v2563
    %v2565 = vlaneseq
    %v2566 = vshrl.u32 %v2565, 7
    %v2567 = vsub.s32 %v2564, %v2566
    %v2568 = vrot.slane %v2560, %v2567
    %v2570 = vunpack.c.l.s4 1934713408
    %v2571 = vunpack.c.0.s8 %v2570
    %v2572 = vlaneseq
    %v2573 = vshrl.u32 %v2572, 7
    %v2574 = vsub.s32 %v2571, %v2573
    %v2575 = vrot.slane %v2561, %v2574
    %v2576 = vcombine.low %v2520, %v2536
    %v2577 = vcombine.high %v2520, %v2536
    %v2579 = vunpack.c.l.s4 1934713408
    %v2580 = vunpack.c.0.s8 %v2579
    %v2581 = vlaneseq
    %v2582 = vshrl.u32 %v2581, 7
    %v2583 = vsub.s32 %v2580, %v2582
    %v2584 = vrot.slane %v2576, %v2583
    %v2586 = vunpack.c.l.s4 1934713408
    %v2587 = vunpack.c.0.s8 %v2586
    %v2588 = vlaneseq
    %v2589 = vshrl.u32 %v2588, 7
    %v2590 = vsub.s32 %v2587, %v2589
    %v2591 = vrot.slane %v2577, %v2590
    %v2592 = vcombine.low %v2527, %v2543
    %v2593 = vcombine.high %v2527, %v2543
    %v2595 = vunpack.c.l.s4 1934713408
    %v2596 = vunpack.c.0.s8 %v2595
    %v2597 = vlaneseq
    %v2598 = vshrl.u32 %v2597, 7
    %v2599 = vsub.s32 %v2596, %v2598
    %v2600 = vrot.slane %v2592, %v2599
    %v2602 = vunpack.c.l.s4 1934713408
    %v2603 = vunpack.c.0.s8 %v2602
    %v2604 = vlaneseq
    %v2605 = vshrl.u32 %v2604, 7
    %v2606 = vsub.s32 %v2603, %v2605
    %v2607 = vrot.slane %v2593, %v2606
    %v2608 = vcombine.low %v2552, %v2584
    %v2609 = vcombine.high %v2552, %v2584
    %v2610 = vcombine.low %v2559, %v2591
    %v2611 = vcombine.high %v2559, %v2591
    %v2612 = vcombine.low %v2568, %v2600
    %v2613 = vcombine.high %v2568, %v2600
    %v2614 = vcombine.low %v2575, %v2607
    %v2615 = vcombine.high %v2575, %v2607
    %v2616 = vcombine.low %v2352, %v2384
    %v2617 = vcombine.high %v2352, %v2384
    %v2619 = vunpack.c.l.s4 1983009808
    %v2620 = vunpack.c.0.s8 %v2619
    %v2621 = vlaneseq
    %v2622 = vshrl.u32 %v2621, 7
    %v2623 = vsub.s32 %v2620, %v2622
    %v2624 = vrot.slane %v2616, %v2623
    %v2626 = vunpack.c.l.s4 1983009808
    %v2627 = vunpack.c.0.s8 %v2626
    %v2628 = vlaneseq
    %v2629 = vshrl.u32 %v2628, 7
    %v2630 = vsub.s32 %v2627, %v2629
    %v2631 = vrot.slane %v2617, %v2630
    %v2632 = vcombine.low %v2368, %v2400
    %v2633 = vcombine.high %v2368, %v2400
    %v2635 = vunpack.c.l.s4 1983009808
    %v2636 = vunpack.c.0.s8 %v2635
    %v2637 = vlaneseq
    %v2638 = vshrl.u32 %v2637, 7
    %v2639 = vsub.s32 %v2636, %v2638
    %v2640 = vrot.slane %v2632, %v2639
    %v2642 = vunpack.c.l.s4 1983009808
    %v2643 = vunpack.c.0.s8 %v2642
    %v2644 = vlaneseq
    %v2645 = vshrl.u32 %v2644, 7
    %v2646 = vsub.s32 %v2643, %v2645
    %v2647 = vrot.slane %v2633, %v2646
    %v2648 = vcombine.low %v2416, %v2448
    %v2649 = vcombine.high %v2416, %v2448
    %v2651 = vunpack.c.l.s4 1983009808
    %v2652 = vunpack.c.0.s8 %v2651
    %v2653 = vlaneseq
    %v2654 = vshrl.u32 %v2653, 7
    %v2655 = vsub.s32 %v2652, %v2654
    %v2656 = vrot.slane %v2648, %v2655
    %v2658 = vunpack.c.l.s4 1983009808
    %v2659 = vunpack.c.0.s8 %v2658
    %v2660 = vlaneseq
    %v2661 = vshrl.u32 %v2660, 7
    %v2662 = vsub.s32 %v2659, %v2661
    %v2663 = vrot.slane %v2649, %v2662
    %v2664 = vcombine.low %v2432, %v2464
    %v2665 = vcombine.high %v2432, %v2464
    %v2667 = vunpack.c.l.s4 1983009808
    %v2668 = vunpack.c.0.s8 %v2667
    %v2669 = vlaneseq
    %v2670 = vshrl.u32 %v2669, 7
    %v2671 = vsub.s32 %v2668, %v2670
    %v2672 = vrot.slane %v2664, %v2671
    %v2674 = vunpack.c.l.s4 1983009808
    %v2675 = vunpack.c.0.s8 %v2674
    %v2676 = vlaneseq
    %v2677 = vshrl.u32 %v2676, 7
    %v2678 = vsub.s32 %v2675, %v2677
    %v2679 = vrot.slane %v2665, %v2678
    %v2680 = vcombine.low %v2624, %v2640
    %v2681 = vcombine.high %v2624, %v2640
    %v2683 = vunpack.c.l.s4 1934713408
    %v2684 = vunpack.c.0.s8 %v2683
    %v2685 = vlaneseq
    %v2686 = vshrl.u32 %v2685, 7
    %v2687 = vsub.s32 %v2684, %v2686
    %v2688 = vrot.slane %v2680, %v2687
    %v2690 = vunpack.c.l.s4 1934713408
    %v2691 = vunpack.c.0.s8 %v2690
    %v2692 = vlaneseq
    %v2693 = vshrl.u32 %v2692, 7
    %v2694 = vsub.s32 %v2691, %v2693
    %v2695 = vrot.slane %v2681, %v2694
    %v2696 = vcombine.low %v2631, %v2647
    %v2697 = vcombine.high %v2631, %v2647
    %v2699 = vunpack.c.l.s4 1934713408
    %v2700 = vunpack.c.0.s8 %v2699
    %v2701 = vlaneseq
    %v2702 = vshrl.u32 %v2701, 7
    %v2703 = vsub.s32 %v2700, %v2702
    %v2704 = vrot.slane %v2696, %v2703
    %v2706 = vunpack.c.l.s4 1934713408
    %v2707 = vunpack.c.0.s8 %v2706
    %v2708 = vlaneseq
    %v2709 = vshrl.u32 %v2708, 7
    %v2710 = vsub.s32 %v2707, %v2709
    %v2711 = vrot.slane %v2697, %v2710
    %v2712 = vcombine.low %v2656, %v2672
    %v2713 = vcombine.high %v2656, %v2672
    %v2715 = vunpack.c.l.s4 1934713408
    %v2716 = vunpack.c.0.s8 %v2715
    %v2717 = vlaneseq
    %v2718 = vshrl.u32 %v2717, 7
    %v2719 = vsub.s32 %v2716, %v2718
    %v2720 = vrot.slane %v2712, %v2719
    %v2722 = vunpack.c.l.s4 1934713408
    %v2723 = vunpack.c.0.s8 %v2722
    %v2724 = vlaneseq
    %v2725 = vshrl.u32 %v2724, 7
    %v2726 = vsub.s32 %v2723, %v2725
    %v2727 = vrot.slane %v2713, %v2726
    %v2728 = vcombine.low %v2663, %v2679
    %v2729 = vcombine.high %v2663, %v2679
    %v2731 = vunpack.c.l.s4 1934713408
    %v2732 = vunpack.c.0.s8 %v2731
    %v2733 = vlaneseq
    %v2734 = vshrl.u32 %v2733, 7
    %v2735 = vsub.s32 %v2732, %v2734
    %v2736 = vrot.slane %v2728, %v2735
    %v2738 = vunpack.c.l.s4 1934713408
    %v2739 = vunpack.c.0.s8 %v2738
    %v2740 = vlaneseq
    %v2741 = vshrl.u32 %v2740, 7
    %v2742 = vsub.s32 %v2739, %v2741
    %v2743 = vrot.slane %v2729, %v2742
    %v2744 = vcombine.low %v2688, %v2720
    %v2745 = vcombine.high %v2688, %v2720
    %v2746 = vcombine.low %v2695, %v2727
    %v2747 = vcombine.high %v2695, %v2727
    %v2748 = vcombine.low %v2704, %v2736
    %v2749 = vcombine.high %v2704, %v2736
    %v2750 = vcombine.low %v2711, %v2743
    %v2751 = vcombine.high %v2711, %v2743
    %v2752 = vcombine.low %v2225, %v2257
    %v2753 = vcombine.high %v2225, %v2257
    %v2755 = vunpack.c.l.s4 1983009808
    %v2756 = vunpack.c.0.s8 %v2755
    %v2757 = vlaneseq
    %v2758 = vshrl.u32 %v2757, 7
    %v2759 = vsub.s32 %v2756, %v2758
    %v2760 = vrot.slane %v2752, %v2759
    %v2762 = vunpack.c.l.s4 1983009808
    %v2763 = vunpack.c.0.s8 %v2762
    %v2764 = vlaneseq
    %v2765 = vshrl.u32 %v2764, 7
    %v2766 = vsub.s32 %v2763, %v2765
    %v2767 = vrot.slane %v2753, %v2766
    %v2768 = vcombine.low %v2241, %v2273
    %v2769 = vcombine.high %v2241, %v2273
    %v2771 = vunpack.c.l.s4 1983009808
    %v2772 = vunpack.c.0.s8 %v2771
    %v2773 = vlaneseq
    %v2774 = vshrl.u32 %v2773, 7
    %v2775 = vsub.s32 %v2772, %v2774
    %v2776 = vrot.slane %v2768, %v2775
    %v2778 = vunpack.c.l.s4 1983009808
    %v2779 = vunpack.c.0.s8 %v2778
    %v2780 = vlaneseq
    %v2781 = vshrl.u32 %v2780, 7
    %v2782 = vsub.s32 %v2779, %v2781
    %v2783 = vrot.slane %v2769, %v2782
    %v2784 = vcombine.low %v2289, %v2321
    %v2785 = vcombine.high %v2289, %v2321
    %v2787 = vunpack.c.l.s4 1983009808
    %v2788 = vunpack.c.0.s8 %v2787
    %v2789 = vlaneseq
    %v2790 = vshrl.u32 %v2789, 7
    %v2791 = vsub.s32 %v2788, %v2790
    %v2792 = vrot.slane %v2784, %v2791
    %v2794 = vunpack.c.l.s4 1983009808
    %v2795 = vunpack.c.0.s8 %v2794
    %v2796 = vlaneseq
    %v2797 = vshrl.u32 %v2796, 7
    %v2798 = vsub.s32 %v2795, %v2797
    %v2799 = vrot.slane %v2785, %v2798
    %v2800 = vcombine.low %v2305, %v2337
    %v2801 = vcombine.high %v2305, %v2337
    %v2803 = vunpack.c.l.s4 1983009808
    %v2804 = vunpack.c.0.s8 %v2803
    %v2805 = vlaneseq
    %v2806 = vshrl.u32 %v2805, 7
    %v2807 = vsub.s32 %v2804, %v2806
    %v2808 = vrot.slane %v2800, %v2807
    %v2810 = vunpack.c.l.s4 1983009808
    %v2811 = vunpack.c.0.s8 %v2810
    %v2812 = vlaneseq
    %v2813 = vshrl.u32 %v2812, 7
    %v2814 = vsub.s32 %v2811, %v2813
    %v2815 = vrot.slane %v2801, %v2814
    %v2816 = vcombine.low %v2760, %v2776
    %v2817 = vcombine.high %v2760, %v2776
    %v2819 = vunpack.c.l.s4 1934713408
    %v2820 = vunpack.c.0.s8 %v2819
    %v2821 = vlaneseq
    %v2822 = vshrl.u32 %v2821, 7
    %v2823 = vsub.s32 %v2820, %v2822
    %v2824 = vrot.slane %v2816, %v2823
    %v2826 = vunpack.c.l.s4 1934713408
    %v2827 = vunpack.c.0.s8 %v2826
    %v2828 = vlaneseq
    %v2829 = vshrl.u32 %v2828, 7
    %v2830 = vsub.s32 %v2827, %v2829
    %v2831 = vrot.slane %v2817, %v2830
    %v2832 = vcombine.low %v2767, %v2783
    %v2833 = vcombine.high %v2767, %v2783
    %v2835 = vunpack.c.l.s4 1934713408
    %v2836 = vunpack.c.0.s8 %v2835
    %v2837 = vlaneseq
    %v2838 = vshrl.u32 %v2837, 7
    %v2839 = vsub.s32 %v2836, %v2838
    %v2840 = vrot.slane %v2832, %v2839
    %v2842 = vunpack.c.l.s4 1934713408
    %v2843 = vunpack.c.0.s8 %v2842
    %v2844 = vlaneseq
    %v2845 = vshrl.u32 %v2844, 7
    %v2846 = vsub.s32 %v2843, %v2845
    %v2847 = vrot.slane %v2833, %v2846
    %v2848 = vcombine.low %v2792, %v2808
    %v2849 = vcombine.high %v2792, %v2808
    %v2851 = vunpack.c.l.s4 1934713408
    %v2852 = vunpack.c.0.s8 %v2851
    %v2853 = vlaneseq
    %v2854 = vshrl.u32 %v2853, 7
    %v2855 = vsub.s32 %v2852, %v2854
    %v2856 = vrot.slane %v2848, %v2855
    %v2858 = vunpack.c.l.s4 1934713408
    %v2859 = vunpack.c.0.s8 %v2858
    %v2860 = vlaneseq
    %v2861 = vshrl.u32 %v2860, 7
    %v2862 = vsub.s32 %v2859, %v2861
    %v2863 = vrot.slane %v2849, %v2862
    %v2864 = vcombine.low %v2799, %v2815
    %v2865 = vcombine.high %v2799, %v2815
    %v2867 = vunpack.c.l.s4 1934713408
    %v2868 = vunpack.c.0.s8 %v2867
    %v2869 = vlaneseq
    %v2870 = vshrl.u32 %v2869, 7
    %v2871 = vsub.s32 %v2868, %v2870
    %v2872 = vrot.slane %v2864, %v2871
    %v2874 = vunpack.c.l.s4 1934713408
    %v2875 = vunpack.c.0.s8 %v2874
    %v2876 = vlaneseq
    %v2877 = vshrl.u32 %v2876, 7
    %v2878 = vsub.s32 %v2875, %v2877
    %v2879 = vrot.slane %v2865, %v2878
    %v2880 = vcombine.low %v2824, %v2856
    %v2881 = vcombine.high %v2824, %v2856
    %v2882 = vcombine.low %v2831, %v2863
    %v2883 = vcombine.high %v2831, %v2863
    %v2884 = vcombine.low %v2840, %v2872
    %v2885 = vcombine.high %v2840, %v2872
    %v2886 = vcombine.low %v2847, %v2879
    %v2887 = vcombine.high %v2847, %v2879
    %v2888 = vcombine.low %v2353, %v2385
    %v2889 = vcombine.high %v2353, %v2385
    %v2891 = vunpack.c.l.s4 1983009808
    %v2892 = vunpack.c.0.s8 %v2891
    %v2893 = vlaneseq
    %v2894 = vshrl.u32 %v2893, 7
    %v2895 = vsub.s32 %v2892, %v2894
    %v2896 = vrot.slane %v2888, %v2895
    %v2898 = vunpack.c.l.s4 1983009808
    %v2899 = vunpack.c.0.s8 %v2898
    %v2900 = vlaneseq
    %v2901 = vshrl.u32 %v2900, 7
    %v2902 = vsub.s32 %v2899, %v2901
    %v2903 = vrot.slane %v2889, %v2902
    %v2904 = vcombine.low %v2369, %v2401
    %v2905 = vcombine.high %v2369, %v2401
    %v2907 = vunpack.c.l.s4 1983009808
    %v2908 = vunpack.c.0.s8 %v2907
    %v2909 = vlaneseq
    %v2910 = vshrl.u32 %v2909, 7
    %v2911 = vsub.s32 %v2908, %v2910
    %v2912 = vrot.slane %v2904, %v2911
    %v2914 = vunpack.c.l.s4 1983009808
    %v2915 = vunpack.c.0.s8 %v2914
    %v2916 = vlaneseq
    %v2917 = vshrl.u32 %v2916, 7
    %v2918 = vsub.s32 %v2915, %v2917
    %v2919 = vrot.slane %v2905, %v2918
    %v2920 = vcombine.low %v2417, %v2449
    %v2921 = vcombine.high %v2417, %v2449
    %v2923 = vunpack.c.l.s4 1983009808
    %v2924 = vunpack.c.0.s8 %v2923
    %v2925 = vlaneseq
    %v2926 = vshrl.u32 %v2925, 7
    %v2927 = vsub.s32 %v2924, %v2926
    %v2928 = vrot.slane %v2920, %v2927
    %v2930 = vunpack.c.l.s4 1983009808
    %v2931 = vunpack.c.0.s8 %v2930
    %v2932 = vlaneseq
    %v2933 = vshrl.u32 %v2932, 7
    %v2934 = vsub.s32 %v2931, %v2933
    %v2935 = vrot.slane %v2921, %v2934
    %v2936 = vcombine.low %v2433, %v2465
    %v2937 = vcombine.high %v2433, %v2465
    %v2939 = vunpack.c.l.s4 1983009808
    %v2940 = vunpack.c.0.s8 %v2939
    %v2941 = vlaneseq
    %v2942 = vshrl.u32 %v2941, 7
    %v2943 = vsub.s32 %v2940, %v2942
    %v2944 = vrot.slane %v2936, %v2943
    %v2946 = vunpack.c.l.s4 1983009808
    %v2947 = vunpack.c.0.s8 %v2946
    %v2948 = vlaneseq
    %v2949 = vshrl.u32 %v2948, 7
    %v2950 = vsub.s32 %v2947, %v2949
    %v2951 = vrot.slane %v2937, %v2950
    %v2952 = vcombine.low %v2896, %v2912
    %v2953 = vcombine.high %v2896, %v2912
    %v2955 = vunpack.c.l.s4 1934713408
    %v2956 = vunpack.c.0.s8 %v2955
    %v2957 = vlaneseq
    %v2958 = vshrl.u32 %v2957, 7
    %v2959 = vsub.s32 %v2956, %v2958
    %v2960 = vrot.slane %v2952, %v2959
    %v2962 = vunpack.c.l.s4 1934713408
    %v2963 = vunpack.c.0.s8 %v2962
    %v2964 = vlaneseq
    %v2965 = vshrl.u32 %v2964, 7
    %v2966 = vsub.s32 %v2963, %v2965
    %v2967 = vrot.slane %v2953, %v2966
    %v2968 = vcombine.low %v2903, %v2919
    %v2969 = vcombine.high %v2903, %v2919
    %v2971 = vunpack.c.l.s4 1934713408
    %v2972 = vunpack.c.0.s8 %v2971
    %v2973 = vlaneseq
    %v2974 = vshrl.u32 %v2973, 7
    %v2975 = vsub.s32 %v2972, %v2974
    %v2976 = vrot.slane %v2968, %v2975
    %v2978 = vunpack.c.l.s4 1934713408
    %v2979 = vunpack.c.0.s8 %v2978
    %v2980 = vlaneseq
    %v2981 = vshrl.u32 %v2980, 7
    %v2982 = vsub.s32 %v2979, %v2981
    %v2983 = vrot.slane %v2969, %v2982
    %v2984 = vcombine.low %v2928, %v2944
    %v2985 = vcombine.high %v2928, %v2944
    %v2987 = vunpack.c.l.s4 1934713408
    %v2988 = vunpack.c.0.s8 %v2987
    %v2989 = vlaneseq
    %v2990 = vshrl.u32 %v2989, 7
    %v2991 = vsub.s32 %v2988, %v2990
    %v2992 = vrot.slane %v2984, %v2991
    %v2994 = vunpack.c.l.s4 1934713408
    %v2995 = vunpack.c.0.s8 %v2994
    %v2996 = vlaneseq
    %v2997 = vshrl.u32 %v2996, 7
    %v2998 = vsub.s32 %v2995, %v2997
    %v2999 = vrot.slane %v2985, %v2998
    %v3000 = vcombine.low %v2935, %v2951
    %v3001 = vcombine.high %v2935, %v2951
    %v3003 = vunpack.c.l.s4 1934713408
    %v3004 = vunpack.c.0.s8 %v3003
    %v3005 = vlaneseq
    %v3006 = vshrl.u32 %v3005, 7
    %v3007 = vsub.s32 %v3004, %v3006
    %v3008 = vrot.slane %v3000, %v3007
    %v3010 = vunpack.c.l.s4 1934713408
    %v3011 = vunpack.c.0.s8 %v3010
    %v3012 = vlaneseq
    %v3013 = vshrl.u32 %v3012, 7
    %v3014 = vsub.s32 %v3011, %v3013
    %v3015 = vrot.slane %v3001, %v3014
    %v3016 = vcombine.low %v2960, %v2992
    %v3017 = vcombine.high %v2960, %v2992
    %v3018 = vcombine.low %v2967, %v2999
    %v3019 = vcombine.high %v2967, %v2999
    %v3020 = vcombine.low %v2976, %v3008
    %v3021 = vcombine.high %v2976, %v3008
    %v3022 = vcombine.low %v2983, %v3015
    %v3023 = vcombine.high %v2983, %v3015
    %v3024 = vcombine.low %v2226, %v2258
    %v3025 = vcombine.high %v2226, %v2258
    %v3027 = vunpack.c.l.s4 1983009808
    %v3028 = vunpack.c.0.s8 %v3027
    %v3029 = vlaneseq
    %v3030 = vshrl.u32 %v3029, 7
    %v3031 = vsub.s32 %v3028, %v3030
    %v3032 = vrot.slane %v3024, %v3031
    %v3034 = vunpack.c.l.s4 1983009808
    %v3035 = vunpack.c.0.s8 %v3034
    %v3036 = vlaneseq
    %v3037 = vshrl.u32 %v3036, 7
    %v3038 = vsub.s32 %v3035, %v3037
    %v3039 = vrot.slane %v3025, %v3038
    %v3040 = vcombine.low %v2242, %v2274
    %v3041 = vcombine.high %v2242, %v2274
    %v3043 = vunpack.c.l.s4 1983009808
    %v3044 = vunpack.c.0.s8 %v3043
    %v3045 = vlaneseq
    %v3046 = vshrl.u32 %v3045, 7
    %v3047 = vsub.s32 %v3044, %v3046
    %v3048 = vrot.slane %v3040, %v3047
    %v3050 = vunpack.c.l.s4 1983009808
    %v3051 = vunpack.c.0.s8 %v3050
    %v3052 = vlaneseq
    %v3053 = vshrl.u32 %v3052, 7
    %v3054 = vsub.s32 %v3051, %v3053
    %v3055 = vrot.slane %v3041, %v3054
    %v3056 = vcombine.low %v2290, %v2322
    %v3057 = vcombine.high %v2290, %v2322
    %v3059 = vunpack.c.l.s4 1983009808
    %v3060 = vunpack.c.0.s8 %v3059
    %v3061 = vlaneseq
    %v3062 = vshrl.u32 %v3061, 7
    %v3063 = vsub.s32 %v3060, %v3062
    %v3064 = vrot.slane %v3056, %v3063
    %v3066 = vunpack.c.l.s4 1983009808
    %v3067 = vunpack.c.0.s8 %v3066
    %v3068 = vlaneseq
    %v3069 = vshrl.u32 %v3068, 7
    %v3070 = vsub.s32 %v3067, %v3069
    %v3071 = vrot.slane %v3057, %v3070
    %v3072 = vcombine.low %v2306, %v2338
    %v3073 = vcombine.high %v2306, %v2338
    %v3075 = vunpack.c.l.s4 1983009808
    %v3076 = vunpack.c.0.s8 %v3075
    %v3077 = vlaneseq
    %v3078 = vshrl.u32 %v3077, 7
    %v3079 = vsub.s32 %v3076, %v3078
    %v3080 = vrot.slane %v3072, %v3079
    %v3082 = vunpack.c.l.s4 1983009808
    %v3083 = vunpack.c.0.s8 %v3082
    %v3084 = vlaneseq
    %v3085 = vshrl.u32 %v3084, 7
    %v3086 = vsub.s32 %v3083, %v3085
    %v3087 = vrot.slane %v3073, %v3086
    %v3088 = vcombine.low %v3032, %v3048
    %v3089 = vcombine.high %v3032, %v3048
    %v3091 = vunpack.c.l.s4 1934713408
    %v3092 = vunpack.c.0.s8 %v3091
    %v3093 = vlaneseq
    %v3094 = vshrl.u32 %v3093, 7
    %v3095 = vsub.s32 %v3092, %v3094
    %v3096 = vrot.slane %v3088, %v3095
    %v3098 = vunpack.c.l.s4 1934713408
    %v3099 = vunpack.c.0.s8 %v3098
    %v3100 = vlaneseq
    %v3101 = vshrl.u32 %v3100, 7
    %v3102 = vsub.s32 %v3099, %v3101
    %v3103 = vrot.slane %v3089, %v3102
    %v3104 = vcombine.low %v3039, %v3055
    %v3105 = vcombine.high %v3039, %v3055
    %v3107 = vunpack.c.l.s4 1934713408
    %v3108 = vunpack.c.0.s8 %v3107
    %v3109 = vlaneseq
    %v3110 = vshrl.u32 %v3109, 7
    %v3111 = vsub.s32 %v3108, %v3110
    %v3112 = vrot.slane %v3104, %v3111
    %v3114 = vunpack.c.l.s4 1934713408
    %v3115 = vunpack.c.0.s8 %v3114
    %v3116 = vlaneseq
    %v3117 = vshrl.u32 %v3116, 7
    %v3118 = vsub.s32 %v3115, %v3117
    %v3119 = vrot.slane %v3105, %v3118
    %v3120 = vcombine.low %v3064, %v3080
    %v3121 = vcombine.high %v3064, %v3080
    %v3123 = vunpack.c.l.s4 1934713408
    %v3124 = vunpack.c.0.s8 %v3123
    %v3125 = vlaneseq
    %v3126 = vshrl.u32 %v3125, 7
    %v3127 = vsub.s32 %v3124, %v3126
    %v3128 = vrot.slane %v3120, %v3127
    %v3130 = vunpack.c.l.s4 1934713408
    %v3131 = vunpack.c.0.s8 %v3130
    %v3132 = vlaneseq
    %v3133 = vshrl.u32 %v3132, 7
    %v3134 = vsub.s32 %v3131, %v3133
    %v3135 = vrot.slane %v3121, %v3134
    %v3136 = vcombine.low %v3071, %v3087
    %v3137 = vcombine.high %v3071, %v3087
    %v3139 = vunpack.c.l.s4 1934713408
    %v3140 = vunpack.c.0.s8 %v3139
    %v3141 = vlaneseq
    %v3142 = vshrl.u32 %v3141, 7
    %v3143 = vsub.s32 %v3140, %v3142
    %v3144 = vrot.slane %v3136, %v3143
    %v3146 = vunpack.c.l.s4 1934713408
    %v3147 = vunpack.c.0.s8 %v3146
    %v3148 = vlaneseq
    %v3149 = vshrl.u32 %v3148, 7
    %v3150 = vsub.s32 %v3147, %v3149
    %v3151 = vrot.slane %v3137, %v3150
    %v3152 = vcombine.low %v3096, %v3128
    %v3153 = vcombine.high %v3096, %v3128
    %v3154 = vcombine.low %v3103, %v3135
    %v3155 = vcombine.high %v3103, %v3135
    %v3156 = vcombine.low %v3112, %v3144
    %v3157 = vcombine.high %v3112, %v3144
    %v3158 = vcombine.low %v3119, %v3151
    %v3159 = vcombine.high %v3119, %v3151
    %v3160 = vcombine.low %v2354, %v2386
    %v3161 = vcombine.high %v2354, %v2386
    %v3163 = vunpack.c.l.s4 1983009808
    %v3164 = vunpack.c.0.s8 %v3163
    %v3165 = vlaneseq
    %v3166 = vshrl.u32 %v3165, 7
    %v3167 = vsub.s32 %v3164, %v3166
    %v3168 = vrot.slane %v3160, %v3167
    %v3170 = vunpack.c.l.s4 1983009808
    %v3171 = vunpack.c.0.s8 %v3170
    %v3172 = vlaneseq
    %v3173 = vshrl.u32 %v3172, 7
    %v3174 = vsub.s32 %v3171, %v3173
    %v3175 = vrot.slane %v3161, %v3174
    %v3176 = vcombine.low %v2370, %v2402
    %v3177 = vcombine.high %v2370, %v2402
    %v3179 = vunpack.c.l.s4 1983009808
    %v3180 = vunpack.c.0.s8 %v3179
    %v3181 = vlaneseq
    %v3182 = vshrl.u32 %v3181, 7
    %v3183 = vsub.s32 %v3180, %v3182
    %v3184 = vrot.slane %v3176, %v3183
    %v3186 = vunpack.c.l.s4 1983009808
    %v3187 = vunpack.c.0.s8 %v3186
    %v3188 = vlaneseq
    %v3189 = vshrl.u32 %v3188, 7
    %v3190 = vsub.s32 %v3187, %v3189
    %v3191 = vrot.slane %v3177, %v3190
    %v3192 = vcombine.low %v2418, %v2450
    %v3193 = vcombine.high %v2418, %v2450
    %v3195 = vunpack.c.l.s4 1983009808
    %v3196 = vunpack.c.0.s8 %v3195
    %v3197 = vlaneseq
    %v3198 = vshrl.u32 %v3197, 7
    %v3199 = vsub.s32 %v3196, %v3198
    %v3200 = vrot.slane %v3192, %v3199
    %v3202 = vunpack.c.l.s4 1983009808
    %v3203 = vunpack.c.0.s8 %v3202
    %v3204 = vlaneseq
    %v3205 = vshrl.u32 %v3204, 7
    %v3206 = vsub.s32 %v3203, %v3205
    %v3207 = vrot.slane %v3193, %v3206
    %v3208 = vcombine.low %v2434, %v2466
    %v3209 = vcombine.high %v2434, %v2466
    %v3211 = vunpack.c.l.s4 1983009808
    %v3212 = vunpack.c.0.s8 %v3211
    %v3213 = vlaneseq
    %v3214 = vshrl.u32 %v3213, 7
    %v3215 = vsub.s32 %v3212, %v3214
    %v3216 = vrot.slane %v3208, %v3215
    %v3218 = vunpack.c.l.s4 1983009808
    %v3219 = vunpack.c.0.s8 %v3218
    %v3220 = vlaneseq
    %v3221 = vshrl.u32 %v3220, 7
    %v3222 = vsub.s32 %v3219, %v3221
    %v3223 = vrot.slane %v3209, %v3222
    %v3224 = vcombine.low %v3168, %v3184
    %v3225 = vcombine.high %v3168, %v3184
    %v3227 = vunpack.c.l.s4 1934713408
    %v3228 = vunpack.c.0.s8 %v3227
    %v3229 = vlaneseq
    %v3230 = vshrl.u32 %v3229, 7
    %v3231 = vsub.s32 %v3228, %v3230
    %v3232 = vrot.slane %v3224, %v3231
    %v3234 = vunpack.c.l.s4 1934713408
    %v3235 = vunpack.c.0.s8 %v3234
    %v3236 = vlaneseq
    %v3237 = vshrl.u32 %v3236, 7
    %v3238 = vsub.s32 %v3235, %v3237
    %v3239 = vrot.slane %v3225, %v3238
    %v3240 = vcombine.low %v3175, %v3191
    %v3241 = vcombine.high %v3175, %v3191
    %v3243 = vunpack.c.l.s4 1934713408
    %v3244 = vunpack.c.0.s8 %v3243
    %v3245 = vlaneseq
    %v3246 = vshrl.u32 %v3245, 7
    %v3247 = vsub.s32 %v3244, %v3246
    %v3248 = vrot.slane %v3240, %v3247
    %v3250 = vunpack.c.l.s4 1934713408
    %v3251 = vunpack.c.0.s8 %v3250
    %v3252 = vlaneseq
    %v3253 = vshrl.u32 %v3252, 7
    %v3254 = vsub.s32 %v3251, %v3253
    %v3255 = vrot.slane %v3241, %v3254
    %v3256 = vcombine.low %v3200, %v3216
    %v3257 = vcombine.high %v3200, %v3216
    %v3259 = vunpack.c.l.s4 1934713408
    %v3260 = vunpack.c.0.s8 %v3259
    %v3261 = vlaneseq
    %v3262 = vshrl.u32 %v3261, 7
    %v3263 = vsub.s32 %v3260, %v3262
    %v3264 = vrot.slane %v3256, %v3263
    %v3266 = vunpack.c.l.s4 1934713408
    %v3267 = vunpack.c.0.s8 %v3266
    %v3268 = vlaneseq
    %v3269 = vshrl.u32 %v3268, 7
    %v3270 = vsub.s32 %v3267, %v3269
    %v3271 = vrot.slane %v3257, %v3270
    %v3272 = vcombine.low %v3207, %v3223
    %v3273 = vcombine.high %v3207, %v3223
    %v3275 = vunpack.c.l.s4 1934713408
    %v3276 = vunpack.c.0.s8 %v3275
    %v3277 = vlaneseq
    %v3278 = vshrl.u32 %v3277, 7
    %v3279 = vsub.s32 %v3276, %v3278
    %v3280 = vrot.slane %v3272, %v3279
    %v3282 = vunpack.c.l.s4 1934713408
    %v3283 = vunpack.c.0.s8 %v3282
    %v3284 = vlaneseq
    %v3285 = vshrl.u32 %v3284, 7
    %v3286 = vsub.s32 %v3283, %v3285
    %v3287 = vrot.slane %v3273, %v3286
    %v3288 = vcombine.low %v3232, %v3264
    %v3289 = vcombine.high %v3232, %v3264
    %v3290 = vcombine.low %v3239, %v3271
    %v3291 = vcombine.high %v3239, %v3271
    %v3292 = vcombine.low %v3248, %v3280
    %v3293 = vcombine.high %v3248, %v3280
    %v3294 = vcombine.low %v3255, %v3287
    %v3295 = vcombine.high %v3255, %v3287
    %v3296 = vcombine.low %v2227, %v2259
    %v3297 = vcombine.high %v2227, %v2259
    %v3299 = vunpack.c.l.s4 1983009808
    %v3300 = vunpack.c.0.s8 %v3299
    %v3301 = vlaneseq
    %v3302 = vshrl.u32 %v3301, 7
    %v3303 = vsub.s32 %v3300, %v3302
    %v3304 = vrot.slane %v3296, %v3303
    %v3306 = vunpack.c.l.s4 1983009808
    %v3307 = vunpack.c.0.s8 %v3306
    %v3308 = vlaneseq
    %v3309 = vshrl.u32 %v3308, 7
    %v3310 = vsub.s32 %v3307, %v3309
    %v3311 = vrot.slane %v3297, %v3310
    %v3312 = vcombine.low %v2243, %v2275
    %v3313 = vcombine.high %v2243, %v2275
    %v3315 = vunpack.c.l.s4 1983009808
    %v3316 = vunpack.c.0.s8 %v3315
    %v3317 = vlaneseq
    %v3318 = vshrl.u32 %v3317, 7
    %v3319 = vsub.s32 %v3316, %v3318
    %v3320 = vrot.slane %v3312, %v3319
    %v3322 = vunpack.c.l.s4 1983009808
    %v3323 = vunpack.c.0.s8 %v3322
    %v3324 = vlaneseq
    %v3325 = vshrl.u32 %v3324, 7
    %v3326 = vsub.s32 %v3323, %v3325
    %v3327 = vrot.slane %v3313, %v3326
    %v3328 = vcombine.low %v2291, %v2323
    %v3329 = vcombine.high %v2291, %v2323
    %v3331 = vunpack.c.l.s4 1983009808
    %v3332 = vunpack.c.0.s8 %v3331
    %v3333 = vlaneseq
    %v3334 = vshrl.u32 %v3333, 7
    %v3335 = vsub.s32 %v3332, %v3334
    %v3336 = vrot.slane %v3328, %v3335
    %v3338 = vunpack.c.l.s4 1983009808
    %v3339 = vunpack.c.0.s8 %v3338
    %v3340 = vlaneseq
    %v3341 = vshrl.u32 %v3340, 7
    %v3342 = vsub.s32 %v3339, %v3341
    %v3343 = vrot.slane %v3329, %v3342
    %v3344 = vcombine.low %v2307, %v2339
    %v3345 = vcombine.high %v2307, %v2339
    %v3347 = vunpack.c.l.s4 1983009808
    %v3348 = vunpack.c.0.s8 %v3347
    %v3349 = vlaneseq
    %v3350 = vshrl.u32 %v3349, 7
    %v3351 = vsub.s32 %v3348, %v3350
    %v3352 = vrot.slane %v3344, %v3351
    %v3354 = vunpack.c.l.s4 1983009808
    %v3355 = vunpack.c.0.s8 %v3354
    %v3356 = vlaneseq
    %v3357 = vshrl.u32 %v3356, 7
    %v3358 = vsub.s32 %v3355, %v3357
    %v3359 = vrot.slane %v3345, %v3358
    %v3360 = vcombine.low %v3304, %v3320
    %v3361 = vcombine.high %v3304, %v3320
    %v3363 = vunpack.c.l.s4 1934713408
    %v3364 = vunpack.c.0.s8 %v3363
    %v3365 = vlaneseq
    %v3366 = vshrl.u32 %v3365, 7
    %v3367 = vsub.s32 %v3364, %v3366
    %v3368 = vrot.slane %v3360, %v3367
    %v3370 = vunpack.c.l.s4 1934713408
    %v3371 = vunpack.c.0.s8 %v3370
    %v3372 = vlaneseq
    %v3373 = vshrl.u32 %v3372, 7
    %v3374 = vsub.s32 %v3371, %v3373
    %v3375 = vrot.slane %v3361, %v3374
    %v3376 = vcombine.low %v3311, %v3327
    %v3377 = vcombine.high %v3311, %v3327
    %v3379 = vunpack.c.l.s4 1934713408
    %v3380 = vunpack.c.0.s8 %v3379
    %v3381 = vlaneseq
    %v3382 = vshrl.u32 %v3381, 7
    %v3383 = vsub.s32 %v3380, %v3382
    %v3384 = vrot.slane %v3376, %v3383
    %v3386 = vunpack.c.l.s4 1934713408
    %v3387 = vunpack.c.0.s8 %v3386
    %v3388 = vlaneseq
    %v3389 = vshrl.u32 %v3388, 7
    %v3390 = vsub.s32 %v3387, %v3389
    %v3391 = vrot.slane %v3377, %v3390
    %v3392 = vcombine.low %v3336, %v3352
    %v3393 = vcombine.high %v3336, %v3352
    %v3395 = vunpack.c.l.s4 1934713408
    %v3396 = vunpack.c.0.s8 %v3395
    %v3397 = vlaneseq
    %v3398 = vshrl.u32 %v3397, 7
    %v3399 = vsub.s32 %v3396, %v3398
    %v3400 = vrot.slane %v3392, %v3399
    %v3402 = vunpack.c.l.s4 1934713408
    %v3403 = vunpack.c.0.s8 %v3402
    %v3404 = vlaneseq
    %v3405 = vshrl.u32 %v3404, 7
    %v3406 = vsub.s32 %v3403, %v3405
    %v3407 = vrot.slane %v3393, %v3406
    %v3408 = vcombine.low %v3343, %v3359
    %v3409 = vcombine.high %v3343, %v3359
    %v3411 = vunpack.c.l.s4 1934713408
    %v3412 = vunpack.c.0.s8 %v3411
    %v3413 = vlaneseq
    %v3414 = vshrl.u32 %v3413, 7
    %v3415 = vsub.s32 %v3412, %v3414
    %v3416 = vrot.slane %v3408, %v3415
    %v3418 = vunpack.c.l.s4 1934713408
    %v3419 = vunpack.c.0.s8 %v3418
    %v3420 = vlaneseq
    %v3421 = vshrl.u32 %v3420, 7
    %v3422 = vsub.s32 %v3419, %v3421
    %v3423 = vrot.slane %v3409, %v3422
    %v3424 = vcombine.low %v3368, %v3400
    %v3425 = vcombine.high %v3368, %v3400
    %v3426 = vcombine.low %v3375, %v3407
    %v3427 = vcombine.high %v3375, %v3407
    %v3428 = vcombine.low %v3384, %v3416
    %v3429 = vcombine.high %v3384, %v3416
    %v3430 = vcombine.low %v3391, %v3423
    %v3431 = vcombine.high %v3391, %v3423
    %v3432 = vcombine.low %v2355, %v2387
    %v3433 = vcombine.high %v2355, %v2387
    %v3435 = vunpack.c.l.s4 1983009808
    %v3436 = vunpack.c.0.s8 %v3435
    %v3437 = vlaneseq
    %v3438 = vshrl.u32 %v3437, 7
    %v3439 = vsub.s32 %v3436, %v3438
    %v3440 = vrot.slane %v3432, %v3439
    %v3442 = vunpack.c.l.s4 1983009808
    %v3443 = vunpack.c.0.s8 %v3442
    %v3444 = vlaneseq
    %v3445 = vshrl.u32 %v3444, 7
    %v3446 = vsub.s32 %v3443, %v3445
    %v3447 = vrot.slane %v3433, %v3446
    %v3448 = vcombine.low %v2371, %v2403
    %v3449 = vcombine.high %v2371, %v2403
    %v3451 = vunpack.c.l.s4 1983009808
    %v3452 = vunpack.c.0.s8 %v3451
    %v3453 = vlaneseq
    %v3454 = vshrl.u32 %v3453, 7
    %v3455 = vsub.s32 %v3452, %v3454
    %v3456 = vrot.slane %v3448, %v3455
    %v3458 = vunpack.c.l.s4 1983009808
    %v3459 = vunpack.c.0.s8 %v3458
    %v3460 = vlaneseq
    %v3461 = vshrl.u32 %v3460, 7
    %v3462 = vsub.s32 %v3459, %v3461
    %v3463 = vrot.slane %v3449, %v3462
    %v3464 = vcombine.low %v2419, %v2451
    %v3465 = vcombine.high %v2419, %v2451
    %v3467 = vunpack.c.l.s4 1983009808
    %v3468 = vunpack.c.0.s8 %v3467
    %v3469 = vlaneseq
    %v3470 = vshrl.u32 %v3469, 7
    %v3471 = vsub.s32 %v3468, %v3470
    %v3472 = vrot.slane %v3464, %v3471
    %v3474 = vunpack.c.l.s4 1983009808
    %v3475 = vunpack.c.0.s8 %v3474
    %v3476 = vlaneseq
    %v3477 = vshrl.u32 %v3476, 7
    %v3478 = vsub.s32 %v3475, %v3477
    %v3479 = vrot.slane %v3465, %v3478
    %v3480 = vcombine.low %v2435, %v2467
    %v3481 = vcombine.high %v2435, %v2467
    %v3483 = vunpack.c.l.s4 1983009808
    %v3484 = vunpack.c.0.s8 %v3483
    %v3485 = vlaneseq
    %v3486 = vshrl.u32 %v3485, 7
    %v3487 = vsub.s32 %v3484, %v3486
    %v3488 = vrot.slane %v3480, %v3487
    %v3490 = vunpack.c.l.s4 1983009808
    %v3491 = vunpack.c.0.s8 %v3490
    %v3492 = vlaneseq
    %v3493 = vshrl.u32 %v3492, 7
    %v3494 = vsub.s32 %v3491, %v3493
    %v3495 = vrot.slane %v3481, %v3494
    %v3496 = vcombine.low %v3440, %v3456
    %v3497 = vcombine.high %v3440, %v3456
    %v3499 = vunpack.c.l.s4 1934713408
    %v3500 = vunpack.c.0.s8 %v3499
    %v3501 = vlaneseq
    %v3502 = vshrl.u32 %v3501, 7
    %v3503 = vsub.s32 %v3500, %v3502
    %v3504 = vrot.slane %v3496, %v3503
    %v3506 = vunpack.c.l.s4 1934713408
    %v3507 = vunpack.c.0.s8 %v3506
    %v3508 = vlaneseq
    %v3509 = vshrl.u32 %v3508, 7
    %v3510 = vsub.s32 %v3507, %v3509
    %v3511 = vrot.slane %v3497, %v3510
    %v3512 = vcombine.low %v3447, %v3463
    %v3513 = vcombine.high %v3447, %v3463
    %v3515 = vunpack.c.l.s4 1934713408
    %v3516 = vunpack.c.0.s8 %v3515
    %v3517 = vlaneseq
    %v3518 = vshrl.u32 %v3517, 7
    %v3519 = vsub.s32 %v3516, %v3518
    %v3520 = vrot.slane %v3512, %v3519
    %v3522 = vunpack.c.l.s4 1934713408
    %v3523 = vunpack.c.0.s8 %v3522
    %v3524 = vlaneseq
    %v3525 = vshrl.u32 %v3524, 7
    %v3526 = vsub.s32 %v3523, %v3525
    %v3527 = vrot.slane %v3513, %v3526
    %v3528 = vcombine.low %v3472, %v3488
    %v3529 = vcombine.high %v3472, %v3488
    %v3531 = vunpack.c.l.s4 1934713408
    %v3532 = vunpack.c.0.s8 %v3531
    %v3533 = vlaneseq
    %v3534 = vshrl.u32 %v3533, 7
    %v3535 = vsub.s32 %v3532, %v3534
    %v3536 = vrot.slane %v3528, %v3535
    %v3538 = vunpack.c.l.s4 1934713408
    %v3539 = vunpack.c.0.s8 %v3538
    %v3540 = vlaneseq
    %v3541 = vshrl.u32 %v3540, 7
    %v3542 = vsub.s32 %v3539, %v3541
    %v3543 = vrot.slane %v3529, %v3542
    %v3544 = vcombine.low %v3479, %v3495
    %v3545 = vcombine.high %v3479, %v3495
    %v3547 = vunpack.c.l.s4 1934713408
    %v3548 = vunpack.c.0.s8 %v3547
    %v3549 = vlaneseq
    %v3550 = vshrl.u32 %v3549, 7
    %v3551 = vsub.s32 %v3548, %v3550
    %v3552 = vrot.slane %v3544, %v3551
    %v3554 = vunpack.c.l.s4 1934713408
    %v3555 = vunpack.c.0.s8 %v3554
    %v3556 = vlaneseq
    %v3557 = vshrl.u32 %v3556, 7
    %v3558 = vsub.s32 %v3555, %v3557
    %v3559 = vrot.slane %v3545, %v3558
    %v3560 = vcombine.low %v3504, %v3536
    %v3561 = vcombine.high %v3504, %v3536
    %v3562 = vcombine.low %v3511, %v3543
    %v3563 = vcombine.high %v3511, %v3543
    %v3564 = vcombine.low %v3520, %v3552
    %v3565 = vcombine.high %v3520, %v3552
    %v3566 = vcombine.low %v3527, %v3559
    %v3567 = vcombine.high %v3527, %v3559
    %v3568 = vcombine.low %v2228, %v2260
    %v3569 = vcombine.high %v2228, %v2260
    %v3571 = vunpack.c.l.s4 1983009808
    %v3572 = vunpack.c.0.s8 %v3571
    %v3573 = vlaneseq
    %v3574 = vshrl.u32 %v3573, 7
    %v3575 = vsub.s32 %v3572, %v3574
    %v3576 = vrot.slane %v3568, %v3575
    %v3578 = vunpack.c.l.s4 1983009808
    %v3579 = vunpack.c.0.s8 %v3578
    %v3580 = vlaneseq
    %v3581 = vshrl.u32 %v3580, 7
    %v3582 = vsub.s32 %v3579, %v3581
    %v3583 = vrot.slane %v3569, %v3582
    %v3584 = vcombine.low %v2244, %v2276
    %v3585 = vcombine.high %v2244, %v2276
    %v3587 = vunpack.c.l.s4 1983009808
    %v3588 = vunpack.c.0.s8 %v3587
    %v3589 = vlaneseq
    %v3590 = vshrl.u32 %v3589, 7
    %v3591 = vsub.s32 %v3588, %v3590
    %v3592 = vrot.slane %v3584, %v3591
    %v3594 = vunpack.c.l.s4 1983009808
    %v3595 = vunpack.c.0.s8 %v3594
    %v3596 = vlaneseq
    %v3597 = vshrl.u32 %v3596, 7
    %v3598 = vsub.s32 %v3595, %v3597
    %v3599 = vrot.slane %v3585, %v3598
    %v3600 = vcombine.low %v2292, %v2324
    %v3601 = vcombine.high %v2292, %v2324
    %v3603 = vunpack.c.l.s4 1983009808
    %v3604 = vunpack.c.0.s8 %v3603
    %v3605 = vlaneseq
    %v3606 = vshrl.u32 %v3605, 7
    %v3607 = vsub.s32 %v3604, %v3606
    %v3608 = vrot.slane %v3600, %v3607
    %v3610 = vunpack.c.l.s4 1983009808
    %v3611 = vunpack.c.0.s8 %v3610
    %v3612 = vlaneseq
    %v3613 = vshrl.u32 %v3612, 7
    %v3614 = vsub.s32 %v3611, %v3613
    %v3615 = vrot.slane %v3601, %v3614
    %v3616 = vcombine.low %v2308, %v2340
    %v3617 = vcombine.high %v2308, %v2340
    %v3619 = vunpack.c.l.s4 1983009808
    %v3620 = vunpack.c.0.s8 %v3619
    %v3621 = vlaneseq
    %v3622 = vshrl.u32 %v3621, 7
    %v3623 = vsub.s32 %v3620, %v3622
    %v3624 = vrot.slane %v3616, %v3623
    %v3626 = vunpack.c.l.s4 1983009808
    %v3627 = vunpack.c.0.s8 %v3626
    %v3628 = vlaneseq
    %v3629 = vshrl.u32 %v3628, 7
    %v3630 = vsub.s32 %v3627, %v3629
    %v3631 = vrot.slane %v3617, %v3630
    %v3632 = vcombine.low %v3576, %v3592
    %v3633 = vcombine.high %v3576, %v3592
    %v3635 = vunpack.c.l.s4 1934713408
    %v3636 = vunpack.c.0.s8 %v3635
    %v3637 = vlaneseq
    %v3638 = vshrl.u32 %v3637, 7
    %v3639 = vsub.s32 %v3636, %v3638
    %v3640 = vrot.slane %v3632, %v3639
    %v3642 = vunpack.c.l.s4 1934713408
    %v3643 = vunpack.c.0.s8 %v3642
    %v3644 = vlaneseq
    %v3645 = vshrl.u32 %v3644, 7
    %v3646 = vsub.s32 %v3643, %v3645
    %v3647 = vrot.slane %v3633, %v3646
    %v3648 = vcombine.low %v3583, %v3599
    %v3649 = vcombine.high %v3583, %v3599
    %v3651 = vunpack.c.l.s4 1934713408
    %v3652 = vunpack.c.0.s8 %v3651
    %v3653 = vlaneseq
    %v3654 = vshrl.u32 %v3653, 7
    %v3655 = vsub.s32 %v3652, %v3654
    %v3656 = vrot.slane %v3648, %v3655
    %v3658 = vunpack.c.l.s4 1934713408
    %v3659 = vunpack.c.0.s8 %v3658
    %v3660 = vlaneseq
    %v3661 = vshrl.u32 %v3660, 7
    %v3662 = vsub.s32 %v3659, %v3661
    %v3663 = vrot.slane %v3649, %v3662
    %v3664 = vcombine.low %v3608, %v3624
    %v3665 = vcombine.high %v3608, %v3624
    %v3667 = vunpack.c.l.s4 1934713408
    %v3668 = vunpack.c.0.s8 %v3667
    %v3669 = vlaneseq
    %v3670 = vshrl.u32 %v3669, 7
    %v3671 = vsub.s32 %v3668, %v3670
    %v3672 = vrot.slane %v3664, %v3671
    %v3674 = vunpack.c.l.s4 1934713408
    %v3675 = vunpack.c.0.s8 %v3674
    %v3676 = vlaneseq
    %v3677 = vshrl.u32 %v3676, 7
    %v3678 = vsub.s32 %v3675, %v3677
    %v3679 = vrot.slane %v3665, %v3678
    %v3680 = vcombine.low %v3615, %v3631
    %v3681 = vcombine.high %v3615, %v3631
    %v3683 = vunpack.c.l.s4 1934713408
    %v3684 = vunpack.c.0.s8 %v3683
    %v3685 = vlaneseq
    %v3686 = vshrl.u32 %v3685, 7
    %v3687 = vsub.s32 %v3684, %v3686
    %v3688 = vrot.slane %v3680, %v3687
    %v3690 = vunpack.c.l.s4 1934713408
    %v3691 = vunpack.c.0.s8 %v3690
    %v3692 = vlaneseq
    %v3693 = vshrl.u32 %v3692, 7
    %v3694 = vsub.s32 %v3691, %v3693
    %v3695 = vrot.slane %v3681, %v3694
    %v3696 = vcombine.low %v3640, %v3672
    %v3697 = vcombine.high %v3640, %v3672
    %v3698 = vcombine.low %v3647, %v3679
    %v3699 = vcombine.high %v3647, %v3679
    %v3700 = vcombine.low %v3656, %v3688
    %v3701 = vcombine.high %v3656, %v3688
    %v3702 = vcombine.low %v3663, %v3695
    %v3703 = vcombine.high %v3663, %v3695
    %v3704 = vcombine.low %v2356, %v2388
    %v3705 = vcombine.high %v2356, %v2388
    %v3707 = vunpack.c.l.s4 1983009808
    %v3708 = vunpack.c.0.s8 %v3707
    %v3709 = vlaneseq
    %v3710 = vshrl.u32 %v3709, 7
    %v3711 = vsub.s32 %v3708, %v3710
    %v3712 = vrot.slane %v3704, %v3711
    %v3714 = vunpack.c.l.s4 1983009808
    %v3715 = vunpack.c.0.s8 %v3714
    %v3716 = vlaneseq
    %v3717 = vshrl.u32 %v3716, 7
    %v3718 = vsub.s32 %v3715, %v3717
    %v3719 = vrot.slane %v3705, %v3718
    %v3720 = vcombine.low %v2372, %v2404
    %v3721 = vcombine.high %v2372, %v2404
    %v3723 = vunpack.c.l.s4 1983009808
    %v3724 = vunpack.c.0.s8 %v3723
    %v3725 = vlaneseq
    %v3726 = vshrl.u32 %v3725, 7
    %v3727 = vsub.s32 %v3724, %v3726
    %v3728 = vrot.slane %v3720, %v3727
    %v3730 = vunpack.c.l.s4 1983009808
    %v3731 = vunpack.c.0.s8 %v3730
    %v3732 = vlaneseq
    %v3733 = vshrl.u32 %v3732, 7
    %v3734 = vsub.s32 %v3731, %v3733
    %v3735 = vrot.slane %v3721, %v3734
    %v3736 = vcombine.low %v2420, %v2452
    %v3737 = vcombine.high %v2420, %v2452
    %v3739 = vunpack.c.l.s4 1983009808
    %v3740 = vunpack.c.0.s8 %v3739
    %v3741 = vlaneseq
    %v3742 = vshrl.u32 %v3741, 7
    %v3743 = vsub.s32 %v3740, %v3742
    %v3744 = vrot.slane %v3736, %v3743
    %v3746 = vunpack.c.l.s4 1983009808
    %v3747 = vunpack.c.0.s8 %v3746
    %v3748 = vlaneseq
    %v3749 = vshrl.u32 %v3748, 7
    %v3750 = vsub.s32 %v3747, %v3749
    %v3751 = vrot.slane %v3737, %v3750
    %v3752 = vcombine.low %v2436, %v2468
    %v3753 = vcombine.high %v2436, %v2468
    %v3755 = vunpack.c.l.s4 1983009808
    %v3756 = vunpack.c.0.s8 %v3755
    %v3757 = vlaneseq
    %v3758 = vshrl.u32 %v3757, 7
    %v3759 = vsub.s32 %v3756, %v3758
    %v3760 = vrot.slane %v3752, %v3759
    %v3762 = vunpack.c.l.s4 1983009808
    %v3763 = vunpack.c.0.s8 %v3762
    %v3764 = vlaneseq
    %v3765 = vshrl.u32 %v3764, 7
    %v3766 = vsub.s32 %v3763, %v3765
    %v3767 = vrot.slane %v3753, %v3766
    %v3768 = vcombine.low %v3712, %v3728
    %v3769 = vcombine.high %v3712, %v3728
    %v3771 = vunpack.c.l.s4 1934713408
    %v3772 = vunpack.c.0.s8 %v3771
    %v3773 = vlaneseq
    %v3774 = vshrl.u32 %v3773, 7
    %v3775 = vsub.s32 %v3772, %v3774
    %v3776 = vrot.slane %v3768, %v3775
    %v3778 = vunpack.c.l.s4 1934713408
    %v3779 = vunpack.c.0.s8 %v3778
    %v3780 = vlaneseq
    %v3781 = vshrl.u32 %v3780, 7
    %v3782 = vsub.s32 %v3779, %v3781
    %v3783 = vrot.slane %v3769, %v3782
    %v3784 = vcombine.low %v3719, %v3735
    %v3785 = vcombine.high %v3719, %v3735
    %v3787 = vunpack.c.l.s4 1934713408
    %v3788 = vunpack.c.0.s8 %v3787
    %v3789 = vlaneseq
    %v3790 = vshrl.u32 %v3789, 7
    %v3791 = vsub.s32 %v3788, %v3790
    %v3792 = vrot.slane %v3784, %v3791
    %v3794 = vunpack.c.l.s4 1934713408
    %v3795 = vunpack.c.0.s8 %v3794
    %v3796 = vlaneseq
    %v3797 = vshrl.u32 %v3796, 7
    %v3798 = vsub.s32 %v3795, %v3797
    %v3799 = vrot.slane %v3785, %v3798
    %v3800 = vcombine.low %v3744, %v3760
    %v3801 = vcombine.high %v3744, %v3760
    %v3803 = vunpack.c.l.s4 1934713408
    %v3804 = vunpack.c.0.s8 %v3803
    %v3805 = vlaneseq
    %v3806 = vshrl.u32 %v3805, 7
    %v3807 = vsub.s32 %v3804, %v3806
    %v3808 = vrot.slane %v3800, %v3807
    %v3810 = vunpack.c.l.s4 1934713408
    %v3811 = vunpack.c.0.s8 %v3810
    %v3812 = vlaneseq
    %v3813 = vshrl.u32 %v3812, 7
    %v3814 = vsub.s32 %v3811, %v3813
    %v3815 = vrot.slane %v3801, %v3814
    %v3816 = vcombine.low %v3751, %v3767
    %v3817 = vcombine.high %v3751, %v3767
    %v3819 = vunpack.c.l.s4 1934713408
    %v3820 = vunpack.c.0.s8 %v3819
    %v3821 = vlaneseq
    %v3822 = vshrl.u32 %v3821, 7
    %v3823 = vsub.s32 %v3820, %v3822
    %v3824 = vrot.slane %v3816, %v3823
    %v3826 = vunpack.c.l.s4 1934713408
    %v3827 = vunpack.c.0.s8 %v3826
    %v3828 = vlaneseq
    %v3829 = vshrl.u32 %v3828, 7
    %v3830 = vsub.s32 %v3827, %v3829
    %v3831 = vrot.slane %v3817, %v3830
    %v3832 = vcombine.low %v3776, %v3808
    %v3833 = vcombine.high %v3776, %v3808
    %v3834 = vcombine.low %v3783, %v3815
    %v3835 = vcombine.high %v3783, %v3815
    %v3836 = vcombine.low %v3792, %v3824
    %v3837 = vcombine.high %v3792, %v3824
    %v3838 = vcombine.low %v3799, %v3831
    %v3839 = vcombine.high %v3799, %v3831
    %v3840 = vcombine.low %v2229, %v2261
    %v3841 = vcombine.high %v2229, %v2261
    %v3843 = vunpack.c.l.s4 1983009808
    %v3844 = vunpack.c.0.s8 %v3843
    %v3845 = vlaneseq
    %v3846 = vshrl.u32 %v3845, 7
    %v3847 = vsub.s32 %v3844, %v3846
    %v3848 = vrot.slane %v3840, %v3847
    %v3850 = vunpack.c.l.s4 1983009808
    %v3851 = vunpack.c.0.s8 %v3850
    %v3852 = vlaneseq
    %v3853 = vshrl.u32 %v3852, 7
    %v3854 = vsub.s32 %v3851, %v3853
    %v3855 = vrot.slane %v3841, %v3854
    %v3856 = vcombine.low %v2245, %v2277
    %v3857 = vcombine.high %v2245, %v2277
    %v3859 = vunpack.c.l.s4 1983009808
    %v3860 = vunpack.c.0.s8 %v3859
    %v3861 = vlaneseq
    %v3862 = vshrl.u32 %v3861, 7
    %v3863 = vsub.s32 %v3860, %v3862
    %v3864 = vrot.slane %v3856, %v3863
    %v3866 = vunpack.c.l.s4 1983009808
    %v3867 = vunpack.c.0.s8 %v3866
    %v3868 = vlaneseq
    %v3869 = vshrl.u32 %v3868, 7
    %v3870 = vsub.s32 %v3867, %v3869
    %v3871 = vrot.slane %v3857, %v3870
    %v3872 = vcombine.low %v2293, %v2325
    %v3873 = vcombine.high %v2293, %v2325
    %v3875 = vunpack.c.l.s4 1983009808
    %v3876 = vunpack.c.0.s8 %v3875
    %v3877 = vlaneseq
    %v3878 = vshrl.u32 %v3877, 7
    %v3879 = vsub.s32 %v3876, %v3878
    %v3880 = vrot.slane %v3872, %v3879
    %v3882 = vunpack.c.l.s4 1983009808
    %v3883 = vunpack.c.0.s8 %v3882
    %v3884 = vlaneseq
    %v3885 = vshrl.u32 %v3884, 7
    %v3886 = vsub.s32 %v3883, %v3885
    %v3887 = vrot.slane %v3873, %v3886
    %v3888 = vcombine.low %v2309, %v2341
    %v3889 = vcombine.high %v2309, %v2341
    %v3891 = vunpack.c.l.s4 1983009808
    %v3892 = vunpack.c.0.s8 %v3891
    %v3893 = vlaneseq
    %v3894 = vshrl.u32 %v3893, 7
    %v3895 = vsub.s32 %v3892, %v3894
    %v3896 = vrot.slane %v3888, %v3895
    %v3898 = vunpack.c.l.s4 1983009808
    %v3899 = vunpack.c.0.s8 %v3898
    %v3900 = vlaneseq
    %v3901 = vshrl.u32 %v3900, 7
    %v3902 = vsub.s32 %v3899, %v3901
    %v3903 = vrot.slane %v3889, %v3902
    %v3904 = vcombine.low %v3848, %v3864
    %v3905 = vcombine.high %v3848, %v3864
    %v3907 = vunpack.c.l.s4 1934713408
    %v3908 = vunpack.c.0.s8 %v3907
    %v3909 = vlaneseq
    %v3910 = vshrl.u32 %v3909, 7
    %v3911 = vsub.s32 %v3908, %v3910
    %v3912 = vrot.slane %v3904, %v3911
    %v3914 = vunpack.c.l.s4 1934713408
    %v3915 = vunpack.c.0.s8 %v3914
    %v3916 = vlaneseq
    %v3917 = vshrl.u32 %v3916, 7
    %v3918 = vsub.s32 %v3915, %v3917
    %v3919 = vrot.slane %v3905, %v3918
    %v3920 = vcombine.low %v3855, %v3871
    %v3921 = vcombine.high %v3855, %v3871
    %v3923 = vunpack.c.l.s4 1934713408
    %v3924 = vunpack.c.0.s8 %v3923
    %v3925 = vlaneseq
    %v3926 = vshrl.u32 %v3925, 7
    %v3927 = vsub.s32 %v3924, %v3926
    %v3928 = vrot.slane %v3920, %v3927
    %v3930 = vunpack.c.l.s4 1934713408
    %v3931 = vunpack.c.0.s8 %v3930
    %v3932 = vlaneseq
    %v3933 = vshrl.u32 %v3932, 7
    %v3934 = vsub.s32 %v3931, %v3933
    %v3935 = vrot.slane %v3921, %v3934
    %v3936 = vcombine.low %v3880, %v3896
    %v3937 = vcombine.high %v3880, %v3896
    %v3939 = vunpack.c.l.s4 1934713408
    %v3940 = vunpack.c.0.s8 %v3939
    %v3941 = vlaneseq
    %v3942 = vshrl.u32 %v3941, 7
    %v3943 = vsub.s32 %v3940, %v3942
    %v3944 = vrot.slane %v3936, %v3943
    %v3946 = vunpack.c.l.s4 1934713408
    %v3947 = vunpack.c.0.s8 %v3946
    %v3948 = vlaneseq
    %v3949 = vshrl.u32 %v3948, 7
    %v3950 = vsub.s32 %v3947, %v3949
    %v3951 = vrot.slane %v3937, %v3950
    %v3952 = vcombine.low %v3887, %v3903
    %v3953 = vcombine.high %v3887, %v3903
    %v3955 = vunpack.c.l.s4 1934713408
    %v3956 = vunpack.c.0.s8 %v3955
    %v3957 = vlaneseq
    %v3958 = vshrl.u32 %v3957, 7
    %v3959 = vsub.s32 %v3956, %v3958
    %v3960 = vrot.slane %v3952, %v3959
    %v3962 = vunpack.c.l.s4 1934713408
    %v3963 = vunpack.c.0.s8 %v3962
    %v3964 = vlaneseq
    %v3965 = vshrl.u32 %v3964, 7
    %v3966 = vsub.s32 %v3963, %v3965
    %v3967 = vrot.slane %v3953, %v3966
    %v3968 = vcombine.low %v3912, %v3944
    %v3969 = vcombine.high %v3912, %v3944
    %v3970 = vcombine.low %v3919, %v3951
    %v3971 = vcombine.high %v3919, %v3951
    %v3972 = vcombine.low %v3928, %v3960
    %v3973 = vcombine.high %v3928, %v3960
    %v3974 = vcombine.low %v3935, %v3967
    %v3975 = vcombine.high %v3935, %v3967
    %v3976 = vcombine.low %v2357, %v2389
    %v3977 = vcombine.high %v2357, %v2389
    %v3979 = vunpack.c.l.s4 1983009808
    %v3980 = vunpack.c.0.s8 %v3979
    %v3981 = vlaneseq
    %v3982 = vshrl.u32 %v3981, 7
    %v3983 = vsub.s32 %v3980, %v3982
    %v3984 = vrot.slane %v3976, %v3983
    %v3986 = vunpack.c.l.s4 1983009808
    %v3987 = vunpack.c.0.s8 %v3986
    %v3988 = vlaneseq
    %v3989 = vshrl.u32 %v3988, 7
    %v3990 = vsub.s32 %v3987, %v3989
    %v3991 = vrot.slane %v3977, %v3990
    %v3992 = vcombine.low %v2373, %v2405
    %v3993 = vcombine.high %v2373, %v2405
    %v3995 = vunpack.c.l.s4 1983009808
    %v3996 = vunpack.c.0.s8 %v3995
    %v3997 = vlaneseq
    %v3998 = vshrl.u32 %v3997, 7
    %v3999 = vsub.s32 %v3996, %v3998
    %v4000 = vrot.slane %v3992, %v3999
    %v4002 = vunpack.c.l.s4 1983009808
    %v4003 = vunpack.c.0.s8 %v4002
    %v4004 = vlaneseq
    %v4005 = vshrl.u32 %v4004, 7
    %v4006 = vsub.s32 %v4003, %v4005
    %v4007 = vrot.slane %v3993, %v4006
    %v4008 = vcombine.low %v2421, %v2453
    %v4009 = vcombine.high %v2421, %v2453
    %v4011 = vunpack.c.l.s4 1983009808
    %v4012 = vunpack.c.0.s8 %v4011
    %v4013 = vlaneseq
    %v4014 = vshrl.u32 %v4013, 7
    %v4015 = vsub.s32 %v4012, %v4014
    %v4016 = vrot.slane %v4008, %v4015
    %v4018 = vunpack.c.l.s4 1983009808
    %v4019 = vunpack.c.0.s8 %v4018
    %v4020 = vlaneseq
    %v4021 = vshrl.u32 %v4020, 7
    %v4022 = vsub.s32 %v4019, %v4021
    %v4023 = vrot.slane %v4009, %v4022
    %v4024 = vcombine.low %v2437, %v2469
    %v4025 = vcombine.high %v2437, %v2469
    %v4027 = vunpack.c.l.s4 1983009808
    %v4028 = vunpack.c.0.s8 %v4027
    %v4029 = vlaneseq
    %v4030 = vshrl.u32 %v4029, 7
    %v4031 = vsub.s32 %v4028, %v4030
    %v4032 = vrot.slane %v4024, %v4031
    %v4034 = vunpack.c.l.s4 1983009808
    %v4035 = vunpack.c.0.s8 %v4034
    %v4036 = vlaneseq
    %v4037 = vshrl.u32 %v4036, 7
    %v4038 = vsub.s32 %v4035, %v4037
    %v4039 = vrot.slane %v4025, %v4038
    %v4040 = vcombine.low %v3984, %v4000
    %v4041 = vcombine.high %v3984, %v4000
    %v4043 = vunpack.c.l.s4 1934713408
    %v4044 = vunpack.c.0.s8 %v4043
    %v4045 = vlaneseq
    %v4046 = vshrl.u32 %v4045, 7
    %v4047 = vsub.s32 %v4044, %v4046
    %v4048 = vrot.slane %v4040, %v4047
    %v4050 = vunpack.c.l.s4 1934713408
    %v4051 = vunpack.c.0.s8 %v4050
    %v4052 = vlaneseq
    %v4053 = vshrl.u32 %v4052, 7
    %v4054 = vsub.s32 %v4051, %v4053
    %v4055 = vrot.slane %v4041, %v4054
    %v4056 = vcombine.low %v3991, %v4007
    %v4057 = vcombine.high %v3991, %v4007
    %v4059 = vunpack.c.l.s4 1934713408
    %v4060 = vunpack.c.0.s8 %v4059
    %v4061 = vlaneseq
    %v4062 = vshrl.u32 %v4061, 7
    %v4063 = vsub.s32 %v4060, %v4062
    %v4064 = vrot.slane %v4056, %v4063
    %v4066 = vunpack.c.l.s4 1934713408
    %v4067 = vunpack.c.0.s8 %v4066
    %v4068 = vlaneseq
    %v4069 = vshrl.u32 %v4068, 7
    %v4070 = vsub.s32 %v4067, %v4069
    %v4071 = vrot.slane %v4057, %v4070
    %v4072 = vcombine.low %v4016, %v4032
    %v4073 = vcombine.high %v4016, %v4032
    %v4075 = vunpack.c.l.s4 1934713408
    %v4076 = vunpack.c.0.s8 %v4075
    %v4077 = vlaneseq
    %v4078 = vshrl.u32 %v4077, 7
    %v4079 = vsub.s32 %v4076, %v4078
    %v4080 = vrot.slane %v4072, %v4079
    %v4082 = vunpack.c.l.s4 1934713408
    %v4083 = vunpack.c.0.s8 %v4082
    %v4084 = vlaneseq
    %v4085 = vshrl.u32 %v4084, 7
    %v4086 = vsub.s32 %v4083, %v4085
    %v4087 = vrot.slane %v4073, %v4086
    %v4088 = vcombine.low %v4023, %v4039
    %v4089 = vcombine.high %v4023, %v4039
    %v4091 = vunpack.c.l.s4 1934713408
    %v4092 = vunpack.c.0.s8 %v4091
    %v4093 = vlaneseq
    %v4094 = vshrl.u32 %v4093, 7
    %v4095 = vsub.s32 %v4092, %v4094
    %v4096 = vrot.slane %v4088, %v4095
    %v4098 = vunpack.c.l.s4 1934713408
    %v4099 = vunpack.c.0.s8 %v4098
    %v4100 = vlaneseq
    %v4101 = vshrl.u32 %v4100, 7
    %v4102 = vsub.s32 %v4099, %v4101
    %v4103 = vrot.slane %v4089, %v4102
    %v4104 = vcombine.low %v4048, %v4080
    %v4105 = vcombine.high %v4048, %v4080
    %v4106 = vcombine.low %v4055, %v4087
    %v4107 = vcombine.high %v4055, %v4087
    %v4108 = vcombine.low %v4064, %v4096
    %v4109 = vcombine.high %v4064, %v4096
    %v4110 = vcombine.low %v4071, %v4103
    %v4111 = vcombine.high %v4071, %v4103
    %v4112 = vcombine.low %v2230, %v2262
    %v4113 = vcombine.high %v2230, %v2262
    %v4115 = vunpack.c.l.s4 1983009808
    %v4116 = vunpack.c.0.s8 %v4115
    %v4117 = vlaneseq
    %v4118 = vshrl.u32 %v4117, 7
    %v4119 = vsub.s32 %v4116, %v4118
    %v4120 = vrot.slane %v4112, %v4119
    %v4122 = vunpack.c.l.s4 1983009808
    %v4123 = vunpack.c.0.s8 %v4122
    %v4124 = vlaneseq
    %v4125 = vshrl.u32 %v4124, 7
    %v4126 = vsub.s32 %v4123, %v4125
    %v4127 = vrot.slane %v4113, %v4126
    %v4128 = vcombine.low %v2246, %v2278
    %v4129 = vcombine.high %v2246, %v2278
    %v4131 = vunpack.c.l.s4 1983009808
    %v4132 = vunpack.c.0.s8 %v4131
    %v4133 = vlaneseq
    %v4134 = vshrl.u32 %v4133, 7
    %v4135 = vsub.s32 %v4132, %v4134
    %v4136 = vrot.slane %v4128, %v4135
    %v4138 = vunpack.c.l.s4 1983009808
    %v4139 = vunpack.c.0.s8 %v4138
    %v4140 = vlaneseq
    %v4141 = vshrl.u32 %v4140, 7
    %v4142 = vsub.s32 %v4139, %v4141
    %v4143 = vrot.slane %v4129, %v4142
    %v4144 = vcombine.low %v2294, %v2326
    %v4145 = vcombine.high %v2294, %v2326
    %v4147 = vunpack.c.l.s4 1983009808
    %v4148 = vunpack.c.0.s8 %v4147
    %v4149 = vlaneseq
    %v4150 = vshrl.u32 %v4149, 7
    %v4151 = vsub.s32 %v4148, %v4150
    %v4152 = vrot.slane %v4144, %v4151
    %v4154 = vunpack.c.l.s4 1983009808
    %v4155 = vunpack.c.0.s8 %v4154
    %v4156 = vlaneseq
    %v4157 = vshrl.u32 %v4156, 7
    %v4158 = vsub.s32 %v4155, %v4157
    %v4159 = vrot.slane %v4145, %v4158
    %v4160 = vcombine.low %v2310, %v2342
    %v4161 = vcombine.high %v2310, %v2342
    %v4163 = vunpack.c.l.s4 1983009808
    %v4164 = vunpack.c.0.s8 %v4163
    %v4165 = vlaneseq
    %v4166 = vshrl.u32 %v4165, 7
    %v4167 = vsub.s32 %v4164, %v4166
    %v4168 = vrot.slane %v4160, %v4167
    %v4170 = vunpack.c.l.s4 1983009808
    %v4171 = vunpack.c.0.s8 %v4170
    %v4172 = vlaneseq
    %v4173 = vshrl.u32 %v4172, 7
    %v4174 = vsub.s32 %v4171, %v4173
    %v4175 = vrot.slane %v4161, %v4174
    %v4176 = vcombine.low %v4120, %v4136
    %v4177 = vcombine.high %v4120, %v4136
    %v4179 = vunpack.c.l.s4 1934713408
    %v4180 = vunpack.c.0.s8 %v4179
    %v4181 = vlaneseq
    %v4182 = vshrl.u32 %v4181, 7
    %v4183 = vsub.s32 %v4180, %v4182
    %v4184 = vrot.slane %v4176, %v4183
    %v4186 = vunpack.c.l.s4 1934713408
    %v4187 = vunpack.c.0.s8 %v4186
    %v4188 = vlaneseq
    %v4189 = vshrl.u32 %v4188, 7
    %v4190 = vsub.s32 %v4187, %v4189
    %v4191 = vrot.slane %v4177, %v4190
    %v4192 = vcombine.low %v4127, %v4143
    %v4193 = vcombine.high %v4127, %v4143
    %v4195 = vunpack.c.l.s4 1934713408
    %v4196 = vunpack.c.0.s8 %v4195
    %v4197 = vlaneseq
    %v4198 = vshrl.u32 %v4197, 7
    %v4199 = vsub.s32 %v4196, %v4198
    %v4200 = vrot.slane %v4192, %v4199
    %v4202 = vunpack.c.l.s4 1934713408
    %v4203 = vunpack.c.0.s8 %v4202
    %v4204 = vlaneseq
    %v4205 = vshrl.u32 %v4204, 7
    %v4206 = vsub.s32 %v4203, %v4205
    %v4207 = vrot.slane %v4193, %v4206
    %v4208 = vcombine.low %v4152, %v4168
    %v4209 = vcombine.high %v4152, %v4168
    %v4211 = vunpack.c.l.s4 1934713408
    %v4212 = vunpack.c.0.s8 %v4211
    %v4213 = vlaneseq
    %v4214 = vshrl.u32 %v4213, 7
    %v4215 = vsub.s32 %v4212, %v4214
    %v4216 = vrot.slane %v4208, %v4215
    %v4218 = vunpack.c.l.s4 1934713408
    %v4219 = vunpack.c.0.s8 %v4218
    %v4220 = vlaneseq
    %v4221 = vshrl.u32 %v4220, 7
    %v4222 = vsub.s32 %v4219, %v4221
    %v4223 = vrot.slane %v4209, %v4222
    %v4224 = vcombine.low %v4159, %v4175
    %v4225 = vcombine.high %v4159, %v4175
    %v4227 = vunpack.c.l.s4 1934713408
    %v4228 = vunpack.c.0.s8 %v4227
    %v4229 = vlaneseq
    %v4230 = vshrl.u32 %v4229, 7
    %v4231 = vsub.s32 %v4228, %v4230
    %v4232 = vrot.slane %v4224, %v4231
    %v4234 = vunpack.c.l.s4 1934713408
    %v4235 = vunpack.c.0.s8 %v4234
    %v4236 = vlaneseq
    %v4237 = vshrl.u32 %v4236, 7
    %v4238 = vsub.s32 %v4235, %v4237
    %v4239 = vrot.slane %v4225, %v4238
    %v4240 = vcombine.low %v4184, %v4216
    %v4241 = vcombine.high %v4184, %v4216
    %v4242 = vcombine.low %v4191, %v4223
    %v4243 = vcombine.high %v4191, %v4223
    %v4244 = vcombine.low %v4200, %v4232
    %v4245 = vcombine.high %v4200, %v4232
    %v4246 = vcombine.low %v4207, %v4239
    %v4247 = vcombine.high %v4207, %v4239
    %v4248 = vcombine.low %v2358, %v2390
    %v4249 = vcombine.high %v2358, %v2390
    %v4251 = vunpack.c.l.s4 1983009808
    %v4252 = vunpack.c.0.s8 %v4251
    %v4253 = vlaneseq
    %v4254 = vshrl.u32 %v4253, 7
    %v4255 = vsub.s32 %v4252, %v4254
    %v4256 = vrot.slane %v4248, %v4255
    %v4258 = vunpack.c.l.s4 1983009808
    %v4259 = vunpack.c.0.s8 %v4258
    %v4260 = vlaneseq
    %v4261 = vshrl.u32 %v4260, 7
    %v4262 = vsub.s32 %v4259, %v4261
    %v4263 = vrot.slane %v4249, %v4262
    %v4264 = vcombine.low %v2374, %v2406
    %v4265 = vcombine.high %v2374, %v2406
    %v4267 = vunpack.c.l.s4 1983009808
    %v4268 = vunpack.c.0.s8 %v4267
    %v4269 = vlaneseq
    %v4270 = vshrl.u32 %v4269, 7
    %v4271 = vsub.s32 %v4268, %v4270
    %v4272 = vrot.slane %v4264, %v4271
    %v4274 = vunpack.c.l.s4 1983009808
    %v4275 = vunpack.c.0.s8 %v4274
    %v4276 = vlaneseq
    %v4277 = vshrl.u32 %v4276, 7
    %v4278 = vsub.s32 %v4275, %v4277
    %v4279 = vrot.slane %v4265, %v4278
    %v4280 = vcombine.low %v2422, %v2454
    %v4281 = vcombine.high %v2422, %v2454
    %v4283 = vunpack.c.l.s4 1983009808
    %v4284 = vunpack.c.0.s8 %v4283
    %v4285 = vlaneseq
    %v4286 = vshrl.u32 %v4285, 7
    %v4287 = vsub.s32 %v4284, %v4286
    %v4288 = vrot.slane %v4280, %v4287
    %v4290 = vunpack.c.l.s4 1983009808
    %v4291 = vunpack.c.0.s8 %v4290
    %v4292 = vlaneseq
    %v4293 = vshrl.u32 %v4292, 7
    %v4294 = vsub.s32 %v4291, %v4293
    %v4295 = vrot.slane %v4281, %v4294
    %v4296 = vcombine.low %v2438, %v2470
    %v4297 = vcombine.high %v2438, %v2470
    %v4299 = vunpack.c.l.s4 1983009808
    %v4300 = vunpack.c.0.s8 %v4299
    %v4301 = vlaneseq
    %v4302 = vshrl.u32 %v4301, 7
    %v4303 = vsub.s32 %v4300, %v4302
    %v4304 = vrot.slane %v4296, %v4303
    %v4306 = vunpack.c.l.s4 1983009808
    %v4307 = vunpack.c.0.s8 %v4306
    %v4308 = vlaneseq
    %v4309 = vshrl.u32 %v4308, 7
    %v4310 = vsub.s32 %v4307, %v4309
    %v4311 = vrot.slane %v4297, %v4310
    %v4312 = vcombine.low %v4256, %v4272
    %v4313 = vcombine.high %v4256, %v4272
    %v4315 = vunpack.c.l.s4 1934713408
    %v4316 = vunpack.c.0.s8 %v4315
    %v4317 = vlaneseq
    %v4318 = vshrl.u32 %v4317, 7
    %v4319 = vsub.s32 %v4316, %v4318
    %v4320 = vrot.slane %v4312, %v4319
    %v4322 = vunpack.c.l.s4 1934713408
    %v4323 = vunpack.c.0.s8 %v4322
    %v4324 = vlaneseq
    %v4325 = vshrl.u32 %v4324, 7
    %v4326 = vsub.s32 %v4323, %v4325
    %v4327 = vrot.slane %v4313, %v4326
    %v4328 = vcombine.low %v4263, %v4279
    %v4329 = vcombine.high %v4263, %v4279
    %v4331 = vunpack.c.l.s4 1934713408
    %v4332 = vunpack.c.0.s8 %v4331
    %v4333 = vlaneseq
    %v4334 = vshrl.u32 %v4333, 7
    %v4335 = vsub.s32 %v4332, %v4334
    %v4336 = vrot.slane %v4328, %v4335
    %v4338 = vunpack.c.l.s4 1934713408
    %v4339 = vunpack.c.0.s8 %v4338
    %v4340 = vlaneseq
    %v4341 = vshrl.u32 %v4340, 7
    %v4342 = vsub.s32 %v4339, %v4341
    %v4343 = vrot.slane %v4329, %v4342
    %v4344 = vcombine.low %v4288, %v4304
    %v4345 = vcombine.high %v4288, %v4304
    %v4347 = vunpack.c.l.s4 1934713408
    %v4348 = vunpack.c.0.s8 %v4347
    %v4349 = vlaneseq
    %v4350 = vshrl.u32 %v4349, 7
    %v4351 = vsub.s32 %v4348, %v4350
    %v4352 = vrot.slane %v4344, %v4351
    %v4354 = vunpack.c.l.s4 1934713408
    %v4355 = vunpack.c.0.s8 %v4354
    %v4356 = vlaneseq
    %v4357 = vshrl.u32 %v4356, 7
    %v4358 = vsub.s32 %v4355, %v4357
    %v4359 = vrot.slane %v4345, %v4358
    %v4360 = vcombine.low %v4295, %v4311
    %v4361 = vcombine.high %v4295, %v4311
    %v4363 = vunpack.c.l.s4 1934713408
    %v4364 = vunpack.c.0.s8 %v4363
    %v4365 = vlaneseq
    %v4366 = vshrl.u32 %v4365, 7
    %v4367 = vsub.s32 %v4364, %v4366
    %v4368 = vrot.slane %v4360, %v4367
    %v4370 = vunpack.c.l.s4 1934713408
    %v4371 = vunpack.c.0.s8 %v4370
    %v4372 = vlaneseq
    %v4373 = vshrl.u32 %v4372, 7
    %v4374 = vsub.s32 %v4371, %v4373
    %v4375 = vrot.slane %v4361, %v4374
    %v4376 = vcombine.low %v4320, %v4352
    %v4377 = vcombine.high %v4320, %v4352
    %v4378 = vcombine.low %v4327, %v4359
    %v4379 = vcombine.high %v4327, %v4359
    %v4380 = vcombine.low %v4336, %v4368
    %v4381 = vcombine.high %v4336, %v4368
    %v4382 = vcombine.low %v4343, %v4375
    %v4383 = vcombine.high %v4343, %v4375
    %v4384 = vcombine.low %v2231, %v2263
    %v4385 = vcombine.high %v2231, %v2263
    %v4387 = vunpack.c.l.s4 1983009808
    %v4388 = vunpack.c.0.s8 %v4387
    %v4389 = vlaneseq
    %v4390 = vshrl.u32 %v4389, 7
    %v4391 = vsub.s32 %v4388, %v4390
    %v4392 = vrot.slane %v4384, %v4391
    %v4394 = vunpack.c.l.s4 1983009808
    %v4395 = vunpack.c.0.s8 %v4394
    %v4396 = vlaneseq
    %v4397 = vshrl.u32 %v4396, 7
    %v4398 = vsub.s32 %v4395, %v4397
    %v4399 = vrot.slane %v4385, %v4398
    %v4400 = vcombine.low %v2247, %v2279
    %v4401 = vcombine.high %v2247, %v2279
    %v4403 = vunpack.c.l.s4 1983009808
    %v4404 = vunpack.c.0.s8 %v4403
    %v4405 = vlaneseq
    %v4406 = vshrl.u32 %v4405, 7
    %v4407 = vsub.s32 %v4404, %v4406
    %v4408 = vrot.slane %v4400, %v4407
    %v4410 = vunpack.c.l.s4 1983009808
    %v4411 = vunpack.c.0.s8 %v4410
    %v4412 = vlaneseq
    %v4413 = vshrl.u32 %v4412, 7
    %v4414 = vsub.s32 %v4411, %v4413
    %v4415 = vrot.slane %v4401, %v4414
    %v4416 = vcombine.low %v2295, %v2327
    %v4417 = vcombine.high %v2295, %v2327
    %v4419 = vunpack.c.l.s4 1983009808
    %v4420 = vunpack.c.0.s8 %v4419
    %v4421 = vlaneseq
    %v4422 = vshrl.u32 %v4421, 7
    %v4423 = vsub.s32 %v4420, %v4422
    %v4424 = vrot.slane %v4416, %v4423
    %v4426 = vunpack.c.l.s4 1983009808
    %v4427 = vunpack.c.0.s8 %v4426
    %v4428 = vlaneseq
    %v4429 = vshrl.u32 %v4428, 7
    %v4430 = vsub.s32 %v4427, %v4429
    %v4431 = vrot.slane %v4417, %v4430
    %v4432 = vcombine.low %v2311, %v2343
    %v4433 = vcombine.high %v2311, %v2343
    %v4435 = vunpack.c.l.s4 1983009808
    %v4436 = vunpack.c.0.s8 %v4435
    %v4437 = vlaneseq
    %v4438 = vshrl.u32 %v4437, 7
    %v4439 = vsub.s32 %v4436, %v4438
    %v4440 = vrot.slane %v4432, %v4439
    %v4442 = vunpack.c.l.s4 1983009808
    %v4443 = vunpack.c.0.s8 %v4442
    %v4444 = vlaneseq
    %v4445 = vshrl.u32 %v4444, 7
    %v4446 = vsub.s32 %v4443, %v4445
    %v4447 = vrot.slane %v4433, %v4446
    %v4448 = vcombine.low %v4392, %v4408
    %v4449 = vcombine.high %v4392, %v4408
    %v4451 = vunpack.c.l.s4 1934713408
    %v4452 = vunpack.c.0.s8 %v4451
    %v4453 = vlaneseq
    %v4454 = vshrl.u32 %v4453, 7
    %v4455 = vsub.s32 %v4452, %v4454
    %v4456 = vrot.slane %v4448, %v4455
    %v4458 = vunpack.c.l.s4 1934713408
    %v4459 = vunpack.c.0.s8 %v4458
    %v4460 = vlaneseq
    %v4461 = vshrl.u32 %v4460, 7
    %v4462 = vsub.s32 %v4459, %v4461
    %v4463 = vrot.slane %v4449, %v4462
    %v4464 = vcombine.low %v4399, %v4415
    %v4465 = vcombine.high %v4399, %v4415
    %v4467 = vunpack.c.l.s4 1934713408
    %v4468 = vunpack.c.0.s8 %v4467
    %v4469 = vlaneseq
    %v4470 = vshrl.u32 %v4469, 7
    %v4471 = vsub.s32 %v4468, %v4470
    %v4472 = vrot.slane %v4464, %v4471
    %v4474 = vunpack.c.l.s4 1934713408
    %v4475 = vunpack.c.0.s8 %v4474
    %v4476 = vlaneseq
    %v4477 = vshrl.u32 %v4476, 7
    %v4478 = vsub.s32 %v4475, %v4477
    %v4479 = vrot.slane %v4465, %v4478
    %v4480 = vcombine.low %v4424, %v4440
    %v4481 = vcombine.high %v4424, %v4440
    %v4483 = vunpack.c.l.s4 1934713408
    %v4484 = vunpack.c.0.s8 %v4483
    %v4485 = vlaneseq
    %v4486 = vshrl.u32 %v4485, 7
    %v4487 = vsub.s32 %v4484, %v4486
    %v4488 = vrot.slane %v4480, %v4487
    %v4490 = vunpack.c.l.s4 1934713408
    %v4491 = vunpack.c.0.s8 %v4490
    %v4492 = vlaneseq
    %v4493 = vshrl.u32 %v4492, 7
    %v4494 = vsub.s32 %v4491, %v4493
    %v4495 = vrot.slane %v4481, %v4494
    %v4496 = vcombine.low %v4431, %v4447
    %v4497 = vcombine.high %v4431, %v4447
    %v4499 = vunpack.c.l.s4 1934713408
    %v4500 = vunpack.c.0.s8 %v4499
    %v4501 = vlaneseq
    %v4502 = vshrl.u32 %v4501, 7
    %v4503 = vsub.s32 %v4500, %v4502
    %v4504 = vrot.slane %v4496, %v4503
    %v4506 = vunpack.c.l.s4 1934713408
    %v4507 = vunpack.c.0.s8 %v4506
    %v4508 = vlaneseq
    %v4509 = vshrl.u32 %v4508, 7
    %v4510 = vsub.s32 %v4507, %v4509
    %v4511 = vrot.slane %v4497, %v4510
    %v4512 = vcombine.low %v4456, %v4488
    %v4513 = vcombine.high %v4456, %v4488
    %v4514 = vcombine.low %v4463, %v4495
    %v4515 = vcombine.high %v4463, %v4495
    %v4516 = vcombine.low %v4472, %v4504
    %v4517 = vcombine.high %v4472, %v4504
    %v4518 = vcombine.low %v4479, %v4511
    %v4519 = vcombine.high %v4479, %v4511
    %v4520 = vcombine.low %v2359, %v2391
    %v4521 = vcombine.high %v2359, %v2391
    %v4523 = vunpack.c.l.s4 1983009808
    %v4524 = vunpack.c.0.s8 %v4523
    %v4525 = vlaneseq
    %v4526 = vshrl.u32 %v4525, 7
    %v4527 = vsub.s32 %v4524, %v4526
    %v4528 = vrot.slane %v4520, %v4527
    %v4530 = vunpack.c.l.s4 1983009808
    %v4531 = vunpack.c.0.s8 %v4530
    %v4532 = vlaneseq
    %v4533 = vshrl.u32 %v4532, 7
    %v4534 = vsub.s32 %v4531, %v4533
    %v4535 = vrot.slane %v4521, %v4534
    %v4536 = vcombine.low %v2375, %v2407
    %v4537 = vcombine.high %v2375, %v2407
    %v4539 = vunpack.c.l.s4 1983009808
    %v4540 = vunpack.c.0.s8 %v4539
    %v4541 = vlaneseq
    %v4542 = vshrl.u32 %v4541, 7
    %v4543 = vsub.s32 %v4540, %v4542
    %v4544 = vrot.slane %v4536, %v4543
    %v4546 = vunpack.c.l.s4 1983009808
    %v4547 = vunpack.c.0.s8 %v4546
    %v4548 = vlaneseq
    %v4549 = vshrl.u32 %v4548, 7
    %v4550 = vsub.s32 %v4547, %v4549
    %v4551 = vrot.slane %v4537, %v4550
    %v4552 = vcombine.low %v2423, %v2455
    %v4553 = vcombine.high %v2423, %v2455
    %v4555 = vunpack.c.l.s4 1983009808
    %v4556 = vunpack.c.0.s8 %v4555
    %v4557 = vlaneseq
    %v4558 = vshrl.u32 %v4557, 7
    %v4559 = vsub.s32 %v4556, %v4558
    %v4560 = vrot.slane %v4552, %v4559
    %v4562 = vunpack.c.l.s4 1983009808
    %v4563 = vunpack.c.0.s8 %v4562
    %v4564 = vlaneseq
    %v4565 = vshrl.u32 %v4564, 7
    %v4566 = vsub.s32 %v4563, %v4565
    %v4567 = vrot.slane %v4553, %v4566
    %v4568 = vcombine.low %v2439, %v2471
    %v4569 = vcombine.high %v2439, %v2471
    %v4571 = vunpack.c.l.s4 1983009808
    %v4572 = vunpack.c.0.s8 %v4571
    %v4573 = vlaneseq
    %v4574 = vshrl.u32 %v4573, 7
    %v4575 = vsub.s32 %v4572, %v4574
    %v4576 = vrot.slane %v4568, %v4575
    %v4578 = vunpack.c.l.s4 1983009808
    %v4579 = vunpack.c.0.s8 %v4578
    %v4580 = vlaneseq
    %v4581 = vshrl.u32 %v4580, 7
    %v4582 = vsub.s32 %v4579, %v4581
    %v4583 = vrot.slane %v4569, %v4582
    %v4584 = vcombine.low %v4528, %v4544
    %v4585 = vcombine.high %v4528, %v4544
    %v4587 = vunpack.c.l.s4 1934713408
    %v4588 = vunpack.c.0.s8 %v4587
    %v4589 = vlaneseq
    %v4590 = vshrl.u32 %v4589, 7
    %v4591 = vsub.s32 %v4588, %v4590
    %v4592 = vrot.slane %v4584, %v4591
    %v4594 = vunpack.c.l.s4 1934713408
    %v4595 = vunpack.c.0.s8 %v4594
    %v4596 = vlaneseq
    %v4597 = vshrl.u32 %v4596, 7
    %v4598 = vsub.s32 %v4595, %v4597
    %v4599 = vrot.slane %v4585, %v4598
    %v4600 = vcombine.low %v4535, %v4551
    %v4601 = vcombine.high %v4535, %v4551
    %v4603 = vunpack.c.l.s4 1934713408
    %v4604 = vunpack.c.0.s8 %v4603
    %v4605 = vlaneseq
    %v4606 = vshrl.u32 %v4605, 7
    %v4607 = vsub.s32 %v4604, %v4606
    %v4608 = vrot.slane %v4600, %v4607
    %v4610 = vunpack.c.l.s4 1934713408
    %v4611 = vunpack.c.0.s8 %v4610
    %v4612 = vlaneseq
    %v4613 = vshrl.u32 %v4612, 7
    %v4614 = vsub.s32 %v4611, %v4613
    %v4615 = vrot.slane %v4601, %v4614
    %v4616 = vcombine.low %v4560, %v4576
    %v4617 = vcombine.high %v4560, %v4576
    %v4619 = vunpack.c.l.s4 1934713408
    %v4620 = vunpack.c.0.s8 %v4619
    %v4621 = vlaneseq
    %v4622 = vshrl.u32 %v4621, 7
    %v4623 = vsub.s32 %v4620, %v4622
    %v4624 = vrot.slane %v4616, %v4623
    %v4626 = vunpack.c.l.s4 1934713408
    %v4627 = vunpack.c.0.s8 %v4626
    %v4628 = vlaneseq
    %v4629 = vshrl.u32 %v4628, 7
    %v4630 = vsub.s32 %v4627, %v4629
    %v4631 = vrot.slane %v4617, %v4630
    %v4632 = vcombine.low %v4567, %v4583
    %v4633 = vcombine.high %v4567, %v4583
    %v4635 = vunpack.c.l.s4 1934713408
    %v4636 = vunpack.c.0.s8 %v4635
    %v4637 = vlaneseq
    %v4638 = vshrl.u32 %v4637, 7
    %v4639 = vsub.s32 %v4636, %v4638
    %v4640 = vrot.slane %v4632, %v4639
    %v4642 = vunpack.c.l.s4 1934713408
    %v4643 = vunpack.c.0.s8 %v4642
    %v4644 = vlaneseq
    %v4645 = vshrl.u32 %v4644, 7
    %v4646 = vsub.s32 %v4643, %v4645
    %v4647 = vrot.slane %v4633, %v4646
    %v4648 = vcombine.low %v4592, %v4624
    %v4649 = vcombine.high %v4592, %v4624
    %v4650 = vcombine.low %v4599, %v4631
    %v4651 = vcombine.high %v4599, %v4631
    %v4652 = vcombine.low %v4608, %v4640
    %v4653 = vcombine.high %v4608, %v4640
    %v4654 = vcombine.low %v4615, %v4647
    %v4655 = vcombine.high %v4615, %v4647
    %v4656 = vcombine.low %v2232, %v2264
    %v4657 = vcombine.high %v2232, %v2264
    %v4659 = vunpack.c.l.s4 1983009808
    %v4660 = vunpack.c.0.s8 %v4659
    %v4661 = vlaneseq
    %v4662 = vshrl.u32 %v4661, 7
    %v4663 = vsub.s32 %v4660, %v4662
    %v4664 = vrot.slane %v4656, %v4663
    %v4666 = vunpack.c.l.s4 1983009808
    %v4667 = vunpack.c.0.s8 %v4666
    %v4668 = vlaneseq
    %v4669 = vshrl.u32 %v4668, 7
    %v4670 = vsub.s32 %v4667, %v4669
    %v4671 = vrot.slane %v4657, %v4670
    %v4672 = vcombine.low %v2248, %v2280
    %v4673 = vcombine.high %v2248, %v2280
    %v4675 = vunpack.c.l.s4 1983009808
    %v4676 = vunpack.c.0.s8 %v4675
    %v4677 = vlaneseq
    %v4678 = vshrl.u32 %v4677, 7
    %v4679 = vsub.s32 %v4676, %v4678
    %v4680 = vrot.slane %v4672, %v4679
    %v4682 = vunpack.c.l.s4 1983009808
    %v4683 = vunpack.c.0.s8 %v4682
    %v4684 = vlaneseq
    %v4685 = vshrl.u32 %v4684, 7
    %v4686 = vsub.s32 %v4683, %v4685
    %v4687 = vrot.slane %v4673, %v4686
    %v4688 = vcombine.low %v2296, %v2328
    %v4689 = vcombine.high %v2296, %v2328
    %v4691 = vunpack.c.l.s4 1983009808
    %v4692 = vunpack.c.0.s8 %v4691
    %v4693 = vlaneseq
    %v4694 = vshrl.u32 %v4693, 7
    %v4695 = vsub.s32 %v4692, %v4694
    %v4696 = vrot.slane %v4688, %v4695
    %v4698 = vunpack.c.l.s4 1983009808
    %v4699 = vunpack.c.0.s8 %v4698
    %v4700 = vlaneseq
    %v4701 = vshrl.u32 %v4700, 7
    %v4702 = vsub.s32 %v4699, %v4701
    %v4703 = vrot.slane %v4689, %v4702
    %v4704 = vcombine.low %v2312, %v2344
    %v4705 = vcombine.high %v2312, %v2344
    %v4707 = vunpack.c.l.s4 1983009808
    %v4708 = vunpack.c.0.s8 %v4707
    %v4709 = vlaneseq
    %v4710 = vshrl.u32 %v4709, 7
    %v4711 = vsub.s32 %v4708, %v4710
    %v4712 = vrot.slane %v4704, %v4711
    %v4714 = vunpack.c.l.s4 1983009808
    %v4715 = vunpack.c.0.s8 %v4714
    %v4716 = vlaneseq
    %v4717 = vshrl.u32 %v4716, 7
    %v4718 = vsub.s32 %v4715, %v4717
    %v4719 = vrot.slane %v4705, %v4718
    %v4720 = vcombine.low %v4664, %v4680
    %v4721 = vcombine.high %v4664, %v4680
    %v4723 = vunpack.c.l.s4 1934713408
    %v4724 = vunpack.c.0.s8 %v4723
    %v4725 = vlaneseq
    %v4726 = vshrl.u32 %v4725, 7
    %v4727 = vsub.s32 %v4724, %v4726
    %v4728 = vrot.slane %v4720, %v4727
    %v4730 = vunpack.c.l.s4 1934713408
    %v4731 = vunpack.c.0.s8 %v4730
    %v4732 = vlaneseq
    %v4733 = vshrl.u32 %v4732, 7
    %v4734 = vsub.s32 %v4731, %v4733
    %v4735 = vrot.slane %v4721, %v4734
    %v4736 = vcombine.low %v4671, %v4687
    %v4737 = vcombine.high %v4671, %v4687
    %v4739 = vunpack.c.l.s4 1934713408
    %v4740 = vunpack.c.0.s8 %v4739
    %v4741 = vlaneseq
    %v4742 = vshrl.u32 %v4741, 7
    %v4743 = vsub.s32 %v4740, %v4742
    %v4744 = vrot.slane %v4736, %v4743
    %v4746 = vunpack.c.l.s4 1934713408
    %v4747 = vunpack.c.0.s8 %v4746
    %v4748 = vlaneseq
    %v4749 = vshrl.u32 %v4748, 7
    %v4750 = vsub.s32 %v4747, %v4749
    %v4751 = vrot.slane %v4737, %v4750
    %v4752 = vcombine.low %v4696, %v4712
    %v4753 = vcombine.high %v4696, %v4712
    %v4755 = vunpack.c.l.s4 1934713408
    %v4756 = vunpack.c.0.s8 %v4755
    %v4757 = vlaneseq
    %v4758 = vshrl.u32 %v4757, 7
    %v4759 = vsub.s32 %v4756, %v4758
    %v4760 = vrot.slane %v4752, %v4759
    %v4762 = vunpack.c.l.s4 1934713408
    %v4763 = vunpack.c.0.s8 %v4762
    %v4764 = vlaneseq
    %v4765 = vshrl.u32 %v4764, 7
    %v4766 = vsub.s32 %v4763, %v4765
    %v4767 = vrot.slane %v4753, %v4766
    %v4768 = vcombine.low %v4703, %v4719
    %v4769 = vcombine.high %v4703, %v4719
    %v4771 = vunpack.c.l.s4 1934713408
    %v4772 = vunpack.c.0.s8 %v4771
    %v4773 = vlaneseq
    %v4774 = vshrl.u32 %v4773, 7
    %v4775 = vsub.s32 %v4772, %v4774
    %v4776 = vrot.slane %v4768, %v4775
    %v4778 = vunpack.c.l.s4 1934713408
    %v4779 = vunpack.c.0.s8 %v4778
    %v4780 = vlaneseq
    %v4781 = vshrl.u32 %v4780, 7
    %v4782 = vsub.s32 %v4779, %v4781
    %v4783 = vrot.slane %v4769, %v4782
    %v4784 = vcombine.low %v4728, %v4760
    %v4785 = vcombine.high %v4728, %v4760
    %v4786 = vcombine.low %v4735, %v4767
    %v4787 = vcombine.high %v4735, %v4767
    %v4788 = vcombine.low %v4744, %v4776
    %v4789 = vcombine.high %v4744, %v4776
    %v4790 = vcombine.low %v4751, %v4783
    %v4791 = vcombine.high %v4751, %v4783
    %v4792 = vcombine.low %v2360, %v2392
    %v4793 = vcombine.high %v2360, %v2392
    %v4795 = vunpack.c.l.s4 1983009808
    %v4796 = vunpack.c.0.s8 %v4795
    %v4797 = vlaneseq
    %v4798 = vshrl.u32 %v4797, 7
    %v4799 = vsub.s32 %v4796, %v4798
    %v4800 = vrot.slane %v4792, %v4799
    %v4802 = vunpack.c.l.s4 1983009808
    %v4803 = vunpack.c.0.s8 %v4802
    %v4804 = vlaneseq
    %v4805 = vshrl.u32 %v4804, 7
    %v4806 = vsub.s32 %v4803, %v4805
    %v4807 = vrot.slane %v4793, %v4806
    %v4808 = vcombine.low %v2376, %v2408
    %v4809 = vcombine.high %v2376, %v2408
    %v4811 = vunpack.c.l.s4 1983009808
    %v4812 = vunpack.c.0.s8 %v4811
    %v4813 = vlaneseq
    %v4814 = vshrl.u32 %v4813, 7
    %v4815 = vsub.s32 %v4812, %v4814
    %v4816 = vrot.slane %v4808, %v4815
    %v4818 = vunpack.c.l.s4 1983009808
    %v4819 = vunpack.c.0.s8 %v4818
    %v4820 = vlaneseq
    %v4821 = vshrl.u32 %v4820, 7
    %v4822 = vsub.s32 %v4819, %v4821
    %v4823 = vrot.slane %v4809, %v4822
    %v4824 = vcombine.low %v2424, %v2456
    %v4825 = vcombine.high %v2424, %v2456
    %v4827 = vunpack.c.l.s4 1983009808
    %v4828 = vunpack.c.0.s8 %v4827
    %v4829 = vlaneseq
    %v4830 = vshrl.u32 %v4829, 7
    %v4831 = vsub.s32 %v4828, %v4830
    %v4832 = vrot.slane %v4824, %v4831
    %v4834 = vunpack.c.l.s4 1983009808
    %v4835 = vunpack.c.0.s8 %v4834
    %v4836 = vlaneseq
    %v4837 = vshrl.u32 %v4836, 7
    %v4838 = vsub.s32 %v4835, %v4837
    %v4839 = vrot.slane %v4825, %v4838
    %v4840 = vcombine.low %v2440, %v2472
    %v4841 = vcombine.high %v2440, %v2472
    %v4843 = vunpack.c.l.s4 1983009808
    %v4844 = vunpack.c.0.s8 %v4843
    %v4845 = vlaneseq
    %v4846 = vshrl.u32 %v4845, 7
    %v4847 = vsub.s32 %v4844, %v4846
    %v4848 = vrot.slane %v4840, %v4847
    %v4850 = vunpack.c.l.s4 1983009808
    %v4851 = vunpack.c.0.s8 %v4850
    %v4852 = vlaneseq
    %v4853 = vshrl.u32 %v4852, 7
    %v4854 = vsub.s32 %v4851, %v4853
    %v4855 = vrot.slane %v4841, %v4854
    %v4856 = vcombine.low %v4800, %v4816
    %v4857 = vcombine.high %v4800, %v4816
    %v4859 = vunpack.c.l.s4 1934713408
    %v4860 = vunpack.c.0.s8 %v4859
    %v4861 = vlaneseq
    %v4862 = vshrl.u32 %v4861, 7
    %v4863 = vsub.s32 %v4860, %v4862
    %v4864 = vrot.slane %v4856, %v4863
    %v4866 = vunpack.c.l.s4 1934713408
    %v4867 = vunpack.c.0.s8 %v4866
    %v4868 = vlaneseq
    %v4869 = vshrl.u32 %v4868, 7
    %v4870 = vsub.s32 %v4867, %v4869
    %v4871 = vrot.slane %v4857, %v4870
    %v4872 = vcombine.low %v4807, %v4823
    %v4873 = vcombine.high %v4807, %v4823
    %v4875 = vunpack.c.l.s4 1934713408
    %v4876 = vunpack.c.0.s8 %v4875
    %v4877 = vlaneseq
    %v4878 = vshrl.u32 %v4877, 7
    %v4879 = vsub.s32 %v4876, %v4878
    %v4880 = vrot.slane %v4872, %v4879
    %v4882 = vunpack.c.l.s4 1934713408
    %v4883 = vunpack.c.0.s8 %v4882
    %v4884 = vlaneseq
    %v4885 = vshrl.u32 %v4884, 7
    %v4886 = vsub.s32 %v4883, %v4885
    %v4887 = vrot.slane %v4873, %v4886
    %v4888 = vcombine.low %v4832, %v4848
    %v4889 = vcombine.high %v4832, %v4848
    %v4891 = vunpack.c.l.s4 1934713408
    %v4892 = vunpack.c.0.s8 %v4891
    %v4893 = vlaneseq
    %v4894 = vshrl.u32 %v4893, 7
    %v4895 = vsub.s32 %v4892, %v4894
    %v4896 = vrot.slane %v4888, %v4895
    %v4898 = vunpack.c.l.s4 1934713408
    %v4899 = vunpack.c.0.s8 %v4898
    %v4900 = vlaneseq
    %v4901 = vshrl.u32 %v4900, 7
    %v4902 = vsub.s32 %v4899, %v4901
    %v4903 = vrot.slane %v4889, %v4902
    %v4904 = vcombine.low %v4839, %v4855
    %v4905 = vcombine.high %v4839, %v4855
    %v4907 = vunpack.c.l.s4 1934713408
    %v4908 = vunpack.c.0.s8 %v4907
    %v4909 = vlaneseq
    %v4910 = vshrl.u32 %v4909, 7
    %v4911 = vsub.s32 %v4908, %v4910
    %v4912 = vrot.slane %v4904, %v4911
    %v4914 = vunpack.c.l.s4 1934713408
    %v4915 = vunpack.c.0.s8 %v4914
    %v4916 = vlaneseq
    %v4917 = vshrl.u32 %v4916, 7
    %v4918 = vsub.s32 %v4915, %v4917
    %v4919 = vrot.slane %v4905, %v4918
    %v4920 = vcombine.low %v4864, %v4896
    %v4921 = vcombine.high %v4864, %v4896
    %v4922 = vcombine.low %v4871, %v4903
    %v4923 = vcombine.high %v4871, %v4903
    %v4924 = vcombine.low %v4880, %v4912
    %v4925 = vcombine.high %v4880, %v4912
    %v4926 = vcombine.low %v4887, %v4919
    %v4927 = vcombine.high %v4887, %v4919
    %v4928 = vcombine.low %v2233, %v2265
    %v4929 = vcombine.high %v2233, %v2265
    %v4931 = vunpack.c.l.s4 1983009808
    %v4932 = vunpack.c.0.s8 %v4931
    %v4933 = vlaneseq
    %v4934 = vshrl.u32 %v4933, 7
    %v4935 = vsub.s32 %v4932, %v4934
    %v4936 = vrot.slane %v4928, %v4935
    %v4938 = vunpack.c.l.s4 1983009808
    %v4939 = vunpack.c.0.s8 %v4938
    %v4940 = vlaneseq
    %v4941 = vshrl.u32 %v4940, 7
    %v4942 = vsub.s32 %v4939, %v4941
    %v4943 = vrot.slane %v4929, %v4942
    %v4944 = vcombine.low %v2249, %v2281
    %v4945 = vcombine.high %v2249, %v2281
    %v4947 = vunpack.c.l.s4 1983009808
    %v4948 = vunpack.c.0.s8 %v4947
    %v4949 = vlaneseq
    %v4950 = vshrl.u32 %v4949, 7
    %v4951 = vsub.s32 %v4948, %v4950
    %v4952 = vrot.slane %v4944, %v4951
    %v4954 = vunpack.c.l.s4 1983009808
    %v4955 = vunpack.c.0.s8 %v4954
    %v4956 = vlaneseq
    %v4957 = vshrl.u32 %v4956, 7
    %v4958 = vsub.s32 %v4955, %v4957
    %v4959 = vrot.slane %v4945, %v4958
    %v4960 = vcombine.low %v2297, %v2329
    %v4961 = vcombine.high %v2297, %v2329
    %v4963 = vunpack.c.l.s4 1983009808
    %v4964 = vunpack.c.0.s8 %v4963
    %v4965 = vlaneseq
    %v4966 = vshrl.u32 %v4965, 7
    %v4967 = vsub.s32 %v4964, %v4966
    %v4968 = vrot.slane %v4960, %v4967
    %v4970 = vunpack.c.l.s4 1983009808
    %v4971 = vunpack.c.0.s8 %v4970
    %v4972 = vlaneseq
    %v4973 = vshrl.u32 %v4972, 7
    %v4974 = vsub.s32 %v4971, %v4973
    %v4975 = vrot.slane %v4961, %v4974
    %v4976 = vcombine.low %v2313, %v2345
    %v4977 = vcombine.high %v2313, %v2345
    %v4979 = vunpack.c.l.s4 1983009808
    %v4980 = vunpack.c.0.s8 %v4979
    %v4981 = vlaneseq
    %v4982 = vshrl.u32 %v4981, 7
    %v4983 = vsub.s32 %v4980, %v4982
    %v4984 = vrot.slane %v4976, %v4983
    %v4986 = vunpack.c.l.s4 1983009808
    %v4987 = vunpack.c.0.s8 %v4986
    %v4988 = vlaneseq
    %v4989 = vshrl.u32 %v4988, 7
    %v4990 = vsub.s32 %v4987, %v4989
    %v4991 = vrot.slane %v4977, %v4990
    %v4992 = vcombine.low %v4936, %v4952
    %v4993 = vcombine.high %v4936, %v4952
    %v4995 = vunpack.c.l.s4 1934713408
    %v4996 = vunpack.c.0.s8 %v4995
    %v4997 = vlaneseq
    %v4998 = vshrl.u32 %v4997, 7
    %v4999 = vsub.s32 %v4996, %v4998
    %v5000 = vrot.slane %v4992, %v4999
    %v5002 = vunpack.c.l.s4 1934713408
    %v5003 = vunpack.c.0.s8 %v5002
    %v5004 = vlaneseq
    %v5005 = vshrl.u32 %v5004, 7
    %v5006 = vsub.s32 %v5003, %v5005
    %v5007 = vrot.slane %v4993, %v5006
    %v5008 = vcombine.low %v4943, %v4959
    %v5009 = vcombine.high %v4943, %v4959
    %v5011 = vunpack.c.l.s4 1934713408
    %v5012 = vunpack.c.0.s8 %v5011
    %v5013 = vlaneseq
    %v5014 = vshrl.u32 %v5013, 7
    %v5015 = vsub.s32 %v5012, %v5014
    %v5016 = vrot.slane %v5008, %v5015
    %v5018 = vunpack.c.l.s4 1934713408
    %v5019 = vunpack.c.0.s8 %v5018
    %v5020 = vlaneseq
    %v5021 = vshrl.u32 %v5020, 7
    %v5022 = vsub.s32 %v5019, %v5021
    %v5023 = vrot.slane %v5009, %v5022
    %v5024 = vcombine.low %v4968, %v4984
    %v5025 = vcombine.high %v4968, %v4984
    %v5027 = vunpack.c.l.s4 1934713408
    %v5028 = vunpack.c.0.s8 %v5027
    %v5029 = vlaneseq
    %v5030 = vshrl.u32 %v5029, 7
    %v5031 = vsub.s32 %v5028, %v5030
    %v5032 = vrot.slane %v5024, %v5031
    %v5034 = vunpack.c.l.s4 1934713408
    %v5035 = vunpack.c.0.s8 %v5034
    %v5036 = vlaneseq
    %v5037 = vshrl.u32 %v5036, 7
    %v5038 = vsub.s32 %v5035, %v5037
    %v5039 = vrot.slane %v5025, %v5038
    %v5040 = vcombine.low %v4975, %v4991
    %v5041 = vcombine.high %v4975, %v4991
    %v5043 = vunpack.c.l.s4 1934713408
    %v5044 = vunpack.c.0.s8 %v5043
    %v5045 = vlaneseq
    %v5046 = vshrl.u32 %v5045, 7
    %v5047 = vsub.s32 %v5044, %v5046
    %v5048 = vrot.slane %v5040, %v5047
    %v5050 = vunpack.c.l.s4 1934713408
    %v5051 = vunpack.c.0.s8 %v5050
    %v5052 = vlaneseq
    %v5053 = vshrl.u32 %v5052, 7
    %v5054 = vsub.s32 %v5051, %v5053
    %v5055 = vrot.slane %v5041, %v5054
    %v5056 = vcombine.low %v5000, %v5032
    %v5057 = vcombine.high %v5000, %v5032
    %v5058 = vcombine.low %v5007, %v5039
    %v5059 = vcombine.high %v5007, %v5039
    %v5060 = vcombine.low %v5016, %v5048
    %v5061 = vcombine.high %v5016, %v5048
    %v5062 = vcombine.low %v5023, %v5055
    %v5063 = vcombine.high %v5023, %v5055
    %v5064 = vcombine.low %v2361, %v2393
    %v5065 = vcombine.high %v2361, %v2393
    %v5067 = vunpack.c.l.s4 1983009808
    %v5068 = vunpack.c.0.s8 %v5067
    %v5069 = vlaneseq
    %v5070 = vshrl.u32 %v5069, 7
    %v5071 = vsub.s32 %v5068, %v5070
    %v5072 = vrot.slane %v5064, %v5071
    %v5074 = vunpack.c.l.s4 1983009808
    %v5075 = vunpack.c.0.s8 %v5074
    %v5076 = vlaneseq
    %v5077 = vshrl.u32 %v5076, 7
    %v5078 = vsub.s32 %v5075, %v5077
    %v5079 = vrot.slane %v5065, %v5078
    %v5080 = vcombine.low %v2377, %v2409
    %v5081 = vcombine.high %v2377, %v2409
    %v5083 = vunpack.c.l.s4 1983009808
    %v5084 = vunpack.c.0.s8 %v5083
    %v5085 = vlaneseq
    %v5086 = vshrl.u32 %v5085, 7
    %v5087 = vsub.s32 %v5084, %v5086
    %v5088 = vrot.slane %v5080, %v5087
    %v5090 = vunpack.c.l.s4 1983009808
    %v5091 = vunpack.c.0.s8 %v5090
    %v5092 = vlaneseq
    %v5093 = vshrl.u32 %v5092, 7
    %v5094 = vsub.s32 %v5091, %v5093
    %v5095 = vrot.slane %v5081, %v5094
    %v5096 = vcombine.low %v2425, %v2457
    %v5097 = vcombine.high %v2425, %v2457
    %v5099 = vunpack.c.l.s4 1983009808
    %v5100 = vunpack.c.0.s8 %v5099
    %v5101 = vlaneseq
    %v5102 = vshrl.u32 %v5101, 7
    %v5103 = vsub.s32 %v5100, %v5102
    %v5104 = vrot.slane %v5096, %v5103
    %v5106 = vunpack.c.l.s4 1983009808
    %v5107 = vunpack.c.0.s8 %v5106
    %v5108 = vlaneseq
    %v5109 = vshrl.u32 %v5108, 7
    %v5110 = vsub.s32 %v5107, %v5109
    %v5111 = vrot.slane %v5097, %v5110
    %v5112 = vcombine.low %v2441, %v2473
    %v5113 = vcombine.high %v2441, %v2473
    %v5115 = vunpack.c.l.s4 1983009808
    %v5116 = vunpack.c.0.s8 %v5115
    %v5117 = vlaneseq
    %v5118 = vshrl.u32 %v5117, 7
    %v5119 = vsub.s32 %v5116, %v5118
    %v5120 = vrot.slane %v5112, %v5119
    %v5122 = vunpack.c.l.s4 1983009808
    %v5123 = vunpack.c.0.s8 %v5122
    %v5124 = vlaneseq
    %v5125 = vshrl.u32 %v5124, 7
    %v5126 = vsub.s32 %v5123, %v5125
    %v5127 = vrot.slane %v5113, %v5126
    %v5128 = vcombine.low %v5072, %v5088
    %v5129 = vcombine.high %v5072, %v5088
    %v5131 = vunpack.c.l.s4 1934713408
    %v5132 = vunpack.c.0.s8 %v5131
    %v5133 = vlaneseq
    %v5134 = vshrl.u32 %v5133, 7
    %v5135 = vsub.s32 %v5132, %v5134
    %v5136 = vrot.slane %v5128, %v5135
    %v5138 = vunpack.c.l.s4 1934713408
    %v5139 = vunpack.c.0.s8 %v5138
    %v5140 = vlaneseq
    %v5141 = vshrl.u32 %v5140, 7
    %v5142 = vsub.s32 %v5139, %v5141
    %v5143 = vrot.slane %v5129, %v5142
    %v5144 = vcombine.low %v5079, %v5095
    %v5145 = vcombine.high %v5079, %v5095
    %v5147 = vunpack.c.l.s4 1934713408
    %v5148 = vunpack.c.0.s8 %v5147
    %v5149 = vlaneseq
    %v5150 = vshrl.u32 %v5149, 7
    %v5151 = vsub.s32 %v5148, %v5150
    %v5152 = vrot.slane %v5144, %v5151
    %v5154 = vunpack.c.l.s4 1934713408
    %v5155 = vunpack.c.0.s8 %v5154
    %v5156 = vlaneseq
    %v5157 = vshrl.u32 %v5156, 7
    %v5158 = vsub.s32 %v5155, %v5157
    %v5159 = vrot.slane %v5145, %v5158
    %v5160 = vcombine.low %v5104, %v5120
    %v5161 = vcombine.high %v5104, %v5120
    %v5163 = vunpack.c.l.s4 1934713408
    %v5164 = vunpack.c.0.s8 %v5163
    %v5165 = vlaneseq
    %v5166 = vshrl.u32 %v5165, 7
    %v5167 = vsub.s32 %v5164, %v5166
    %v5168 = vrot.slane %v5160, %v5167
    %v5170 = vunpack.c.l.s4 1934713408
    %v5171 = vunpack.c.0.s8 %v5170
    %v5172 = vlaneseq
    %v5173 = vshrl.u32 %v5172, 7
    %v5174 = vsub.s32 %v5171, %v5173
    %v5175 = vrot.slane %v5161, %v5174
    %v5176 = vcombine.low %v5111, %v5127
    %v5177 = vcombine.high %v5111, %v5127
    %v5179 = vunpack.c.l.s4 1934713408
    %v5180 = vunpack.c.0.s8 %v5179
    %v5181 = vlaneseq
    %v5182 = vshrl.u32 %v5181, 7
    %v5183 = vsub.s32 %v5180, %v5182
    %v5184 = vrot.slane %v5176, %v5183
    %v5186 = vunpack.c.l.s4 1934713408
    %v5187 = vunpack.c.0.s8 %v5186
    %v5188 = vlaneseq
    %v5189 = vshrl.u32 %v5188, 7
    %v5190 = vsub.s32 %v5187, %v5189
    %v5191 = vrot.slane %v5177, %v5190
    %v5192 = vcombine.low %v5136, %v5168
    %v5193 = vcombine.high %v5136, %v5168
    %v5194 = vcombine.low %v5143, %v5175
    %v5195 = vcombine.high %v5143, %v5175
    %v5196 = vcombine.low %v5152, %v5184
    %v5197 = vcombine.high %v5152, %v5184
    %v5198 = vcombine.low %v5159, %v5191
    %v5199 = vcombine.high %v5159, %v5191
    %v5200 = vcombine.low %v2234, %v2266
    %v5201 = vcombine.high %v2234, %v2266
    %v5203 = vunpack.c.l.s4 1983009808
    %v5204 = vunpack.c.0.s8 %v5203
    %v5205 = vlaneseq
    %v5206 = vshrl.u32 %v5205, 7
    %v5207 = vsub.s32 %v5204, %v5206
    %v5208 = vrot.slane %v5200, %v5207
    %v5210 = vunpack.c.l.s4 1983009808
    %v5211 = vunpack.c.0.s8 %v5210
    %v5212 = vlaneseq
    %v5213 = vshrl.u32 %v5212, 7
    %v5214 = vsub.s32 %v5211, %v5213
    %v5215 = vrot.slane %v5201, %v5214
    %v5216 = vcombine.low %v2250, %v2282
    %v5217 = vcombine.high %v2250, %v2282
    %v5219 = vunpack.c.l.s4 1983009808
    %v5220 = vunpack.c.0.s8 %v5219
    %v5221 = vlaneseq
    %v5222 = vshrl.u32 %v5221, 7
    %v5223 = vsub.s32 %v5220, %v5222
    %v5224 = vrot.slane %v5216, %v5223
    %v5226 = vunpack.c.l.s4 1983009808
    %v5227 = vunpack.c.0.s8 %v5226
    %v5228 = vlaneseq
    %v5229 = vshrl.u32 %v5228, 7
    %v5230 = vsub.s32 %v5227, %v5229
    %v5231 = vrot.slane %v5217, %v5230
    %v5232 = vcombine.low %v2298, %v2330
    %v5233 = vcombine.high %v2298, %v2330
    %v5235 = vunpack.c.l.s4 1983009808
    %v5236 = vunpack.c.0.s8 %v5235
    %v5237 = vlaneseq
    %v5238 = vshrl.u32 %v5237, 7
    %v5239 = vsub.s32 %v5236, %v5238
    %v5240 = vrot.slane %v5232, %v5239
    %v5242 = vunpack.c.l.s4 1983009808
    %v5243 = vunpack.c.0.s8 %v5242
    %v5244 = vlaneseq
    %v5245 = vshrl.u32 %v5244, 7
    %v5246 = vsub.s32 %v5243, %v5245
    %v5247 = vrot.slane %v5233, %v5246
    %v5248 = vcombine.low %v2314, %v2346
    %v5249 = vcombine.high %v2314, %v2346
    %v5251 = vunpack.c.l.s4 1983009808
    %v5252 = vunpack.c.0.s8 %v5251
    %v5253 = vlaneseq
    %v5254 = vshrl.u32 %v5253, 7
    %v5255 = vsub.s32 %v5252, %v5254
    %v5256 = vrot.slane %v5248, %v5255
    %v5258 = vunpack.c.l.s4 1983009808
    %v5259 = vunpack.c.0.s8 %v5258
    %v5260 = vlaneseq
    %v5261 = vshrl.u32 %v5260, 7
    %v5262 = vsub.s32 %v5259, %v5261
    %v5263 = vrot.slane %v5249, %v5262
    %v5264 = vcombine.low %v5208, %v5224
    %v5265 = vcombine.high %v5208, %v5224
    %v5267 = vunpack.c.l.s4 1934713408
    %v5268 = vunpack.c.0.s8 %v5267
    %v5269 = vlaneseq
    %v5270 = vshrl.u32 %v5269, 7
    %v5271 = vsub.s32 %v5268, %v5270
    %v5272 = vrot.slane %v5264, %v5271
    %v5274 = vunpack.c.l.s4 1934713408
    %v5275 = vunpack.c.0.s8 %v5274
    %v5276 = vlaneseq
    %v5277 = vshrl.u32 %v5276, 7
    %v5278 = vsub.s32 %v5275, %v5277
    %v5279 = vrot.slane %v5265, %v5278
    %v5280 = vcombine.low %v5215, %v5231
    %v5281 = vcombine.high %v5215, %v5231
    %v5283 = vunpack.c.l.s4 1934713408
    %v5284 = vunpack.c.0.s8 %v5283
    %v5285 = vlaneseq
    %v5286 = vshrl.u32 %v5285, 7
    %v5287 = vsub.s32 %v5284, %v5286
    %v5288 = vrot.slane %v5280, %v5287
    %v5290 = vunpack.c.l.s4 1934713408
    %v5291 = vunpack.c.0.s8 %v5290
    %v5292 = vlaneseq
    %v5293 = vshrl.u32 %v5292, 7
    %v5294 = vsub.s32 %v5291, %v5293
    %v5295 = vrot.slane %v5281, %v5294
    %v5296 = vcombine.low %v5240, %v5256
    %v5297 = vcombine.high %v5240, %v5256
    %v5299 = vunpack.c.l.s4 1934713408
    %v5300 = vunpack.c.0.s8 %v5299
    %v5301 = vlaneseq
    %v5302 = vshrl.u32 %v5301, 7
    %v5303 = vsub.s32 %v5300, %v5302
    %v5304 = vrot.slane %v5296, %v5303
    %v5306 = vunpack.c.l.s4 1934713408
    %v5307 = vunpack.c.0.s8 %v5306
    %v5308 = vlaneseq
    %v5309 = vshrl.u32 %v5308, 7
    %v5310 = vsub.s32 %v5307, %v5309
    %v5311 = vrot.slane %v5297, %v5310
    %v5312 = vcombine.low %v5247, %v5263
    %v5313 = vcombine.high %v5247, %v5263
    %v5315 = vunpack.c.l.s4 1934713408
    %v5316 = vunpack.c.0.s8 %v5315
    %v5317 = vlaneseq
    %v5318 = vshrl.u32 %v5317, 7
    %v5319 = vsub.s32 %v5316, %v5318
    %v5320 = vrot.slane %v5312, %v5319
    %v5322 = vunpack.c.l.s4 1934713408
    %v5323 = vunpack.c.0.s8 %v5322
    %v5324 = vlaneseq
    %v5325 = vshrl.u32 %v5324, 7
    %v5326 = vsub.s32 %v5323, %v5325
    %v5327 = vrot.slane %v5313, %v5326
    %v5328 = vcombine.low %v5272, %v5304
    %v5329 = vcombine.high %v5272, %v5304
    %v5330 = vcombine.low %v5279, %v5311
    %v5331 = vcombine.high %v5279, %v5311
    %v5332 = vcombine.low %v5288, %v5320
    %v5333 = vcombine.high %v5288, %v5320
    %v5334 = vcombine.low %v5295, %v5327
    %v5335 = vcombine.high %v5295, %v5327
    %v5336 = vcombine.low %v2362, %v2394
    %v5337 = vcombine.high %v2362, %v2394
    %v5339 = vunpack.c.l.s4 1983009808
    %v5340 = vunpack.c.0.s8 %v5339
    %v5341 = vlaneseq
    %v5342 = vshrl.u32 %v5341, 7
    %v5343 = vsub.s32 %v5340, %v5342
    %v5344 = vrot.slane %v5336, %v5343
    %v5346 = vunpack.c.l.s4 1983009808
    %v5347 = vunpack.c.0.s8 %v5346
    %v5348 = vlaneseq
    %v5349 = vshrl.u32 %v5348, 7
    %v5350 = vsub.s32 %v5347, %v5349
    %v5351 = vrot.slane %v5337, %v5350
    %v5352 = vcombine.low %v2378, %v2410
    %v5353 = vcombine.high %v2378, %v2410
    %v5355 = vunpack.c.l.s4 1983009808
    %v5356 = vunpack.c.0.s8 %v5355
    %v5357 = vlaneseq
    %v5358 = vshrl.u32 %v5357, 7
    %v5359 = vsub.s32 %v5356, %v5358
    %v5360 = vrot.slane %v5352, %v5359
    %v5362 = vunpack.c.l.s4 1983009808
    %v5363 = vunpack.c.0.s8 %v5362
    %v5364 = vlaneseq
    %v5365 = vshrl.u32 %v5364, 7
    %v5366 = vsub.s32 %v5363, %v5365
    %v5367 = vrot.slane %v5353, %v5366
    %v5368 = vcombine.low %v2426, %v2458
    %v5369 = vcombine.high %v2426, %v2458
    %v5371 = vunpack.c.l.s4 1983009808
    %v5372 = vunpack.c.0.s8 %v5371
    %v5373 = vlaneseq
    %v5374 = vshrl.u32 %v5373, 7
    %v5375 = vsub.s32 %v5372, %v5374
    %v5376 = vrot.slane %v5368, %v5375
    %v5378 = vunpack.c.l.s4 1983009808
    %v5379 = vunpack.c.0.s8 %v5378
    %v5380 = vlaneseq
    %v5381 = vshrl.u32 %v5380, 7
    %v5382 = vsub.s32 %v5379, %v5381
    %v5383 = vrot.slane %v5369, %v5382
    %v5384 = vcombine.low %v2442, %v2474
    %v5385 = vcombine.high %v2442, %v2474
    %v5387 = vunpack.c.l.s4 1983009808
    %v5388 = vunpack.c.0.s8 %v5387
    %v5389 = vlaneseq
    %v5390 = vshrl.u32 %v5389, 7
    %v5391 = vsub.s32 %v5388, %v5390
    %v5392 = vrot.slane %v5384, %v5391
    %v5394 = vunpack.c.l.s4 1983009808
    %v5395 = vunpack.c.0.s8 %v5394
    %v5396 = vlaneseq
    %v5397 = vshrl.u32 %v5396, 7
    %v5398 = vsub.s32 %v5395, %v5397
    %v5399 = vrot.slane %v5385, %v5398
    %v5400 = vcombine.low %v5344, %v5360
    %v5401 = vcombine.high %v5344, %v5360
    %v5403 = vunpack.c.l.s4 1934713408
    %v5404 = vunpack.c.0.s8 %v5403
    %v5405 = vlaneseq
    %v5406 = vshrl.u32 %v5405, 7
    %v5407 = vsub.s32 %v5404, %v5406
    %v5408 = vrot.slane %v5400, %v5407
    %v5410 = vunpack.c.l.s4 1934713408
    %v5411 = vunpack.c.0.s8 %v5410
    %v5412 = vlaneseq
    %v5413 = vshrl.u32 %v5412, 7
    %v5414 = vsub.s32 %v5411, %v5413
    %v5415 = vrot.slane %v5401, %v5414
    %v5416 = vcombine.low %v5351, %v5367
    %v5417 = vcombine.high %v5351, %v5367
    %v5419 = vunpack.c.l.s4 1934713408
    %v5420 = vunpack.c.0.s8 %v5419
    %v5421 = vlaneseq
    %v5422 = vshrl.u32 %v5421, 7
    %v5423 = vsub.s32 %v5420, %v5422
    %v5424 = vrot.slane %v5416, %v5423
    %v5426 = vunpack.c.l.s4 1934713408
    %v5427 = vunpack.c.0.s8 %v5426
    %v5428 = vlaneseq
    %v5429 = vshrl.u32 %v5428, 7
    %v5430 = vsub.s32 %v5427, %v5429
    %v5431 = vrot.slane %v5417, %v5430
    %v5432 = vcombine.low %v5376, %v5392
    %v5433 = vcombine.high %v5376, %v5392
    %v5435 = vunpack.c.l.s4 1934713408
    %v5436 = vunpack.c.0.s8 %v5435
    %v5437 = vlaneseq
    %v5438 = vshrl.u32 %v5437, 7
    %v5439 = vsub.s32 %v5436, %v5438
    %v5440 = vrot.slane %v5432, %v5439
    %v5442 = vunpack.c.l.s4 1934713408
    %v5443 = vunpack.c.0.s8 %v5442
    %v5444 = vlaneseq
    %v5445 = vshrl.u32 %v5444, 7
    %v5446 = vsub.s32 %v5443, %v5445
    %v5447 = vrot.slane %v5433, %v5446
    %v5448 = vcombine.low %v5383, %v5399
    %v5449 = vcombine.high %v5383, %v5399
    %v5451 = vunpack.c.l.s4 1934713408
    %v5452 = vunpack.c.0.s8 %v5451
    %v5453 = vlaneseq
    %v5454 = vshrl.u32 %v5453, 7
    %v5455 = vsub.s32 %v5452, %v5454
    %v5456 = vrot.slane %v5448, %v5455
    %v5458 = vunpack.c.l.s4 1934713408
    %v5459 = vunpack.c.0.s8 %v5458
    %v5460 = vlaneseq
    %v5461 = vshrl.u32 %v5460, 7
    %v5462 = vsub.s32 %v5459, %v5461
    %v5463 = vrot.slane %v5449, %v5462
    %v5464 = vcombine.low %v5408, %v5440
    %v5465 = vcombine.high %v5408, %v5440
    %v5466 = vcombine.low %v5415, %v5447
    %v5467 = vcombine.high %v5415, %v5447
    %v5468 = vcombine.low %v5424, %v5456
    %v5469 = vcombine.high %v5424, %v5456
    %v5470 = vcombine.low %v5431, %v5463
    %v5471 = vcombine.high %v5431, %v5463
    %v5472 = vcombine.low %v2235, %v2267
    %v5473 = vcombine.high %v2235, %v2267
    %v5475 = vunpack.c.l.s4 1983009808
    %v5476 = vunpack.c.0.s8 %v5475
    %v5477 = vlaneseq
    %v5478 = vshrl.u32 %v5477, 7
    %v5479 = vsub.s32 %v5476, %v5478
    %v5480 = vrot.slane %v5472, %v5479
    %v5482 = vunpack.c.l.s4 1983009808
    %v5483 = vunpack.c.0.s8 %v5482
    %v5484 = vlaneseq
    %v5485 = vshrl.u32 %v5484, 7
    %v5486 = vsub.s32 %v5483, %v5485
    %v5487 = vrot.slane %v5473, %v5486
    %v5488 = vcombine.low %v2251, %v2283
    %v5489 = vcombine.high %v2251, %v2283
    %v5491 = vunpack.c.l.s4 1983009808
    %v5492 = vunpack.c.0.s8 %v5491
    %v5493 = vlaneseq
    %v5494 = vshrl.u32 %v5493, 7
    %v5495 = vsub.s32 %v5492, %v5494
    %v5496 = vrot.slane %v5488, %v5495
    %v5498 = vunpack.c.l.s4 1983009808
    %v5499 = vunpack.c.0.s8 %v5498
    %v5500 = vlaneseq
    %v5501 = vshrl.u32 %v5500, 7
    %v5502 = vsub.s32 %v5499, %v5501
    %v5503 = vrot.slane %v5489, %v5502
    %v5504 = vcombine.low %v2299, %v2331
    %v5505 = vcombine.high %v2299, %v2331
    %v5507 = vunpack.c.l.s4 1983009808
    %v5508 = vunpack.c.0.s8 %v5507
    %v5509 = vlaneseq
    %v5510 = vshrl.u32 %v5509, 7
    %v5511 = vsub.s32 %v5508, %v5510
    %v5512 = vrot.slane %v5504, %v5511
    %v5514 = vunpack.c.l.s4 1983009808
    %v5515 = vunpack.c.0.s8 %v5514
    %v5516 = vlaneseq
    %v5517 = vshrl.u32 %v5516, 7
    %v5518 = vsub.s32 %v5515, %v5517
    %v5519 = vrot.slane %v5505, %v5518
    %v5520 = vcombine.low %v2315, %v2347
    %v5521 = vcombine.high %v2315, %v2347
    %v5523 = vunpack.c.l.s4 1983009808
    %v5524 = vunpack.c.0.s8 %v5523
    %v5525 = vlaneseq
    %v5526 = vshrl.u32 %v5525, 7
    %v5527 = vsub.s32 %v5524, %v5526
    %v5528 = vrot.slane %v5520, %v5527
    %v5530 = vunpack.c.l.s4 1983009808
    %v5531 = vunpack.c.0.s8 %v5530
    %v5532 = vlaneseq
    %v5533 = vshrl.u32 %v5532, 7
    %v5534 = vsub.s32 %v5531, %v5533
    %v5535 = vrot.slane %v5521, %v5534
    %v5536 = vcombine.low %v5480, %v5496
    %v5537 = vcombine.high %v5480, %v5496
    %v5539 = vunpack.c.l.s4 1934713408
    %v5540 = vunpack.c.0.s8 %v5539
    %v5541 = vlaneseq
    %v5542 = vshrl.u32 %v5541, 7
    %v5543 = vsub.s32 %v5540, %v5542
    %v5544 = vrot.slane %v5536, %v5543
    %v5546 = vunpack.c.l.s4 1934713408
    %v5547 = vunpack.c.0.s8 %v5546
    %v5548 = vlaneseq
    %v5549 = vshrl.u32 %v5548, 7
    %v5550 = vsub.s32 %v5547, %v5549
    %v5551 = vrot.slane %v5537, %v5550
    %v5552 = vcombine.low %v5487, %v5503
    %v5553 = vcombine.high %v5487, %v5503
    %v5555 = vunpack.c.l.s4 1934713408
    %v5556 = vunpack.c.0.s8 %v5555
    %v5557 = vlaneseq
    %v5558 = vshrl.u32 %v5557, 7
    %v5559 = vsub.s32 %v5556, %v5558
    %v5560 = vrot.slane %v5552, %v5559
    %v5562 = vunpack.c.l.s4 1934713408
    %v5563 = vunpack.c.0.s8 %v5562
    %v5564 = vlaneseq
    %v5565 = vshrl.u32 %v5564, 7
    %v5566 = vsub.s32 %v5563, %v5565
    %v5567 = vrot.slane %v5553, %v5566
    %v5568 = vcombine.low %v5512, %v5528
    %v5569 = vcombine.high %v5512, %v5528
    %v5571 = vunpack.c.l.s4 1934713408
    %v5572 = vunpack.c.0.s8 %v5571
    %v5573 = vlaneseq
    %v5574 = vshrl.u32 %v5573, 7
    %v5575 = vsub.s32 %v5572, %v5574
    %v5576 = vrot.slane %v5568, %v5575
    %v5578 = vunpack.c.l.s4 1934713408
    %v5579 = vunpack.c.0.s8 %v5578
    %v5580 = vlaneseq
    %v5581 = vshrl.u32 %v5580, 7
    %v5582 = vsub.s32 %v5579, %v5581
    %v5583 = vrot.slane %v5569, %v5582
    %v5584 = vcombine.low %v5519, %v5535
    %v5585 = vcombine.high %v5519, %v5535
    %v5587 = vunpack.c.l.s4 1934713408
    %v5588 = vunpack.c.0.s8 %v5587
    %v5589 = vlaneseq
    %v5590 = vshrl.u32 %v5589, 7
    %v5591 = vsub.s32 %v5588, %v5590
    %v5592 = vrot.slane %v5584, %v5591
    %v5594 = vunpack.c.l.s4 1934713408
    %v5595 = vunpack.c.0.s8 %v5594
    %v5596 = vlaneseq
    %v5597 = vshrl.u32 %v5596, 7
    %v5598 = vsub.s32 %v5595, %v5597
    %v5599 = vrot.slane %v5585, %v5598
    %v5600 = vcombine.low %v5544, %v5576
    %v5601 = vcombine.high %v5544, %v5576
    %v5602 = vcombine.low %v5551, %v5583
    %v5603 = vcombine.high %v5551, %v5583
    %v5604 = vcombine.low %v5560, %v5592
    %v5605 = vcombine.high %v5560, %v5592
    %v5606 = vcombine.low %v5567, %v5599
    %v5607 = vcombine.high %v5567, %v5599
    %v5608 = vcombine.low %v2363, %v2395
    %v5609 = vcombine.high %v2363, %v2395
    %v5611 = vunpack.c.l.s4 1983009808
    %v5612 = vunpack.c.0.s8 %v5611
    %v5613 = vlaneseq
    %v5614 = vshrl.u32 %v5613, 7
    %v5615 = vsub.s32 %v5612, %v5614
    %v5616 = vrot.slane %v5608, %v5615
    %v5618 = vunpack.c.l.s4 1983009808
    %v5619 = vunpack.c.0.s8 %v5618
    %v5620 = vlaneseq
    %v5621 = vshrl.u32 %v5620, 7
    %v5622 = vsub.s32 %v5619, %v5621
    %v5623 = vrot.slane %v5609, %v5622
    %v5624 = vcombine.low %v2379, %v2411
    %v5625 = vcombine.high %v2379, %v2411
    %v5627 = vunpack.c.l.s4 1983009808
    %v5628 = vunpack.c.0.s8 %v5627
    %v5629 = vlaneseq
    %v5630 = vshrl.u32 %v5629, 7
    %v5631 = vsub.s32 %v5628, %v5630
    %v5632 = vrot.slane %v5624, %v5631
    %v5634 = vunpack.c.l.s4 1983009808
    %v5635 = vunpack.c.0.s8 %v5634
    %v5636 = vlaneseq
    %v5637 = vshrl.u32 %v5636, 7
    %v5638 = vsub.s32 %v5635, %v5637
    %v5639 = vrot.slane %v5625, %v5638
    %v5640 = vcombine.low %v2427, %v2459
    %v5641 = vcombine.high %v2427, %v2459
    %v5643 = vunpack.c.l.s4 1983009808
    %v5644 = vunpack.c.0.s8 %v5643
    %v5645 = vlaneseq
    %v5646 = vshrl.u32 %v5645, 7
    %v5647 = vsub.s32 %v5644, %v5646
    %v5648 = vrot.slane %v5640, %v5647
    %v5650 = vunpack.c.l.s4 1983009808
    %v5651 = vunpack.c.0.s8 %v5650
    %v5652 = vlaneseq
    %v5653 = vshrl.u32 %v5652, 7
    %v5654 = vsub.s32 %v5651, %v5653
    %v5655 = vrot.slane %v5641, %v5654
    %v5656 = vcombine.low %v2443, %v2475
    %v5657 = vcombine.high %v2443, %v2475
    %v5659 = vunpack.c.l.s4 1983009808
    %v5660 = vunpack.c.0.s8 %v5659
    %v5661 = vlaneseq
    %v5662 = vshrl.u32 %v5661, 7
    %v5663 = vsub.s32 %v5660, %v5662
    %v5664 = vrot.slane %v5656, %v5663
    %v5666 = vunpack.c.l.s4 1983009808
    %v5667 = vunpack.c.0.s8 %v5666
    %v5668 = vlaneseq
    %v5669 = vshrl.u32 %v5668, 7
    %v5670 = vsub.s32 %v5667, %v5669
    %v5671 = vrot.slane %v5657, %v5670
    %v5672 = vcombine.low %v5616, %v5632
    %v5673 = vcombine.high %v5616, %v5632
    %v5675 = vunpack.c.l.s4 1934713408
    %v5676 = vunpack.c.0.s8 %v5675
    %v5677 = vlaneseq
    %v5678 = vshrl.u32 %v5677, 7
    %v5679 = vsub.s32 %v5676, %v5678
    %v5680 = vrot.slane %v5672, %v5679
    %v5682 = vunpack.c.l.s4 1934713408
    %v5683 = vunpack.c.0.s8 %v5682
    %v5684 = vlaneseq
    %v5685 = vshrl.u32 %v5684, 7
    %v5686 = vsub.s32 %v5683, %v5685
    %v5687 = vrot.slane %v5673, %v5686
    %v5688 = vcombine.low %v5623, %v5639
    %v5689 = vcombine.high %v5623, %v5639
    %v5691 = vunpack.c.l.s4 1934713408
    %v5692 = vunpack.c.0.s8 %v5691
    %v5693 = vlaneseq
    %v5694 = vshrl.u32 %v5693, 7
    %v5695 = vsub.s32 %v5692, %v5694
    %v5696 = vrot.slane %v5688, %v5695
    %v5698 = vunpack.c.l.s4 1934713408
    %v5699 = vunpack.c.0.s8 %v5698
    %v5700 = vlaneseq
    %v5701 = vshrl.u32 %v5700, 7
    %v5702 = vsub.s32 %v5699, %v5701
    %v5703 = vrot.slane %v5689, %v5702
    %v5704 = vcombine.low %v5648, %v5664
    %v5705 = vcombine.high %v5648, %v5664
    %v5707 = vunpack.c.l.s4 1934713408
    %v5708 = vunpack.c.0.s8 %v5707
    %v5709 = vlaneseq
    %v5710 = vshrl.u32 %v5709, 7
    %v5711 = vsub.s32 %v5708, %v5710
    %v5712 = vrot.slane %v5704, %v5711
    %v5714 = vunpack.c.l.s4 1934713408
    %v5715 = vunpack.c.0.s8 %v5714
    %v5716 = vlaneseq
    %v5717 = vshrl.u32 %v5716, 7
    %v5718 = vsub.s32 %v5715, %v5717
    %v5719 = vrot.slane %v5705, %v5718
    %v5720 = vcombine.low %v5655, %v5671
    %v5721 = vcombine.high %v5655, %v5671
    %v5723 = vunpack.c.l.s4 1934713408
    %v5724 = vunpack.c.0.s8 %v5723
    %v5725 = vlaneseq
    %v5726 = vshrl.u32 %v5725, 7
    %v5727 = vsub.s32 %v5724, %v5726
    %v5728 = vrot.slane %v5720, %v5727
    %v5730 = vunpack.c.l.s4 1934713408
    %v5731 = vunpack.c.0.s8 %v5730
    %v5732 = vlaneseq
    %v5733 = vshrl.u32 %v5732, 7
    %v5734 = vsub.s32 %v5731, %v5733
    %v5735 = vrot.slane %v5721, %v5734
    %v5736 = vcombine.low %v5680, %v5712
    %v5737 = vcombine.high %v5680, %v5712
    %v5738 = vcombine.low %v5687, %v5719
    %v5739 = vcombine.high %v5687, %v5719
    %v5740 = vcombine.low %v5696, %v5728
    %v5741 = vcombine.high %v5696, %v5728
    %v5742 = vcombine.low %v5703, %v5735
    %v5743 = vcombine.high %v5703, %v5735
    %v5744 = vcombine.low %v2236, %v2268
    %v5745 = vcombine.high %v2236, %v2268
    %v5747 = vunpack.c.l.s4 1983009808
    %v5748 = vunpack.c.0.s8 %v5747
    %v5749 = vlaneseq
    %v5750 = vshrl.u32 %v5749, 7
    %v5751 = vsub.s32 %v5748, %v5750
    %v5752 = vrot.slane %v5744, %v5751
    %v5754 = vunpack.c.l.s4 1983009808
    %v5755 = vunpack.c.0.s8 %v5754
    %v5756 = vlaneseq
    %v5757 = vshrl.u32 %v5756, 7
    %v5758 = vsub.s32 %v5755, %v5757
    %v5759 = vrot.slane %v5745, %v5758
    %v5760 = vcombine.low %v2252, %v2284
    %v5761 = vcombine.high %v2252, %v2284
    %v5763 = vunpack.c.l.s4 1983009808
    %v5764 = vunpack.c.0.s8 %v5763
    %v5765 = vlaneseq
    %v5766 = vshrl.u32 %v5765, 7
    %v5767 = vsub.s32 %v5764, %v5766
    %v5768 = vrot.slane %v5760, %v5767
    %v5770 = vunpack.c.l.s4 1983009808
    %v5771 = vunpack.c.0.s8 %v5770
    %v5772 = vlaneseq
    %v5773 = vshrl.u32 %v5772, 7
    %v5774 = vsub.s32 %v5771, %v5773
    %v5775 = vrot.slane %v5761, %v5774
    %v5776 = vcombine.low %v2300, %v2332
    %v5777 = vcombine.high %v2300, %v2332
    %v5779 = vunpack.c.l.s4 1983009808
    %v5780 = vunpack.c.0.s8 %v5779
    %v5781 = vlaneseq
    %v5782 = vshrl.u32 %v5781, 7
    %v5783 = vsub.s32 %v5780, %v5782
    %v5784 = vrot.slane %v5776, %v5783
    %v5786 = vunpack.c.l.s4 1983009808
    %v5787 = vunpack.c.0.s8 %v5786
    %v5788 = vlaneseq
    %v5789 = vshrl.u32 %v5788, 7
    %v5790 = vsub.s32 %v5787, %v5789
    %v5791 = vrot.slane %v5777, %v5790
    %v5792 = vcombine.low %v2316, %v2348
    %v5793 = vcombine.high %v2316, %v2348
    %v5795 = vunpack.c.l.s4 1983009808
    %v5796 = vunpack.c.0.s8 %v5795
    %v5797 = vlaneseq
    %v5798 = vshrl.u32 %v5797, 7
    %v5799 = vsub.s32 %v5796, %v5798
    %v5800 = vrot.slane %v5792, %v5799
    %v5802 = vunpack.c.l.s4 1983009808
    %v5803 = vunpack.c.0.s8 %v5802
    %v5804 = vlaneseq
    %v5805 = vshrl.u32 %v5804, 7
    %v5806 = vsub.s32 %v5803, %v5805
    %v5807 = vrot.slane %v5793, %v5806
    %v5808 = vcombine.low %v5752, %v5768
    %v5809 = vcombine.high %v5752, %v5768
    %v5811 = vunpack.c.l.s4 1934713408
    %v5812 = vunpack.c.0.s8 %v5811
    %v5813 = vlaneseq
    %v5814 = vshrl.u32 %v5813, 7
    %v5815 = vsub.s32 %v5812, %v5814
    %v5816 = vrot.slane %v5808, %v5815
    %v5818 = vunpack.c.l.s4 1934713408
    %v5819 = vunpack.c.0.s8 %v5818
    %v5820 = vlaneseq
    %v5821 = vshrl.u32 %v5820, 7
    %v5822 = vsub.s32 %v5819, %v5821
    %v5823 = vrot.slane %v5809, %v5822
    %v5824 = vcombine.low %v5759, %v5775
    %v5825 = vcombine.high %v5759, %v5775
    %v5827 = vunpack.c.l.s4 1934713408
    %v5828 = vunpack.c.0.s8 %v5827
    %v5829 = vlaneseq
    %v5830 = vshrl.u32 %v5829, 7
    %v5831 = vsub.s32 %v5828, %v5830
    %v5832 = vrot.slane %v5824, %v5831
    %v5834 = vunpack.c.l.s4 1934713408
    %v5835 = vunpack.c.0.s8 %v5834
    %v5836 = vlaneseq
    %v5837 = vshrl.u32 %v5836, 7
    %v5838 = vsub.s32 %v5835, %v5837
    %v5839 = vrot.slane %v5825, %v5838
    %v5840 = vcombine.low %v5784, %v5800
    %v5841 = vcombine.high %v5784, %v5800
    %v5843 = vunpack.c.l.s4 1934713408
    %v5844 = vunpack.c.0.s8 %v5843
    %v5845 = vlaneseq
    %v5846 = vshrl.u32 %v5845, 7
    %v5847 = vsub.s32 %v5844, %v5846
    %v5848 = vrot.slane %v5840, %v5847
    %v5850 = vunpack.c.l.s4 1934713408
    %v5851 = vunpack.c.0.s8 %v5850
    %v5852 = vlaneseq
    %v5853 = vshrl.u32 %v5852, 7
    %v5854 = vsub.s32 %v5851, %v5853
    %v5855 = vrot.slane %v5841, %v5854
    %v5856 = vcombine.low %v5791, %v5807
    %v5857 = vcombine.high %v5791, %v5807
    %v5859 = vunpack.c.l.s4 1934713408
    %v5860 = vunpack.c.0.s8 %v5859
    %v5861 = vlaneseq
    %v5862 = vshrl.u32 %v5861, 7
    %v5863 = vsub.s32 %v5860, %v5862
    %v5864 = vrot.slane %v5856, %v5863
    %v5866 = vunpack.c.l.s4 1934713408
    %v5867 = vunpack.c.0.s8 %v5866
    %v5868 = vlaneseq
    %v5869 = vshrl.u32 %v5868, 7
    %v5870 = vsub.s32 %v5867, %v5869
    %v5871 = vrot.slane %v5857, %v5870
    %v5872 = vcombine.low %v5816, %v5848
    %v5873 = vcombine.high %v5816, %v5848
    %v5874 = vcombine.low %v5823, %v5855
    %v5875 = vcombine.high %v5823, %v5855
    %v5876 = vcombine.low %v5832, %v5864
    %v5877 = vcombine.high %v5832, %v5864
    %v5878 = vcombine.low %v5839, %v5871
    %v5879 = vcombine.high %v5839, %v5871
    %v5880 = vcombine.low %v2364, %v2396
    %v5881 = vcombine.high %v2364, %v2396
    %v5883 = vunpack.c.l.s4 1983009808
    %v5884 = vunpack.c.0.s8 %v5883
    %v5885 = vlaneseq
    %v5886 = vshrl.u32 %v5885, 7
    %v5887 = vsub.s32 %v5884, %v5886
    %v5888 = vrot.slane %v5880, %v5887
    %v5890 = vunpack.c.l.s4 1983009808
    %v5891 = vunpack.c.0.s8 %v5890
    %v5892 = vlaneseq
    %v5893 = vshrl.u32 %v5892, 7
    %v5894 = vsub.s32 %v5891, %v5893
    %v5895 = vrot.slane %v5881, %v5894
    %v5896 = vcombine.low %v2380, %v2412
    %v5897 = vcombine.high %v2380, %v2412
    %v5899 = vunpack.c.l.s4 1983009808
    %v5900 = vunpack.c.0.s8 %v5899
    %v5901 = vlaneseq
    %v5902 = vshrl.u32 %v5901, 7
    %v5903 = vsub.s32 %v5900, %v5902
    %v5904 = vrot.slane %v5896, %v5903
    %v5906 = vunpack.c.l.s4 1983009808
    %v5907 = vunpack.c.0.s8 %v5906
    %v5908 = vlaneseq
    %v5909 = vshrl.u32 %v5908, 7
    %v5910 = vsub.s32 %v5907, %v5909
    %v5911 = vrot.slane %v5897, %v5910
    %v5912 = vcombine.low %v2428, %v2460
    %v5913 = vcombine.high %v2428, %v2460
    %v5915 = vunpack.c.l.s4 1983009808
    %v5916 = vunpack.c.0.s8 %v5915
    %v5917 = vlaneseq
    %v5918 = vshrl.u32 %v5917, 7
    %v5919 = vsub.s32 %v5916, %v5918
    %v5920 = vrot.slane %v5912, %v5919
    %v5922 = vunpack.c.l.s4 1983009808
    %v5923 = vunpack.c.0.s8 %v5922
    %v5924 = vlaneseq
    %v5925 = vshrl.u32 %v5924, 7
    %v5926 = vsub.s32 %v5923, %v5925
    %v5927 = vrot.slane %v5913, %v5926
    %v5928 = vcombine.low %v2444, %v2476
    %v5929 = vcombine.high %v2444, %v2476
    %v5931 = vunpack.c.l.s4 1983009808
    %v5932 = vunpack.c.0.s8 %v5931
    %v5933 = vlaneseq
    %v5934 = vshrl.u32 %v5933, 7
    %v5935 = vsub.s32 %v5932, %v5934
    %v5936 = vrot.slane %v5928, %v5935
    %v5938 = vunpack.c.l.s4 1983009808
    %v5939 = vunpack.c.0.s8 %v5938
    %v5940 = vlaneseq
    %v5941 = vshrl.u32 %v5940, 7
    %v5942 = vsub.s32 %v5939, %v5941
    %v5943 = vrot.slane %v5929, %v5942
    %v5944 = vcombine.low %v5888, %v5904
    %v5945 = vcombine.high %v5888, %v5904
    %v5947 = vunpack.c.l.s4 1934713408
    %v5948 = vunpack.c.0.s8 %v5947
    %v5949 = vlaneseq
    %v5950 = vshrl.u32 %v5949, 7
    %v5951 = vsub.s32 %v5948, %v5950
    %v5952 = vrot.slane %v5944, %v5951
    %v5954 = vunpack.c.l.s4 1934713408
    %v5955 = vunpack.c.0.s8 %v5954
    %v5956 = vlaneseq
    %v5957 = vshrl.u32 %v5956, 7
    %v5958 = vsub.s32 %v5955, %v5957
    %v5959 = vrot.slane %v5945, %v5958
    %v5960 = vcombine.low %v5895, %v5911
    %v5961 = vcombine.high %v5895, %v5911
    %v5963 = vunpack.c.l.s4 1934713408
    %v5964 = vunpack.c.0.s8 %v5963
    %v5965 = vlaneseq
    %v5966 = vshrl.u32 %v5965, 7
    %v5967 = vsub.s32 %v5964, %v5966
    %v5968 = vrot.slane %v5960, %v5967
    %v5970 = vunpack.c.l.s4 1934713408
    %v5971 = vunpack.c.0.s8 %v5970
    %v5972 = vlaneseq
    %v5973 = vshrl.u32 %v5972, 7
    %v5974 = vsub.s32 %v5971, %v5973
    %v5975 = vrot.slane %v5961, %v5974
    %v5976 = vcombine.low %v5920, %v5936
    %v5977 = vcombine.high %v5920, %v5936
    %v5979 = vunpack.c.l.s4 1934713408
    %v5980 = vunpack.c.0.s8 %v5979
    %v5981 = vlaneseq
    %v5982 = vshrl.u32 %v5981, 7
    %v5983 = vsub.s32 %v5980, %v5982
    %v5984 = vrot.slane %v5976, %v5983
    %v5986 = vunpack.c.l.s4 1934713408
    %v5987 = vunpack.c.0.s8 %v5986
    %v5988 = vlaneseq
    %v5989 = vshrl.u32 %v5988, 7
    %v5990 = vsub.s32 %v5987, %v5989
    %v5991 = vrot.slane %v5977, %v5990
    %v5992 = vcombine.low %v5927, %v5943
    %v5993 = vcombine.high %v5927, %v5943
    %v5995 = vunpack.c.l.s4 1934713408
    %v5996 = vunpack.c.0.s8 %v5995
    %v5997 = vlaneseq
    %v5998 = vshrl.u32 %v5997, 7
    %v5999 = vsub.s32 %v5996, %v5998
    %v6000 = vrot.slane %v5992, %v5999
    %v6002 = vunpack.c.l.s4 1934713408
    %v6003 = vunpack.c.0.s8 %v6002
    %v6004 = vlaneseq
    %v6005 = vshrl.u32 %v6004, 7
    %v6006 = vsub.s32 %v6003, %v6005
    %v6007 = vrot.slane %v5993, %v6006
    %v6008 = vcombine.low %v5952, %v5984
    %v6009 = vcombine.high %v5952, %v5984
    %v6010 = vcombine.low %v5959, %v5991
    %v6011 = vcombine.high %v5959, %v5991
    %v6012 = vcombine.low %v5968, %v6000
    %v6013 = vcombine.high %v5968, %v6000
    %v6014 = vcombine.low %v5975, %v6007
    %v6015 = vcombine.high %v5975, %v6007
    %v6016 = vcombine.low %v2237, %v2269
    %v6017 = vcombine.high %v2237, %v2269
    %v6019 = vunpack.c.l.s4 1983009808
    %v6020 = vunpack.c.0.s8 %v6019
    %v6021 = vlaneseq
    %v6022 = vshrl.u32 %v6021, 7
    %v6023 = vsub.s32 %v6020, %v6022
    %v6024 = vrot.slane %v6016, %v6023
    %v6026 = vunpack.c.l.s4 1983009808
    %v6027 = vunpack.c.0.s8 %v6026
    %v6028 = vlaneseq
    %v6029 = vshrl.u32 %v6028, 7
    %v6030 = vsub.s32 %v6027, %v6029
    %v6031 = vrot.slane %v6017, %v6030
    %v6032 = vcombine.low %v2253, %v2285
    %v6033 = vcombine.high %v2253, %v2285
    %v6035 = vunpack.c.l.s4 1983009808
    %v6036 = vunpack.c.0.s8 %v6035
    %v6037 = vlaneseq
    %v6038 = vshrl.u32 %v6037, 7
    %v6039 = vsub.s32 %v6036, %v6038
    %v6040 = vrot.slane %v6032, %v6039
    %v6042 = vunpack.c.l.s4 1983009808
    %v6043 = vunpack.c.0.s8 %v6042
    %v6044 = vlaneseq
    %v6045 = vshrl.u32 %v6044, 7
    %v6046 = vsub.s32 %v6043, %v6045
    %v6047 = vrot.slane %v6033, %v6046
    %v6048 = vcombine.low %v2301, %v2333
    %v6049 = vcombine.high %v2301, %v2333
    %v6051 = vunpack.c.l.s4 1983009808
    %v6052 = vunpack.c.0.s8 %v6051
    %v6053 = vlaneseq
    %v6054 = vshrl.u32 %v6053, 7
    %v6055 = vsub.s32 %v6052, %v6054
    %v6056 = vrot.slane %v6048, %v6055
    %v6058 = vunpack.c.l.s4 1983009808
    %v6059 = vunpack.c.0.s8 %v6058
    %v6060 = vlaneseq
    %v6061 = vshrl.u32 %v6060, 7
    %v6062 = vsub.s32 %v6059, %v6061
    %v6063 = vrot.slane %v6049, %v6062
    %v6064 = vcombine.low %v2317, %v2349
    %v6065 = vcombine.high %v2317, %v2349
    %v6067 = vunpack.c.l.s4 1983009808
    %v6068 = vunpack.c.0.s8 %v6067
    %v6069 = vlaneseq
    %v6070 = vshrl.u32 %v6069, 7
    %v6071 = vsub.s32 %v6068, %v6070
    %v6072 = vrot.slane %v6064, %v6071
    %v6074 = vunpack.c.l.s4 1983009808
    %v6075 = vunpack.c.0.s8 %v6074
    %v6076 = vlaneseq
    %v6077 = vshrl.u32 %v6076, 7
    %v6078 = vsub.s32 %v6075, %v6077
    %v6079 = vrot.slane %v6065, %v6078
    %v6080 = vcombine.low %v6024, %v6040
    %v6081 = vcombine.high %v6024, %v6040
    %v6083 = vunpack.c.l.s4 1934713408
    %v6084 = vunpack.c.0.s8 %v6083
    %v6085 = vlaneseq
    %v6086 = vshrl.u32 %v6085, 7
    %v6087 = vsub.s32 %v6084, %v6086
    %v6088 = vrot.slane %v6080, %v6087
    %v6090 = vunpack.c.l.s4 1934713408
    %v6091 = vunpack.c.0.s8 %v6090
    %v6092 = vlaneseq
    %v6093 = vshrl.u32 %v6092, 7
    %v6094 = vsub.s32 %v6091, %v6093
    %v6095 = vrot.slane %v6081, %v6094
    %v6096 = vcombine.low %v6031, %v6047
    %v6097 = vcombine.high %v6031, %v6047
    %v6099 = vunpack.c.l.s4 1934713408
    %v6100 = vunpack.c.0.s8 %v6099
    %v6101 = vlaneseq
    %v6102 = vshrl.u32 %v6101, 7
    %v6103 = vsub.s32 %v6100, %v6102
    %v6104 = vrot.slane %v6096, %v6103
    %v6106 = vunpack.c.l.s4 1934713408
    %v6107 = vunpack.c.0.s8 %v6106
    %v6108 = vlaneseq
    %v6109 = vshrl.u32 %v6108, 7
    %v6110 = vsub.s32 %v6107, %v6109
    %v6111 = vrot.slane %v6097, %v6110
    %v6112 = vcombine.low %v6056, %v6072
    %v6113 = vcombine.high %v6056, %v6072
    %v6115 = vunpack.c.l.s4 1934713408
    %v6116 = vunpack.c.0.s8 %v6115
    %v6117 = vlaneseq
    %v6118 = vshrl.u32 %v6117, 7
    %v6119 = vsub.s32 %v6116, %v6118
    %v6120 = vrot.slane %v6112, %v6119
    %v6122 = vunpack.c.l.s4 1934713408
    %v6123 = vunpack.c.0.s8 %v6122
    %v6124 = vlaneseq
    %v6125 = vshrl.u32 %v6124, 7
    %v6126 = vsub.s32 %v6123, %v6125
    %v6127 = vrot.slane %v6113, %v6126
    %v6128 = vcombine.low %v6063, %v6079
    %v6129 = vcombine.high %v6063, %v6079
    %v6131 = vunpack.c.l.s4 1934713408
    %v6132 = vunpack.c.0.s8 %v6131
    %v6133 = vlaneseq
    %v6134 = vshrl.u32 %v6133, 7
    %v6135 = vsub.s32 %v6132, %v6134
    %v6136 = vrot.slane %v6128, %v6135
    %v6138 = vunpack.c.l.s4 1934713408
    %v6139 = vunpack.c.0.s8 %v6138
    %v6140 = vlaneseq
    %v6141 = vshrl.u32 %v6140, 7
    %v6142 = vsub.s32 %v6139, %v6141
    %v6143 = vrot.slane %v6129, %v6142
    %v6144 = vcombine.low %v6088, %v6120
    %v6145 = vcombine.high %v6088, %v6120
    %v6146 = vcombine.low %v6095, %v6127
    %v6147 = vcombine.high %v6095, %v6127
    %v6148 = vcombine.low %v6104, %v6136
    %v6149 = vcombine.high %v6104, %v6136
    %v6150 = vcombine.low %v6111, %v6143
    %v6151 = vcombine.high %v6111, %v6143
    %v6152 = vcombine.low %v2365, %v2397
    %v6153 = vcombine.high %v2365, %v2397
    %v6155 = vunpack.c.l.s4 1983009808
    %v6156 = vunpack.c.0.s8 %v6155
    %v6157 = vlaneseq
    %v6158 = vshrl.u32 %v6157, 7
    %v6159 = vsub.s32 %v6156, %v6158
    %v6160 = vrot.slane %v6152, %v6159
    %v6162 = vunpack.c.l.s4 1983009808
    %v6163 = vunpack.c.0.s8 %v6162
    %v6164 = vlaneseq
    %v6165 = vshrl.u32 %v6164, 7
    %v6166 = vsub.s32 %v6163, %v6165
    %v6167 = vrot.slane %v6153, %v6166
    %v6168 = vcombine.low %v2381, %v2413
    %v6169 = vcombine.high %v2381, %v2413
    %v6171 = vunpack.c.l.s4 1983009808
    %v6172 = vunpack.c.0.s8 %v6171
    %v6173 = vlaneseq
    %v6174 = vshrl.u32 %v6173, 7
    %v6175 = vsub.s32 %v6172, %v6174
    %v6176 = vrot.slane %v6168, %v6175
    %v6178 = vunpack.c.l.s4 1983009808
    %v6179 = vunpack.c.0.s8 %v6178
    %v6180 = vlaneseq
    %v6181 = vshrl.u32 %v6180, 7
    %v6182 = vsub.s32 %v6179, %v6181
    %v6183 = vrot.slane %v6169, %v6182
    %v6184 = vcombine.low %v2429, %v2461
    %v6185 = vcombine.high %v2429, %v2461
    %v6187 = vunpack.c.l.s4 1983009808
    %v6188 = vunpack.c.0.s8 %v6187
    %v6189 = vlaneseq
    %v6190 = vshrl.u32 %v6189, 7
    %v6191 = vsub.s32 %v6188, %v6190
    %v6192 = vrot.slane %v6184, %v6191
    %v6194 = vunpack.c.l.s4 1983009808
    %v6195 = vunpack.c.0.s8 %v6194
    %v6196 = vlaneseq
    %v6197 = vshrl.u32 %v6196, 7
    %v6198 = vsub.s32 %v6195, %v6197
    %v6199 = vrot.slane %v6185, %v6198
    %v6200 = vcombine.low %v2445, %v2477
    %v6201 = vcombine.high %v2445, %v2477
    %v6203 = vunpack.c.l.s4 1983009808
    %v6204 = vunpack.c.0.s8 %v6203
    %v6205 = vlaneseq
    %v6206 = vshrl.u32 %v6205, 7
    %v6207 = vsub.s32 %v6204, %v6206
    %v6208 = vrot.slane %v6200, %v6207
    %v6210 = vunpack.c.l.s4 1983009808
    %v6211 = vunpack.c.0.s8 %v6210
    %v6212 = vlaneseq
    %v6213 = vshrl.u32 %v6212, 7
    %v6214 = vsub.s32 %v6211, %v6213
    %v6215 = vrot.slane %v6201, %v6214
    %v6216 = vcombine.low %v6160, %v6176
    %v6217 = vcombine.high %v6160, %v6176
    %v6219 = vunpack.c.l.s4 1934713408
    %v6220 = vunpack.c.0.s8 %v6219
    %v6221 = vlaneseq
    %v6222 = vshrl.u32 %v6221, 7
    %v6223 = vsub.s32 %v6220, %v6222
    %v6224 = vrot.slane %v6216, %v6223
    %v6226 = vunpack.c.l.s4 1934713408
    %v6227 = vunpack.c.0.s8 %v6226
    %v6228 = vlaneseq
    %v6229 = vshrl.u32 %v6228, 7
    %v6230 = vsub.s32 %v6227, %v6229
    %v6231 = vrot.slane %v6217, %v6230
    %v6232 = vcombine.low %v6167, %v6183
    %v6233 = vcombine.high %v6167, %v6183
    %v6235 = vunpack.c.l.s4 1934713408
    %v6236 = vunpack.c.0.s8 %v6235
    %v6237 = vlaneseq
    %v6238 = vshrl.u32 %v6237, 7
    %v6239 = vsub.s32 %v6236, %v6238
    %v6240 = vrot.slane %v6232, %v6239
    %v6242 = vunpack.c.l.s4 1934713408
    %v6243 = vunpack.c.0.s8 %v6242
    %v6244 = vlaneseq
    %v6245 = vshrl.u32 %v6244, 7
    %v6246 = vsub.s32 %v6243, %v6245
    %v6247 = vrot.slane %v6233, %v6246
    %v6248 = vcombine.low %v6192, %v6208
    %v6249 = vcombine.high %v6192, %v6208
    %v6251 = vunpack.c.l.s4 1934713408
    %v6252 = vunpack.c.0.s8 %v6251
    %v6253 = vlaneseq
    %v6254 = vshrl.u32 %v6253, 7
    %v6255 = vsub.s32 %v6252, %v6254
    %v6256 = vrot.slane %v6248, %v6255
    %v6258 = vunpack.c.l.s4 1934713408
    %v6259 = vunpack.c.0.s8 %v6258
    %v6260 = vlaneseq
    %v6261 = vshrl.u32 %v6260, 7
    %v6262 = vsub.s32 %v6259, %v6261
    %v6263 = vrot.slane %v6249, %v6262
    %v6264 = vcombine.low %v6199, %v6215
    %v6265 = vcombine.high %v6199, %v6215
    %v6267 = vunpack.c.l.s4 1934713408
    %v6268 = vunpack.c.0.s8 %v6267
    %v6269 = vlaneseq
    %v6270 = vshrl.u32 %v6269, 7
    %v6271 = vsub.s32 %v6268, %v6270
    %v6272 = vrot.slane %v6264, %v6271
    %v6274 = vunpack.c.l.s4 1934713408
    %v6275 = vunpack.c.0.s8 %v6274
    %v6276 = vlaneseq
    %v6277 = vshrl.u32 %v6276, 7
    %v6278 = vsub.s32 %v6275, %v6277
    %v6279 = vrot.slane %v6265, %v6278
    %v6280 = vcombine.low %v6224, %v6256
    %v6281 = vcombine.high %v6224, %v6256
    %v6282 = vcombine.low %v6231, %v6263
    %v6283 = vcombine.high %v6231, %v6263
    %v6284 = vcombine.low %v6240, %v6272
    %v6285 = vcombine.high %v6240, %v6272
    %v6286 = vcombine.low %v6247, %v6279
    %v6287 = vcombine.high %v6247, %v6279
    %v6288 = vcombine.low %v2238, %v2270
    %v6289 = vcombine.high %v2238, %v2270
    %v6291 = vunpack.c.l.s4 1983009808
    %v6292 = vunpack.c.0.s8 %v6291
    %v6293 = vlaneseq
    %v6294 = vshrl.u32 %v6293, 7
    %v6295 = vsub.s32 %v6292, %v6294
    %v6296 = vrot.slane %v6288, %v6295
    %v6298 = vunpack.c.l.s4 1983009808
    %v6299 = vunpack.c.0.s8 %v6298
    %v6300 = vlaneseq
    %v6301 = vshrl.u32 %v6300, 7
    %v6302 = vsub.s32 %v6299, %v6301
    %v6303 = vrot.slane %v6289, %v6302
    %v6304 = vcombine.low %v2254, %v2286
    %v6305 = vcombine.high %v2254, %v2286
    %v6307 = vunpack.c.l.s4 1983009808
    %v6308 = vunpack.c.0.s8 %v6307
    %v6309 = vlaneseq
    %v6310 = vshrl.u32 %v6309, 7
    %v6311 = vsub.s32 %v6308, %v6310
    %v6312 = vrot.slane %v6304, %v6311
    %v6314 = vunpack.c.l.s4 1983009808
    %v6315 = vunpack.c.0.s8 %v6314
    %v6316 = vlaneseq
    %v6317 = vshrl.u32 %v6316, 7
    %v6318 = vsub.s32 %v6315, %v6317
    %v6319 = vrot.slane %v6305, %v6318
    %v6320 = vcombine.low %v2302, %v2334
    %v6321 = vcombine.high %v2302, %v2334
    %v6323 = vunpack.c.l.s4 1983009808
    %v6324 = vunpack.c.0.s8 %v6323
    %v6325 = vlaneseq
    %v6326 = vshrl.u32 %v6325, 7
    %v6327 = vsub.s32 %v6324, %v6326
    %v6328 = vrot.slane %v6320, %v6327
    %v6330 = vunpack.c.l.s4 1983009808
    %v6331 = vunpack.c.0.s8 %v6330
    %v6332 = vlaneseq
    %v6333 = vshrl.u32 %v6332, 7
    %v6334 = vsub.s32 %v6331, %v6333
    %v6335 = vrot.slane %v6321, %v6334
    %v6336 = vcombine.low %v2318, %v2350
    %v6337 = vcombine.high %v2318, %v2350
    %v6339 = vunpack.c.l.s4 1983009808
    %v6340 = vunpack.c.0.s8 %v6339
    %v6341 = vlaneseq
    %v6342 = vshrl.u32 %v6341, 7
    %v6343 = vsub.s32 %v6340, %v6342
    %v6344 = vrot.slane %v6336, %v6343
    %v6346 = vunpack.c.l.s4 1983009808
    %v6347 = vunpack.c.0.s8 %v6346
    %v6348 = vlaneseq
    %v6349 = vshrl.u32 %v6348, 7
    %v6350 = vsub.s32 %v6347, %v6349
    %v6351 = vrot.slane %v6337, %v6350
    %v6352 = vcombine.low %v6296, %v6312
    %v6353 = vcombine.high %v6296, %v6312
    %v6355 = vunpack.c.l.s4 1934713408
    %v6356 = vunpack.c.0.s8 %v6355
    %v6357 = vlaneseq
    %v6358 = vshrl.u32 %v6357, 7
    %v6359 = vsub.s32 %v6356, %v6358
    %v6360 = vrot.slane %v6352, %v6359
    %v6362 = vunpack.c.l.s4 1934713408
    %v6363 = vunpack.c.0.s8 %v6362
    %v6364 = vlaneseq
    %v6365 = vshrl.u32 %v6364, 7
    %v6366 = vsub.s32 %v6363, %v6365
    %v6367 = vrot.slane %v6353, %v6366
    %v6368 = vcombine.low %v6303, %v6319
    %v6369 = vcombine.high %v6303, %v6319
    %v6371 = vunpack.c.l.s4 1934713408
    %v6372 = vunpack.c.0.s8 %v6371
    %v6373 = vlaneseq
    %v6374 = vshrl.u32 %v6373, 7
    %v6375 = vsub.s32 %v6372, %v6374
    %v6376 = vrot.slane %v6368, %v6375
    %v6378 = vunpack.c.l.s4 1934713408
    %v6379 = vunpack.c.0.s8 %v6378
    %v6380 = vlaneseq
    %v6381 = vshrl.u32 %v6380, 7
    %v6382 = vsub.s32 %v6379, %v6381
    %v6383 = vrot.slane %v6369, %v6382
    %v6384 = vcombine.low %v6328, %v6344
    %v6385 = vcombine.high %v6328, %v6344
    %v6387 = vunpack.c.l.s4 1934713408
    %v6388 = vunpack.c.0.s8 %v6387
    %v6389 = vlaneseq
    %v6390 = vshrl.u32 %v6389, 7
    %v6391 = vsub.s32 %v6388, %v6390
    %v6392 = vrot.slane %v6384, %v6391
    %v6394 = vunpack.c.l.s4 1934713408
    %v6395 = vunpack.c.0.s8 %v6394
    %v6396 = vlaneseq
    %v6397 = vshrl.u32 %v6396, 7
    %v6398 = vsub.s32 %v6395, %v6397
    %v6399 = vrot.slane %v6385, %v6398
    %v6400 = vcombine.low %v6335, %v6351
    %v6401 = vcombine.high %v6335, %v6351
    %v6403 = vunpack.c.l.s4 1934713408
    %v6404 = vunpack.c.0.s8 %v6403
    %v6405 = vlaneseq
    %v6406 = vshrl.u32 %v6405, 7
    %v6407 = vsub.s32 %v6404, %v6406
    %v6408 = vrot.slane %v6400, %v6407
    %v6410 = vunpack.c.l.s4 1934713408
    %v6411 = vunpack.c.0.s8 %v6410
    %v6412 = vlaneseq
    %v6413 = vshrl.u32 %v6412, 7
    %v6414 = vsub.s32 %v6411, %v6413
    %v6415 = vrot.slane %v6401, %v6414
    %v6416 = vcombine.low %v6360, %v6392
    %v6417 = vcombine.high %v6360, %v6392
    %v6418 = vcombine.low %v6367, %v6399
    %v6419 = vcombine.high %v6367, %v6399
    %v6420 = vcombine.low %v6376, %v6408
    %v6421 = vcombine.high %v6376, %v6408
    %v6422 = vcombine.low %v6383, %v6415
    %v6423 = vcombine.high %v6383, %v6415
    %v6424 = vcombine.low %v2366, %v2398
    %v6425 = vcombine.high %v2366, %v2398
    %v6427 = vunpack.c.l.s4 1983009808
    %v6428 = vunpack.c.0.s8 %v6427
    %v6429 = vlaneseq
    %v6430 = vshrl.u32 %v6429, 7
    %v6431 = vsub.s32 %v6428, %v6430
    %v6432 = vrot.slane %v6424, %v6431
    %v6434 = vunpack.c.l.s4 1983009808
    %v6435 = vunpack.c.0.s8 %v6434
    %v6436 = vlaneseq
    %v6437 = vshrl.u32 %v6436, 7
    %v6438 = vsub.s32 %v6435, %v6437
    %v6439 = vrot.slane %v6425, %v6438
    %v6440 = vcombine.low %v2382, %v2414
    %v6441 = vcombine.high %v2382, %v2414
    %v6443 = vunpack.c.l.s4 1983009808
    %v6444 = vunpack.c.0.s8 %v6443
    %v6445 = vlaneseq
    %v6446 = vshrl.u32 %v6445, 7
    %v6447 = vsub.s32 %v6444, %v6446
    %v6448 = vrot.slane %v6440, %v6447
    %v6450 = vunpack.c.l.s4 1983009808
    %v6451 = vunpack.c.0.s8 %v6450
    %v6452 = vlaneseq
    %v6453 = vshrl.u32 %v6452, 7
    %v6454 = vsub.s32 %v6451, %v6453
    %v6455 = vrot.slane %v6441, %v6454
    %v6456 = vcombine.low %v2430, %v2462
    %v6457 = vcombine.high %v2430, %v2462
    %v6459 = vunpack.c.l.s4 1983009808
    %v6460 = vunpack.c.0.s8 %v6459
    %v6461 = vlaneseq
    %v6462 = vshrl.u32 %v6461, 7
    %v6463 = vsub.s32 %v6460, %v6462
    %v6464 = vrot.slane %v6456, %v6463
    %v6466 = vunpack.c.l.s4 1983009808
    %v6467 = vunpack.c.0.s8 %v6466
    %v6468 = vlaneseq
    %v6469 = vshrl.u32 %v6468, 7
    %v6470 = vsub.s32 %v6467, %v6469
    %v6471 = vrot.slane %v6457, %v6470
    %v6472 = vcombine.low %v2446, %v2478
    %v6473 = vcombine.high %v2446, %v2478
    %v6475 = vunpack.c.l.s4 1983009808
    %v6476 = vunpack.c.0.s8 %v6475
    %v6477 = vlaneseq
    %v6478 = vshrl.u32 %v6477, 7
    %v6479 = vsub.s32 %v6476, %v6478
    %v6480 = vrot.slane %v6472, %v6479
    %v6482 = vunpack.c.l.s4 1983009808
    %v6483 = vunpack.c.0.s8 %v6482
    %v6484 = vlaneseq
    %v6485 = vshrl.u32 %v6484, 7
    %v6486 = vsub.s32 %v6483, %v6485
    %v6487 = vrot.slane %v6473, %v6486
    %v6488 = vcombine.low %v6432, %v6448
    %v6489 = vcombine.high %v6432, %v6448
    %v6491 = vunpack.c.l.s4 1934713408
    %v6492 = vunpack.c.0.s8 %v6491
    %v6493 = vlaneseq
    %v6494 = vshrl.u32 %v6493, 7
    %v6495 = vsub.s32 %v6492, %v6494
    %v6496 = vrot.slane %v6488, %v6495
    %v6498 = vunpack.c.l.s4 1934713408
    %v6499 = vunpack.c.0.s8 %v6498
    %v6500 = vlaneseq
    %v6501 = vshrl.u32 %v6500, 7
    %v6502 = vsub.s32 %v6499, %v6501
    %v6503 = vrot.slane %v6489, %v6502
    %v6504 = vcombine.low %v6439, %v6455
    %v6505 = vcombine.high %v6439, %v6455
    %v6507 = vunpack.c.l.s4 1934713408
    %v6508 = vunpack.c.0.s8 %v6507
    %v6509 = vlaneseq
    %v6510 = vshrl.u32 %v6509, 7
    %v6511 = vsub.s32 %v6508, %v6510
    %v6512 = vrot.slane %v6504, %v6511
    %v6514 = vunpack.c.l.s4 1934713408
    %v6515 = vunpack.c.0.s8 %v6514
    %v6516 = vlaneseq
    %v6517 = vshrl.u32 %v6516, 7
    %v6518 = vsub.s32 %v6515, %v6517
    %v6519 = vrot.slane %v6505, %v6518
    %v6520 = vcombine.low %v6464, %v6480
    %v6521 = vcombine.high %v6464, %v6480
    %v6523 = vunpack.c.l.s4 1934713408
    %v6524 = vunpack.c.0.s8 %v6523
    %v6525 = vlaneseq
    %v6526 = vshrl.u32 %v6525, 7
    %v6527 = vsub.s32 %v6524, %v6526
    %v6528 = vrot.slane %v6520, %v6527
    %v6530 = vunpack.c.l.s4 1934713408
    %v6531 = vunpack.c.0.s8 %v6530
    %v6532 = vlaneseq
    %v6533 = vshrl.u32 %v6532, 7
    %v6534 = vsub.s32 %v6531, %v6533
    %v6535 = vrot.slane %v6521, %v6534
    %v6536 = vcombine.low %v6471, %v6487
    %v6537 = vcombine.high %v6471, %v6487
    %v6539 = vunpack.c.l.s4 1934713408
    %v6540 = vunpack.c.0.s8 %v6539
    %v6541 = vlaneseq
    %v6542 = vshrl.u32 %v6541, 7
    %v6543 = vsub.s32 %v6540, %v6542
    %v6544 = vrot.slane %v6536, %v6543
    %v6546 = vunpack.c.l.s4 1934713408
    %v6547 = vunpack.c.0.s8 %v6546
    %v6548 = vlaneseq
    %v6549 = vshrl.u32 %v6548, 7
    %v6550 = vsub.s32 %v6547, %v6549
    %v6551 = vrot.slane %v6537, %v6550
    %v6552 = vcombine.low %v6496, %v6528
    %v6553 = vcombine.high %v6496, %v6528
    %v6554 = vcombine.low %v6503, %v6535
    %v6555 = vcombine.high %v6503, %v6535
    %v6556 = vcombine.low %v6512, %v6544
    %v6557 = vcombine.high %v6512, %v6544
    %v6558 = vcombine.low %v6519, %v6551
    %v6559 = vcombine.high %v6519, %v6551
    %v6560 = vcombine.low %v2239, %v2271
    %v6561 = vcombine.high %v2239, %v2271
    %v6563 = vunpack.c.l.s4 1983009808
    %v6564 = vunpack.c.0.s8 %v6563
    %v6565 = vlaneseq
    %v6566 = vshrl.u32 %v6565, 7
    %v6567 = vsub.s32 %v6564, %v6566
    %v6568 = vrot.slane %v6560, %v6567
    %v6570 = vunpack.c.l.s4 1983009808
    %v6571 = vunpack.c.0.s8 %v6570
    %v6572 = vlaneseq
    %v6573 = vshrl.u32 %v6572, 7
    %v6574 = vsub.s32 %v6571, %v6573
    %v6575 = vrot.slane %v6561, %v6574
    %v6576 = vcombine.low %v2255, %v2287
    %v6577 = vcombine.high %v2255, %v2287
    %v6579 = vunpack.c.l.s4 1983009808
    %v6580 = vunpack.c.0.s8 %v6579
    %v6581 = vlaneseq
    %v6582 = vshrl.u32 %v6581, 7
    %v6583 = vsub.s32 %v6580, %v6582
    %v6584 = vrot.slane %v6576, %v6583
    %v6586 = vunpack.c.l.s4 1983009808
    %v6587 = vunpack.c.0.s8 %v6586
    %v6588 = vlaneseq
    %v6589 = vshrl.u32 %v6588, 7
    %v6590 = vsub.s32 %v6587, %v6589
    %v6591 = vrot.slane %v6577, %v6590
    %v6592 = vcombine.low %v2303, %v2335
    %v6593 = vcombine.high %v2303, %v2335
    %v6595 = vunpack.c.l.s4 1983009808
    %v6596 = vunpack.c.0.s8 %v6595
    %v6597 = vlaneseq
    %v6598 = vshrl.u32 %v6597, 7
    %v6599 = vsub.s32 %v6596, %v6598
    %v6600 = vrot.slane %v6592, %v6599
    %v6602 = vunpack.c.l.s4 1983009808
    %v6603 = vunpack.c.0.s8 %v6602
    %v6604 = vlaneseq
    %v6605 = vshrl.u32 %v6604, 7
    %v6606 = vsub.s32 %v6603, %v6605
    %v6607 = vrot.slane %v6593, %v6606
    %v6608 = vcombine.low %v2319, %v2351
    %v6609 = vcombine.high %v2319, %v2351
    %v6611 = vunpack.c.l.s4 1983009808
    %v6612 = vunpack.c.0.s8 %v6611
    %v6613 = vlaneseq
    %v6614 = vshrl.u32 %v6613, 7
    %v6615 = vsub.s32 %v6612, %v6614
    %v6616 = vrot.slane %v6608, %v6615
    %v6618 = vunpack.c.l.s4 1983009808
    %v6619 = vunpack.c.0.s8 %v6618
    %v6620 = vlaneseq
    %v6621 = vshrl.u32 %v6620, 7
    %v6622 = vsub.s32 %v6619, %v6621
    %v6623 = vrot.slane %v6609, %v6622
    %v6624 = vcombine.low %v6568, %v6584
    %v6625 = vcombine.high %v6568, %v6584
    %v6627 = vunpack.c.l.s4 1934713408
    %v6628 = vunpack.c.0.s8 %v6627
    %v6629 = vlaneseq
    %v6630 = vshrl.u32 %v6629, 7
    %v6631 = vsub.s32 %v6628, %v6630
    %v6632 = vrot.slane %v6624, %v6631
    %v6634 = vunpack.c.l.s4 1934713408
    %v6635 = vunpack.c.0.s8 %v6634
    %v6636 = vlaneseq
    %v6637 = vshrl.u32 %v6636, 7
    %v6638 = vsub.s32 %v6635, %v6637
    %v6639 = vrot.slane %v6625, %v6638
    %v6640 = vcombine.low %v6575, %v6591
    %v6641 = vcombine.high %v6575, %v6591
    %v6643 = vunpack.c.l.s4 1934713408
    %v6644 = vunpack.c.0.s8 %v6643
    %v6645 = vlaneseq
    %v6646 = vshrl.u32 %v6645, 7
    %v6647 = vsub.s32 %v6644, %v6646
    %v6648 = vrot.slane %v6640, %v6647
    %v6650 = vunpack.c.l.s4 1934713408
    %v6651 = vunpack.c.0.s8 %v6650
    %v6652 = vlaneseq
    %v6653 = vshrl.u32 %v6652, 7
    %v6654 = vsub.s32 %v6651, %v6653
    %v6655 = vrot.slane %v6641, %v6654
    %v6656 = vcombine.low %v6600, %v6616
    %v6657 = vcombine.high %v6600, %v6616
    %v6659 = vunpack.c.l.s4 1934713408
    %v6660 = vunpack.c.0.s8 %v6659
    %v6661 = vlaneseq
    %v6662 = vshrl.u32 %v6661, 7
    %v6663 = vsub.s32 %v6660, %v6662
    %v6664 = vrot.slane %v6656, %v6663
    %v6666 = vunpack.c.l.s4 1934713408
    %v6667 = vunpack.c.0.s8 %v6666
    %v6668 = vlaneseq
    %v6669 = vshrl.u32 %v6668, 7
    %v6670 = vsub.s32 %v6667, %v6669
    %v6671 = vrot.slane %v6657, %v6670
    %v6672 = vcombine.low %v6607, %v6623
    %v6673 = vcombine.high %v6607, %v6623
    %v6675 = vunpack.c.l.s4 1934713408
    %v6676 = vunpack.c.0.s8 %v6675
    %v6677 = vlaneseq
    %v6678 = vshrl.u32 %v6677, 7
    %v6679 = vsub.s32 %v6676, %v6678
    %v6680 = vrot.slane %v6672, %v6679
    %v6682 = vunpack.c.l.s4 1934713408
    %v6683 = vunpack.c.0.s8 %v6682
    %v6684 = vlaneseq
    %v6685 = vshrl.u32 %v6684, 7
    %v6686 = vsub.s32 %v6683, %v6685
    %v6687 = vrot.slane %v6673, %v6686
    %v6688 = vcombine.low %v6632, %v6664
    %v6689 = vcombine.high %v6632, %v6664
    %v6690 = vcombine.low %v6639, %v6671
    %v6691 = vcombine.high %v6639, %v6671
    %v6692 = vcombine.low %v6648, %v6680
    %v6693 = vcombine.high %v6648, %v6680
    %v6694 = vcombine.low %v6655, %v6687
    %v6695 = vcombine.high %v6655, %v6687
    %v6696 = vcombine.low %v2367, %v2399
    %v6697 = vcombine.high %v2367, %v2399
    %v6699 = vunpack.c.l.s4 1983009808
    %v6700 = vunpack.c.0.s8 %v6699
    %v6701 = vlaneseq
    %v6702 = vshrl.u32 %v6701, 7
    %v6703 = vsub.s32 %v6700, %v6702
    %v6704 = vrot.slane %v6696, %v6703
    %v6706 = vunpack.c.l.s4 1983009808
    %v6707 = vunpack.c.0.s8 %v6706
    %v6708 = vlaneseq
    %v6709 = vshrl.u32 %v6708, 7
    %v6710 = vsub.s32 %v6707, %v6709
    %v6711 = vrot.slane %v6697, %v6710
    %v6712 = vcombine.low %v2383, %v2415
    %v6713 = vcombine.high %v2383, %v2415
    %v6715 = vunpack.c.l.s4 1983009808
    %v6716 = vunpack.c.0.s8 %v6715
    %v6717 = vlaneseq
    %v6718 = vshrl.u32 %v6717, 7
    %v6719 = vsub.s32 %v6716, %v6718
    %v6720 = vrot.slane %v6712, %v6719
    %v6722 = vunpack.c.l.s4 1983009808
    %v6723 = vunpack.c.0.s8 %v6722
    %v6724 = vlaneseq
    %v6725 = vshrl.u32 %v6724, 7
    %v6726 = vsub.s32 %v6723, %v6725
    %v6727 = vrot.slane %v6713, %v6726
    %v6728 = vcombine.low %v2431, %v2463
    %v6729 = vcombine.high %v2431, %v2463
    %v6731 = vunpack.c.l.s4 1983009808
    %v6732 = vunpack.c.0.s8 %v6731
    %v6733 = vlaneseq
    %v6734 = vshrl.u32 %v6733, 7
    %v6735 = vsub.s32 %v6732, %v6734
    %v6736 = vrot.slane %v6728, %v6735
    %v6738 = vunpack.c.l.s4 1983009808
    %v6739 = vunpack.c.0.s8 %v6738
    %v6740 = vlaneseq
    %v6741 = vshrl.u32 %v6740, 7
    %v6742 = vsub.s32 %v6739, %v6741
    %v6743 = vrot.slane %v6729, %v6742
    %v6744 = vcombine.low %v2447, %v2479
    %v6745 = vcombine.high %v2447, %v2479
    %v6747 = vunpack.c.l.s4 1983009808
    %v6748 = vunpack.c.0.s8 %v6747
    %v6749 = vlaneseq
    %v6750 = vshrl.u32 %v6749, 7
    %v6751 = vsub.s32 %v6748, %v6750
    %v6752 = vrot.slane %v6744, %v6751
    %v6754 = vunpack.c.l.s4 1983009808
    %v6755 = vunpack.c.0.s8 %v6754
    %v6756 = vlaneseq
    %v6757 = vshrl.u32 %v6756, 7
    %v6758 = vsub.s32 %v6755, %v6757
    %v6759 = vrot.slane %v6745, %v6758
    %v6760 = vcombine.low %v6704, %v6720
    %v6761 = vcombine.high %v6704, %v6720
    %v6763 = vunpack.c.l.s4 1934713408
    %v6764 = vunpack.c.0.s8 %v6763
    %v6765 = vlaneseq
    %v6766 = vshrl.u32 %v6765, 7
    %v6767 = vsub.s32 %v6764, %v6766
    %v6768 = vrot.slane %v6760, %v6767
    %v6770 = vunpack.c.l.s4 1934713408
    %v6771 = vunpack.c.0.s8 %v6770
    %v6772 = vlaneseq
    %v6773 = vshrl.u32 %v6772, 7
    %v6774 = vsub.s32 %v6771, %v6773
    %v6775 = vrot.slane %v6761, %v6774
    %v6776 = vcombine.low %v6711, %v6727
    %v6777 = vcombine.high %v6711, %v6727
    %v6779 = vunpack.c.l.s4 1934713408
    %v6780 = vunpack.c.0.s8 %v6779
    %v6781 = vlaneseq
    %v6782 = vshrl.u32 %v6781, 7
    %v6783 = vsub.s32 %v6780, %v6782
    %v6784 = vrot.slane %v6776, %v6783
    %v6786 = vunpack.c.l.s4 1934713408
    %v6787 = vunpack.c.0.s8 %v6786
    %v6788 = vlaneseq
    %v6789 = vshrl.u32 %v6788, 7
    %v6790 = vsub.s32 %v6787, %v6789
    %v6791 = vrot.slane %v6777, %v6790
    %v6792 = vcombine.low %v6736, %v6752
    %v6793 = vcombine.high %v6736, %v6752
    %v6795 = vunpack.c.l.s4 1934713408
    %v6796 = vunpack.c.0.s8 %v6795
    %v6797 = vlaneseq
    %v6798 = vshrl.u32 %v6797, 7
    %v6799 = vsub.s32 %v6796, %v6798
    %v6800 = vrot.slane %v6792, %v6799
    %v6802 = vunpack.c.l.s4 1934713408
    %v6803 = vunpack.c.0.s8 %v6802
    %v6804 = vlaneseq
    %v6805 = vshrl.u32 %v6804, 7
    %v6806 = vsub.s32 %v6803, %v6805
    %v6807 = vrot.slane %v6793, %v6806
    %v6808 = vcombine.low %v6743, %v6759
    %v6809 = vcombine.high %v6743, %v6759
    %v6811 = vunpack.c.l.s4 1934713408
    %v6812 = vunpack.c.0.s8 %v6811
    %v6813 = vlaneseq
    %v6814 = vshrl.u32 %v6813, 7
    %v6815 = vsub.s32 %v6812, %v6814
    %v6816 = vrot.slane %v6808, %v6815
    %v6818 = vunpack.c.l.s4 1934713408
    %v6819 = vunpack.c.0.s8 %v6818
    %v6820 = vlaneseq
    %v6821 = vshrl.u32 %v6820, 7
    %v6822 = vsub.s32 %v6819, %v6821
    %v6823 = vrot.slane %v6809, %v6822
    %v6824 = vcombine.low %v6768, %v6800
    %v6825 = vcombine.high %v6768, %v6800
    %v6826 = vcombine.low %v6775, %v6807
    %v6827 = vcombine.high %v6775, %v6807
    %v6828 = vcombine.low %v6784, %v6816
    %v6829 = vcombine.high %v6784, %v6816
    %v6830 = vcombine.low %v6791, %v6823
    %v6831 = vcombine.high %v6791, %v6823
    %6834 = vrot.lane.b32.xlu0 %v2609, 2
    %v6835 = vpop.permute.xlu0 %6834
    %6836 = vrot.lane.b32.xlu0 %v2745, 2
    %v6837 = vpop.permute.xlu0 %6836
    %6842 = vrot.lane.b32.xlu0 %v2610, 4
    %v6843 = vpop.permute.xlu0 %6842
    %6844 = vrot.lane.b32.xlu0 %v2746, 4
    %v6845 = vpop.permute.xlu0 %6844
    %6850 = vrot.lane.b32.xlu0 %v2611, 6
    %v6851 = vpop.permute.xlu0 %6850
    %6852 = vrot.lane.b32.xlu0 %v2747, 6
    %v6853 = vpop.permute.xlu0 %6852
    %6858 = vrot.lane.b32.xlu0 %v2612, 8
    %v6859 = vpop.permute.xlu0 %6858
    %6860 = vrot.lane.b32.xlu0 %v2748, 8
    %v6861 = vpop.permute.xlu0 %6860
    %6866 = vrot.lane.b32.xlu0 %v2613, 10
    %v6867 = vpop.permute.xlu0 %6866
    %6868 = vrot.lane.b32.xlu0 %v2749, 10
    %v6869 = vpop.permute.xlu0 %6868
    %6874 = vrot.lane.b32.xlu0 %v2614, 12
    %v6875 = vpop.permute.xlu0 %6874
    %6876 = vrot.lane.b32.xlu0 %v2750, 12
    %v6877 = vpop.permute.xlu0 %6876
    %6882 = vrot.lane.b32.xlu0 %v2615, 14
    %v6883 = vpop.permute.xlu0 %6882
    %6884 = vrot.lane.b32.xlu0 %v2751, 14
    %v6885 = vpop.permute.xlu0 %6884
    %6890 = vrot.lane.b32.xlu0 %v2880, 16
    %v6891 = vpop.permute.xlu0 %6890
    %6892 = vrot.lane.b32.xlu0 %v3016, 16
    %v6893 = vpop.permute.xlu0 %6892
    %6898 = vrot.lane.b32.xlu0 %v2881, 18
    %v6899 = vpop.permute.xlu0 %6898
    %6900 = vrot.lane.b32.xlu0 %v3017, 18
    %v6901 = vpop.permute.xlu0 %6900
    %6906 = vrot.lane.b32.xlu0 %v2882, 20
    %v6907 = vpop.permute.xlu0 %6906
    %6908 = vrot.lane.b32.xlu0 %v3018, 20
    %v6909 = vpop.permute.xlu0 %6908
    %6914 = vrot.lane.b32.xlu0 %v2883, 22
    %v6915 = vpop.permute.xlu0 %6914
    %6916 = vrot.lane.b32.xlu0 %v3019, 22
    %v6917 = vpop.permute.xlu0 %6916
    %6922 = vrot.lane.b32.xlu0 %v2884, 24
    %v6923 = vpop.permute.xlu0 %6922
    %6924 = vrot.lane.b32.xlu0 %v3020, 24
    %v6925 = vpop.permute.xlu0 %6924
    %6930 = vrot.lane.b32.xlu0 %v2885, 26
    %v6931 = vpop.permute.xlu0 %6930
    %6932 = vrot.lane.b32.xlu0 %v3021, 26
    %v6933 = vpop.permute.xlu0 %6932
    %6938 = vrot.lane.b32.xlu0 %v2886, 28
    %v6939 = vpop.permute.xlu0 %6938
    %6940 = vrot.lane.b32.xlu0 %v3022, 28
    %v6941 = vpop.permute.xlu0 %6940
    %6946 = vrot.lane.b32.xlu0 %v2887, 30
    %v6947 = vpop.permute.xlu0 %6946
    %6948 = vrot.lane.b32.xlu0 %v3023, 30
    %v6949 = vpop.permute.xlu0 %6948
    %6954 = vrot.lane.b32.xlu0 %v3152, 32
    %v6955 = vpop.permute.xlu0 %6954
    %6956 = vrot.lane.b32.xlu0 %v3288, 32
    %v6957 = vpop.permute.xlu0 %6956
    %6962 = vrot.lane.b32.xlu0 %v3153, 34
    %v6963 = vpop.permute.xlu0 %6962
    %6964 = vrot.lane.b32.xlu0 %v3289, 34
    %v6965 = vpop.permute.xlu0 %6964
    %6970 = vrot.lane.b32.xlu0 %v3154, 36
    %v6971 = vpop.permute.xlu0 %6970
    %6972 = vrot.lane.b32.xlu0 %v3290, 36
    %v6973 = vpop.permute.xlu0 %6972
    %6978 = vrot.lane.b32.xlu0 %v3155, 38
    %v6979 = vpop.permute.xlu0 %6978
    %6980 = vrot.lane.b32.xlu0 %v3291, 38
    %v6981 = vpop.permute.xlu0 %6980
    %6986 = vrot.lane.b32.xlu0 %v3156, 40
    %v6987 = vpop.permute.xlu0 %6986
    %6988 = vrot.lane.b32.xlu0 %v3292, 40
    %v6989 = vpop.permute.xlu0 %6988
    %6994 = vrot.lane.b32.xlu0 %v3157, 42
    %v6995 = vpop.permute.xlu0 %6994
    %6996 = vrot.lane.b32.xlu0 %v3293, 42
    %v6997 = vpop.permute.xlu0 %6996
    %7002 = vrot.lane.b32.xlu0 %v3158, 44
    %v7003 = vpop.permute.xlu0 %7002
    %7004 = vrot.lane.b32.xlu0 %v3294, 44
    %v7005 = vpop.permute.xlu0 %7004
    %7010 = vrot.lane.b32.xlu0 %v3159, 46
    %v7011 = vpop.permute.xlu0 %7010
    %7012 = vrot.lane.b32.xlu0 %v3295, 46
    %v7013 = vpop.permute.xlu0 %7012
    %7018 = vrot.lane.b32.xlu0 %v3424, 48
    %v7019 = vpop.permute.xlu0 %7018
    %7020 = vrot.lane.b32.xlu0 %v3560, 48
    %v7021 = vpop.permute.xlu0 %7020
    %7026 = vrot.lane.b32.xlu0 %v3425, 50
    %v7027 = vpop.permute.xlu0 %7026
    %7028 = vrot.lane.b32.xlu0 %v3561, 50
    %v7029 = vpop.permute.xlu0 %7028
    %7034 = vrot.lane.b32.xlu0 %v3426, 52
    %v7035 = vpop.permute.xlu0 %7034
    %7036 = vrot.lane.b32.xlu0 %v3562, 52
    %v7037 = vpop.permute.xlu0 %7036
    %7042 = vrot.lane.b32.xlu0 %v3427, 54
    %v7043 = vpop.permute.xlu0 %7042
    %7044 = vrot.lane.b32.xlu0 %v3563, 54
    %v7045 = vpop.permute.xlu0 %7044
    %7050 = vrot.lane.b32.xlu0 %v3428, 56
    %v7051 = vpop.permute.xlu0 %7050
    %7052 = vrot.lane.b32.xlu0 %v3564, 56
    %v7053 = vpop.permute.xlu0 %7052
    %7058 = vrot.lane.b32.xlu0 %v3429, 58
    %v7059 = vpop.permute.xlu0 %7058
    %7060 = vrot.lane.b32.xlu0 %v3565, 58
    %v7061 = vpop.permute.xlu0 %7060
    %7066 = vrot.lane.b32.xlu0 %v3430, 60
    %v7067 = vpop.permute.xlu0 %7066
    %7068 = vrot.lane.b32.xlu0 %v3566, 60
    %v7069 = vpop.permute.xlu0 %7068
    %7074 = vrot.lane.b32.xlu0 %v3431, 62
    %v7075 = vpop.permute.xlu0 %7074
    %7076 = vrot.lane.b32.xlu0 %v3567, 62
    %v7077 = vpop.permute.xlu0 %7076
    %7082 = vrot.lane.b32.xlu0 %v3696, 64
    %v7083 = vpop.permute.xlu0 %7082
    %7084 = vrot.lane.b32.xlu0 %v3832, 64
    %v7085 = vpop.permute.xlu0 %7084
    %7090 = vrot.lane.b32.xlu0 %v3697, 66
    %v7091 = vpop.permute.xlu0 %7090
    %7092 = vrot.lane.b32.xlu0 %v3833, 66
    %v7093 = vpop.permute.xlu0 %7092
    %7098 = vrot.lane.b32.xlu0 %v3698, 68
    %v7099 = vpop.permute.xlu0 %7098
    %7100 = vrot.lane.b32.xlu0 %v3834, 68
    %v7101 = vpop.permute.xlu0 %7100
    %7106 = vrot.lane.b32.xlu0 %v3699, 70
    %v7107 = vpop.permute.xlu0 %7106
    %7108 = vrot.lane.b32.xlu0 %v3835, 70
    %v7109 = vpop.permute.xlu0 %7108
    %7114 = vrot.lane.b32.xlu0 %v3700, 72
    %v7115 = vpop.permute.xlu0 %7114
    %7116 = vrot.lane.b32.xlu0 %v3836, 72
    %v7117 = vpop.permute.xlu0 %7116
    %7122 = vrot.lane.b32.xlu0 %v3701, 74
    %v7123 = vpop.permute.xlu0 %7122
    %7124 = vrot.lane.b32.xlu0 %v3837, 74
    %v7125 = vpop.permute.xlu0 %7124
    %7130 = vrot.lane.b32.xlu0 %v3702, 76
    %v7131 = vpop.permute.xlu0 %7130
    %7132 = vrot.lane.b32.xlu0 %v3838, 76
    %v7133 = vpop.permute.xlu0 %7132
    %7138 = vrot.lane.b32.xlu0 %v3703, 78
    %v7139 = vpop.permute.xlu0 %7138
    %7140 = vrot.lane.b32.xlu0 %v3839, 78
    %v7141 = vpop.permute.xlu0 %7140
    %7146 = vrot.lane.b32.xlu0 %v3968, 80
    %v7147 = vpop.permute.xlu0 %7146
    %7148 = vrot.lane.b32.xlu0 %v4104, 80
    %v7149 = vpop.permute.xlu0 %7148
    %7154 = vrot.lane.b32.xlu0 %v3969, 82
    %v7155 = vpop.permute.xlu0 %7154
    %7156 = vrot.lane.b32.xlu0 %v4105, 82
    %v7157 = vpop.permute.xlu0 %7156
    %7162 = vrot.lane.b32.xlu0 %v3970, 84
    %v7163 = vpop.permute.xlu0 %7162
    %7164 = vrot.lane.b32.xlu0 %v4106, 84
    %v7165 = vpop.permute.xlu0 %7164
    %7170 = vrot.lane.b32.xlu0 %v3971, 86
    %v7171 = vpop.permute.xlu0 %7170
    %7172 = vrot.lane.b32.xlu0 %v4107, 86
    %v7173 = vpop.permute.xlu0 %7172
    %7178 = vrot.lane.b32.xlu0 %v3972, 88
    %v7179 = vpop.permute.xlu0 %7178
    %7180 = vrot.lane.b32.xlu0 %v4108, 88
    %v7181 = vpop.permute.xlu0 %7180
    %7186 = vrot.lane.b32.xlu0 %v3973, 90
    %v7187 = vpop.permute.xlu0 %7186
    %7188 = vrot.lane.b32.xlu0 %v4109, 90
    %v7189 = vpop.permute.xlu0 %7188
    %7194 = vrot.lane.b32.xlu0 %v3974, 92
    %v7195 = vpop.permute.xlu0 %7194
    %7196 = vrot.lane.b32.xlu0 %v4110, 92
    %v7197 = vpop.permute.xlu0 %7196
    %7202 = vrot.lane.b32.xlu0 %v3975, 94
    %v7203 = vpop.permute.xlu0 %7202
    %7204 = vrot.lane.b32.xlu0 %v4111, 94
    %v7205 = vpop.permute.xlu0 %7204
    %7210 = vrot.lane.b32.xlu0 %v4240, 96
    %v7211 = vpop.permute.xlu0 %7210
    %7212 = vrot.lane.b32.xlu0 %v4376, 96
    %v7213 = vpop.permute.xlu0 %7212
    %7218 = vrot.lane.b32.xlu0 %v4241, 98
    %v7219 = vpop.permute.xlu0 %7218
    %7220 = vrot.lane.b32.xlu0 %v4377, 98
    %v7221 = vpop.permute.xlu0 %7220
    %7226 = vrot.lane.b32.xlu0 %v4242, 100
    %v7227 = vpop.permute.xlu0 %7226
    %7228 = vrot.lane.b32.xlu0 %v4378, 100
    %v7229 = vpop.permute.xlu0 %7228
    %7234 = vrot.lane.b32.xlu0 %v4243, 102
    %v7235 = vpop.permute.xlu0 %7234
    %7236 = vrot.lane.b32.xlu0 %v4379, 102
    %v7237 = vpop.permute.xlu0 %7236
    %7242 = vrot.lane.b32.xlu0 %v4244, 104
    %v7243 = vpop.permute.xlu0 %7242
    %7244 = vrot.lane.b32.xlu0 %v4380, 104
    %v7245 = vpop.permute.xlu0 %7244
    %7250 = vrot.lane.b32.xlu0 %v4245, 106
    %v7251 = vpop.permute.xlu0 %7250
    %7252 = vrot.lane.b32.xlu0 %v4381, 106
    %v7253 = vpop.permute.xlu0 %7252
    %7258 = vrot.lane.b32.xlu0 %v4246, 108
    %v7259 = vpop.permute.xlu0 %7258
    %7260 = vrot.lane.b32.xlu0 %v4382, 108
    %v7261 = vpop.permute.xlu0 %7260
    %7266 = vrot.lane.b32.xlu0 %v4247, 110
    %v7267 = vpop.permute.xlu0 %7266
    %7268 = vrot.lane.b32.xlu0 %v4383, 110
    %v7269 = vpop.permute.xlu0 %7268
    %7274 = vrot.lane.b32.xlu0 %v4512, 112
    %v7275 = vpop.permute.xlu0 %7274
    %7276 = vrot.lane.b32.xlu0 %v4648, 112
    %v7277 = vpop.permute.xlu0 %7276
    %7282 = vrot.lane.b32.xlu0 %v4513, 114
    %v7283 = vpop.permute.xlu0 %7282
    %7284 = vrot.lane.b32.xlu0 %v4649, 114
    %v7285 = vpop.permute.xlu0 %7284
    %7290 = vrot.lane.b32.xlu0 %v4514, 116
    %v7291 = vpop.permute.xlu0 %7290
    %7292 = vrot.lane.b32.xlu0 %v4650, 116
    %v7293 = vpop.permute.xlu0 %7292
    %7298 = vrot.lane.b32.xlu0 %v4515, 118
    %v7299 = vpop.permute.xlu0 %7298
    %7300 = vrot.lane.b32.xlu0 %v4651, 118
    %v7301 = vpop.permute.xlu0 %7300
    %7306 = vrot.lane.b32.xlu0 %v4516, 120
    %v7307 = vpop.permute.xlu0 %7306
    %7308 = vrot.lane.b32.xlu0 %v4652, 120
    %v7309 = vpop.permute.xlu0 %7308
    %7314 = vrot.lane.b32.xlu0 %v4517, 122
    %v7315 = vpop.permute.xlu0 %7314
    %7316 = vrot.lane.b32.xlu0 %v4653, 122
    %v7317 = vpop.permute.xlu0 %7316
    %7322 = vrot.lane.b32.xlu0 %v4518, 124
    %v7323 = vpop.permute.xlu0 %7322
    %7324 = vrot.lane.b32.xlu0 %v4654, 124
    %v7325 = vpop.permute.xlu0 %7324
    %7330 = vrot.lane.b32.xlu0 %v4519, 126
    %v7331 = vpop.permute.xlu0 %7330
    %7332 = vrot.lane.b32.xlu0 %v4655, 126
    %v7333 = vpop.permute.xlu0 %7332
    %7338 = vrot.lane.b32.xlu0 %v4785, 2
    %v7339 = vpop.permute.xlu0 %7338
    %7340 = vrot.lane.b32.xlu0 %v4921, 2
    %v7341 = vpop.permute.xlu0 %7340
    %7346 = vrot.lane.b32.xlu0 %v4786, 4
    %v7347 = vpop.permute.xlu0 %7346
    %7348 = vrot.lane.b32.xlu0 %v4922, 4
    %v7349 = vpop.permute.xlu0 %7348
    %7354 = vrot.lane.b32.xlu0 %v4787, 6
    %v7355 = vpop.permute.xlu0 %7354
    %7356 = vrot.lane.b32.xlu0 %v4923, 6
    %v7357 = vpop.permute.xlu0 %7356
    %7362 = vrot.lane.b32.xlu0 %v4788, 8
    %v7363 = vpop.permute.xlu0 %7362
    %7364 = vrot.lane.b32.xlu0 %v4924, 8
    %v7365 = vpop.permute.xlu0 %7364
    %7370 = vrot.lane.b32.xlu0 %v4789, 10
    %v7371 = vpop.permute.xlu0 %7370
    %7372 = vrot.lane.b32.xlu0 %v4925, 10
    %v7373 = vpop.permute.xlu0 %7372
    %7378 = vrot.lane.b32.xlu0 %v4790, 12
    %v7379 = vpop.permute.xlu0 %7378
    %7380 = vrot.lane.b32.xlu0 %v4926, 12
    %v7381 = vpop.permute.xlu0 %7380
    %7386 = vrot.lane.b32.xlu0 %v4791, 14
    %v7387 = vpop.permute.xlu0 %7386
    %7388 = vrot.lane.b32.xlu0 %v4927, 14
    %v7389 = vpop.permute.xlu0 %7388
    %7394 = vrot.lane.b32.xlu0 %v5056, 16
    %v7395 = vpop.permute.xlu0 %7394
    %7396 = vrot.lane.b32.xlu0 %v5192, 16
    %v7397 = vpop.permute.xlu0 %7396
    %7402 = vrot.lane.b32.xlu0 %v5057, 18
    %v7403 = vpop.permute.xlu0 %7402
    %7404 = vrot.lane.b32.xlu0 %v5193, 18
    %v7405 = vpop.permute.xlu0 %7404
    %7410 = vrot.lane.b32.xlu0 %v5058, 20
    %v7411 = vpop.permute.xlu0 %7410
    %7412 = vrot.lane.b32.xlu0 %v5194, 20
    %v7413 = vpop.permute.xlu0 %7412
    %7418 = vrot.lane.b32.xlu0 %v5059, 22
    %v7419 = vpop.permute.xlu0 %7418
    %7420 = vrot.lane.b32.xlu0 %v5195, 22
    %v7421 = vpop.permute.xlu0 %7420
    %7426 = vrot.lane.b32.xlu0 %v5060, 24
    %v7427 = vpop.permute.xlu0 %7426
    %7428 = vrot.lane.b32.xlu0 %v5196, 24
    %v7429 = vpop.permute.xlu0 %7428
    %7434 = vrot.lane.b32.xlu0 %v5061, 26
    %v7435 = vpop.permute.xlu0 %7434
    %7436 = vrot.lane.b32.xlu0 %v5197, 26
    %v7437 = vpop.permute.xlu0 %7436
    %7442 = vrot.lane.b32.xlu0 %v5062, 28
    %v7443 = vpop.permute.xlu0 %7442
    %7444 = vrot.lane.b32.xlu0 %v5198, 28
    %v7445 = vpop.permute.xlu0 %7444
    %7450 = vrot.lane.b32.xlu0 %v5063, 30
    %v7451 = vpop.permute.xlu0 %7450
    %7452 = vrot.lane.b32.xlu0 %v5199, 30
    %v7453 = vpop.permute.xlu0 %7452
    %7458 = vrot.lane.b32.xlu0 %v5328, 32
    %v7459 = vpop.permute.xlu0 %7458
    %7460 = vrot.lane.b32.xlu0 %v5464, 32
    %v7461 = vpop.permute.xlu0 %7460
    %7466 = vrot.lane.b32.xlu0 %v5329, 34
    %v7467 = vpop.permute.xlu0 %7466
    %7468 = vrot.lane.b32.xlu0 %v5465, 34
    %v7469 = vpop.permute.xlu0 %7468
    %7474 = vrot.lane.b32.xlu0 %v5330, 36
    %v7475 = vpop.permute.xlu0 %7474
    %7476 = vrot.lane.b32.xlu0 %v5466, 36
    %v7477 = vpop.permute.xlu0 %7476
    %7482 = vrot.lane.b32.xlu0 %v5331, 38
    %v7483 = vpop.permute.xlu0 %7482
    %7484 = vrot.lane.b32.xlu0 %v5467, 38
    %v7485 = vpop.permute.xlu0 %7484
    %7490 = vrot.lane.b32.xlu0 %v5332, 40
    %v7491 = vpop.permute.xlu0 %7490
    %7492 = vrot.lane.b32.xlu0 %v5468, 40
    %v7493 = vpop.permute.xlu0 %7492
    %7498 = vrot.lane.b32.xlu0 %v5333, 42
    %v7499 = vpop.permute.xlu0 %7498
    %7500 = vrot.lane.b32.xlu0 %v5469, 42
    %v7501 = vpop.permute.xlu0 %7500
    %7506 = vrot.lane.b32.xlu0 %v5334, 44
    %v7507 = vpop.permute.xlu0 %7506
    %7508 = vrot.lane.b32.xlu0 %v5470, 44
    %v7509 = vpop.permute.xlu0 %7508
    %7514 = vrot.lane.b32.xlu0 %v5335, 46
    %v7515 = vpop.permute.xlu0 %7514
    %7516 = vrot.lane.b32.xlu0 %v5471, 46
    %v7517 = vpop.permute.xlu0 %7516
    %7522 = vrot.lane.b32.xlu0 %v5600, 48
    %v7523 = vpop.permute.xlu0 %7522
    %7524 = vrot.lane.b32.xlu0 %v5736, 48
    %v7525 = vpop.permute.xlu0 %7524
    %7530 = vrot.lane.b32.xlu0 %v5601, 50
    %v7531 = vpop.permute.xlu0 %7530
    %7532 = vrot.lane.b32.xlu0 %v5737, 50
    %v7533 = vpop.permute.xlu0 %7532
    %7538 = vrot.lane.b32.xlu0 %v5602, 52
    %v7539 = vpop.permute.xlu0 %7538
    %7540 = vrot.lane.b32.xlu0 %v5738, 52
    %v7541 = vpop.permute.xlu0 %7540
    %7546 = vrot.lane.b32.xlu0 %v5603, 54
    %v7547 = vpop.permute.xlu0 %7546
    %7548 = vrot.lane.b32.xlu0 %v5739, 54
    %v7549 = vpop.permute.xlu0 %7548
    %7554 = vrot.lane.b32.xlu0 %v5604, 56
    %v7555 = vpop.permute.xlu0 %7554
    %7556 = vrot.lane.b32.xlu0 %v5740, 56
    %v7557 = vpop.permute.xlu0 %7556
    %7562 = vrot.lane.b32.xlu0 %v5605, 58
    %v7563 = vpop.permute.xlu0 %7562
    %7564 = vrot.lane.b32.xlu0 %v5741, 58
    %v7565 = vpop.permute.xlu0 %7564
    %7570 = vrot.lane.b32.xlu0 %v5606, 60
    %v7571 = vpop.permute.xlu0 %7570
    %7572 = vrot.lane.b32.xlu0 %v5742, 60
    %v7573 = vpop.permute.xlu0 %7572
    %7578 = vrot.lane.b32.xlu0 %v5607, 62
    %v7579 = vpop.permute.xlu0 %7578
    %7580 = vrot.lane.b32.xlu0 %v5743, 62
    %v7581 = vpop.permute.xlu0 %7580
    %7586 = vrot.lane.b32.xlu0 %v5872, 64
    %v7587 = vpop.permute.xlu0 %7586
    %7588 = vrot.lane.b32.xlu0 %v6008, 64
    %v7589 = vpop.permute.xlu0 %7588
    %7594 = vrot.lane.b32.xlu0 %v5873, 66
    %v7595 = vpop.permute.xlu0 %7594
    %7596 = vrot.lane.b32.xlu0 %v6009, 66
    %v7597 = vpop.permute.xlu0 %7596
    %7602 = vrot.lane.b32.xlu0 %v5874, 68
    %v7603 = vpop.permute.xlu0 %7602
    %7604 = vrot.lane.b32.xlu0 %v6010, 68
    %v7605 = vpop.permute.xlu0 %7604
    %7610 = vrot.lane.b32.xlu0 %v5875, 70
    %v7611 = vpop.permute.xlu0 %7610
    %7612 = vrot.lane.b32.xlu0 %v6011, 70
    %v7613 = vpop.permute.xlu0 %7612
    %7618 = vrot.lane.b32.xlu0 %v5876, 72
    %v7619 = vpop.permute.xlu0 %7618
    %7620 = vrot.lane.b32.xlu0 %v6012, 72
    %v7621 = vpop.permute.xlu0 %7620
    %7626 = vrot.lane.b32.xlu0 %v5877, 74
    %v7627 = vpop.permute.xlu0 %7626
    %7628 = vrot.lane.b32.xlu0 %v6013, 74
    %v7629 = vpop.permute.xlu0 %7628
    %7634 = vrot.lane.b32.xlu0 %v5878, 76
    %v7635 = vpop.permute.xlu0 %7634
    %7636 = vrot.lane.b32.xlu0 %v6014, 76
    %v7637 = vpop.permute.xlu0 %7636
    %7642 = vrot.lane.b32.xlu0 %v5879, 78
    %v7643 = vpop.permute.xlu0 %7642
    %7644 = vrot.lane.b32.xlu0 %v6015, 78
    %v7645 = vpop.permute.xlu0 %7644
    %7650 = vrot.lane.b32.xlu0 %v6144, 80
    %v7651 = vpop.permute.xlu0 %7650
    %7652 = vrot.lane.b32.xlu0 %v6280, 80
    %v7653 = vpop.permute.xlu0 %7652
    %7658 = vrot.lane.b32.xlu0 %v6145, 82
    %v7659 = vpop.permute.xlu0 %7658
    %7660 = vrot.lane.b32.xlu0 %v6281, 82
    %v7661 = vpop.permute.xlu0 %7660
    %7666 = vrot.lane.b32.xlu0 %v6146, 84
    %v7667 = vpop.permute.xlu0 %7666
    %7668 = vrot.lane.b32.xlu0 %v6282, 84
    %v7669 = vpop.permute.xlu0 %7668
    %7674 = vrot.lane.b32.xlu0 %v6147, 86
    %v7675 = vpop.permute.xlu0 %7674
    %7676 = vrot.lane.b32.xlu0 %v6283, 86
    %v7677 = vpop.permute.xlu0 %7676
    %7682 = vrot.lane.b32.xlu0 %v6148, 88
    %v7683 = vpop.permute.xlu0 %7682
    %7684 = vrot.lane.b32.xlu0 %v6284, 88
    %v7685 = vpop.permute.xlu0 %7684
    %7690 = vrot.lane.b32.xlu0 %v6149, 90
    %v7691 = vpop.permute.xlu0 %7690
    %7692 = vrot.lane.b32.xlu0 %v6285, 90
    %v7693 = vpop.permute.xlu0 %7692
    %7698 = vrot.lane.b32.xlu0 %v6150, 92
    %v7699 = vpop.permute.xlu0 %7698
    %7700 = vrot.lane.b32.xlu0 %v6286, 92
    %v7701 = vpop.permute.xlu0 %7700
    %7706 = vrot.lane.b32.xlu0 %v6151, 94
    %v7707 = vpop.permute.xlu0 %7706
    %7708 = vrot.lane.b32.xlu0 %v6287, 94
    %v7709 = vpop.permute.xlu0 %7708
    %7714 = vrot.lane.b32.xlu0 %v6416, 96
    %v7715 = vpop.permute.xlu0 %7714
    %7716 = vrot.lane.b32.xlu0 %v6552, 96
    %v7717 = vpop.permute.xlu0 %7716
    %7722 = vrot.lane.b32.xlu0 %v6417, 98
    %v7723 = vpop.permute.xlu0 %7722
    %7724 = vrot.lane.b32.xlu0 %v6553, 98
    %v7725 = vpop.permute.xlu0 %7724
    %7730 = vrot.lane.b32.xlu0 %v6418, 100
    %v7731 = vpop.permute.xlu0 %7730
    %7732 = vrot.lane.b32.xlu0 %v6554, 100
    %v7733 = vpop.permute.xlu0 %7732
    %7738 = vrot.lane.b32.xlu0 %v6419, 102
    %v7739 = vpop.permute.xlu0 %7738
    %7740 = vrot.lane.b32.xlu0 %v6555, 102
    %v7741 = vpop.permute.xlu0 %7740
    %7746 = vrot.lane.b32.xlu0 %v6420, 104
    %v7747 = vpop.permute.xlu0 %7746
    %7748 = vrot.lane.b32.xlu0 %v6556, 104
    %v7749 = vpop.permute.xlu0 %7748
    %7754 = vrot.lane.b32.xlu0 %v6421, 106
    %v7755 = vpop.permute.xlu0 %7754
    %7756 = vrot.lane.b32.xlu0 %v6557, 106
    %v7757 = vpop.permute.xlu0 %7756
    %7762 = vrot.lane.b32.xlu0 %v6422, 108
    %v7763 = vpop.permute.xlu0 %7762
    %7764 = vrot.lane.b32.xlu0 %v6558, 108
    %v7765 = vpop.permute.xlu0 %7764
    %7770 = vrot.lane.b32.xlu0 %v6423, 110
    %v7771 = vpop.permute.xlu0 %7770
    %7772 = vrot.lane.b32.xlu0 %v6559, 110
    %v7773 = vpop.permute.xlu0 %7772
    %7778 = vrot.lane.b32.xlu0 %v6688, 112
    %v7779 = vpop.permute.xlu0 %7778
    %7780 = vrot.lane.b32.xlu0 %v6824, 112
    %v7781 = vpop.permute.xlu0 %7780
    %7786 = vrot.lane.b32.xlu0 %v6689, 114
    %v7787 = vpop.permute.xlu0 %7786
    %7788 = vrot.lane.b32.xlu0 %v6825, 114
    %v7789 = vpop.permute.xlu0 %7788
    %7794 = vrot.lane.b32.xlu0 %v6690, 116
    %v7795 = vpop.permute.xlu0 %7794
    %7796 = vrot.lane.b32.xlu0 %v6826, 116
    %v7797 = vpop.permute.xlu0 %7796
    %7802 = vrot.lane.b32.xlu0 %v6691, 118
    %v7803 = vpop.permute.xlu0 %7802
    %7804 = vrot.lane.b32.xlu0 %v6827, 118
    %v7805 = vpop.permute.xlu0 %7804
    %7810 = vrot.lane.b32.xlu0 %v6692, 120
    %v7811 = vpop.permute.xlu0 %7810
    %7812 = vrot.lane.b32.xlu0 %v6828, 120
    %v7813 = vpop.permute.xlu0 %7812
    %7818 = vrot.lane.b32.xlu0 %v6693, 122
    %v7819 = vpop.permute.xlu0 %7818
    %7820 = vrot.lane.b32.xlu0 %v6829, 122
    %v7821 = vpop.permute.xlu0 %7820
    %7826 = vrot.lane.b32.xlu0 %v6694, 124
    %v7827 = vpop.permute.xlu0 %7826
    %7828 = vrot.lane.b32.xlu0 %v6830, 124
    %v7829 = vpop.permute.xlu0 %7828
    %7834 = vrot.lane.b32.xlu0 %v6695, 126
    %v7835 = vpop.permute.xlu0 %7834
    %7836 = vrot.lane.b32.xlu0 %v6831, 126
    %v7837 = vpop.permute.xlu0 %7836
    %vm7840 = vcmask 15360
    %v7841 = vsel %vm7840, %v2608, %v6835
    %v7842 = vsel %vm7840, %v2744, %v6837
    %vm7843 = vcmask 31744
    %v7844 = vsel %vm7843, %v7841, %v6843
    %v7845 = vsel %vm7843, %v7842, %v6845
    %vm7846 = vcmask 48128
    %v7847 = vsel %vm7846, %v7844, %v6851
    %v7848 = vsel %vm7846, %v7845, %v6853
    %vm7849 = vcmask 64512
    %v7850 = vsel %vm7849, %v7847, %v6859
    %v7851 = vsel %vm7849, %v7848, %v6861
    %vm7852 = vcmask 80896
    %v7853 = vsel %vm7852, %v7850, %v6867
    %v7854 = vsel %vm7852, %v7851, %v6869
    %vm7855 = vcmask 97280
    %v7856 = vsel %vm7855, %v7853, %v6875
    %v7857 = vsel %vm7855, %v7854, %v6877
    %vm7858 = vcmask 113664
    %v7859 = vsel %vm7858, %v7856, %v6883
    %v7860 = vsel %vm7858, %v7857, %v6885
    %vm7861 = vcmask 130048
    %v7862 = vsel %vm7861, %v7859, %v6891
    %v7863 = vsel %vm7861, %v7860, %v6893
    %vm7864 = vcmask 146432
    %v7865 = vsel %vm7864, %v7862, %v6899
    %v7866 = vsel %vm7864, %v7863, %v6901
    %vm7867 = vcmask 162816
    %v7868 = vsel %vm7867, %v7865, %v6907
    %v7869 = vsel %vm7867, %v7866, %v6909
    %vm7870 = vcmask 179200
    %v7871 = vsel %vm7870, %v7868, %v6915
    %v7872 = vsel %vm7870, %v7869, %v6917
    %vm7873 = vcmask 195584
    %v7874 = vsel %vm7873, %v7871, %v6923
    %v7875 = vsel %vm7873, %v7872, %v6925
    %vm7876 = vcmask 211968
    %v7877 = vsel %vm7876, %v7874, %v6931
    %v7878 = vsel %vm7876, %v7875, %v6933
    %vm7879 = vcmask 228352
    %v7880 = vsel %vm7879, %v7877, %v6939
    %v7881 = vsel %vm7879, %v7878, %v6941
    %vm7882 = vcmask 244736
    %v7883 = vsel %vm7882, %v7880, %v6947
    %v7884 = vsel %vm7882, %v7881, %v6949
    %vm7885 = vcmask 261120
    %v7886 = vsel %vm7885, %v7883, %v6955
    %v7887 = vsel %vm7885, %v7884, %v6957
    %vm7888 = vcmask 277504
    %v7889 = vsel %vm7888, %v7886, %v6963
    %v7890 = vsel %vm7888, %v7887, %v6965
    %vm7891 = vcmask 293888
    %v7892 = vsel %vm7891, %v7889, %v6971
    %v7893 = vsel %vm7891, %v7890, %v6973
    %vm7894 = vcmask 310272
    %v7895 = vsel %vm7894, %v7892, %v6979
    %v7896 = vsel %vm7894, %v7893, %v6981
    %vm7897 = vcmask 326656
    %v7898 = vsel %vm7897, %v7895, %v6987
    %v7899 = vsel %vm7897, %v7896, %v6989
    %vm7900 = vcmask 343040
    %v7901 = vsel %vm7900, %v7898, %v6995
    %v7902 = vsel %vm7900, %v7899, %v6997
    %vm7903 = vcmask 359424
    %v7904 = vsel %vm7903, %v7901, %v7003
    %v7905 = vsel %vm7903, %v7902, %v7005
    %vm7906 = vcmask 375808
    %v7907 = vsel %vm7906, %v7904, %v7011
    %v7908 = vsel %vm7906, %v7905, %v7013
    %vm7909 = vcmask 392192
    %v7910 = vsel %vm7909, %v7907, %v7019
    %v7911 = vsel %vm7909, %v7908, %v7021
    %vm7912 = vcmask 408576
    %v7913 = vsel %vm7912, %v7910, %v7027
    %v7914 = vsel %vm7912, %v7911, %v7029
    %vm7915 = vcmask 424960
    %v7916 = vsel %vm7915, %v7913, %v7035
    %v7917 = vsel %vm7915, %v7914, %v7037
    %vm7918 = vcmask 441344
    %v7919 = vsel %vm7918, %v7916, %v7043
    %v7920 = vsel %vm7918, %v7917, %v7045
    %vm7921 = vcmask 457728
    %v7922 = vsel %vm7921, %v7919, %v7051
    %v7923 = vsel %vm7921, %v7920, %v7053
    %vm7924 = vcmask 474112
    %v7925 = vsel %vm7924, %v7922, %v7059
    %v7926 = vsel %vm7924, %v7923, %v7061
    %vm7927 = vcmask 490496
    %v7928 = vsel %vm7927, %v7925, %v7067
    %v7929 = vsel %vm7927, %v7926, %v7069
    %vm7930 = vcmask 506880
    %v7931 = vsel %vm7930, %v7928, %v7075
    %v7932 = vsel %vm7930, %v7929, %v7077
    %vm7933 = vcmask 523264
    %v7934 = vsel %vm7933, %v7931, %v7083
    %v7935 = vsel %vm7933, %v7932, %v7085
    %vm7936 = vcmask 539648
    %v7937 = vsel %vm7936, %v7934, %v7091
    %v7938 = vsel %vm7936, %v7935, %v7093
    %vm7939 = vcmask 556032
    %v7940 = vsel %vm7939, %v7937, %v7099
    %v7941 = vsel %vm7939, %v7938, %v7101
    %vm7942 = vcmask 572416
    %v7943 = vsel %vm7942, %v7940, %v7107
    %v7944 = vsel %vm7942, %v7941, %v7109
    %vm7945 = vcmask 588800
    %v7946 = vsel %vm7945, %v7943, %v7115
    %v7947 = vsel %vm7945, %v7944, %v7117
    %vm7948 = vcmask 605184
    %v7949 = vsel %vm7948, %v7946, %v7123
    %v7950 = vsel %vm7948, %v7947, %v7125
    %vm7951 = vcmask 621568
    %v7952 = vsel %vm7951, %v7949, %v7131
    %v7953 = vsel %vm7951, %v7950, %v7133
    %vm7954 = vcmask 637952
    %v7955 = vsel %vm7954, %v7952, %v7139
    %v7956 = vsel %vm7954, %v7953, %v7141
    %vm7957 = vcmask 654336
    %v7958 = vsel %vm7957, %v7955, %v7147
    %v7959 = vsel %vm7957, %v7956, %v7149
    %vm7960 = vcmask 670720
    %v7961 = vsel %vm7960, %v7958, %v7155
    %v7962 = vsel %vm7960, %v7959, %v7157
    %vm7963 = vcmask 687104
    %v7964 = vsel %vm7963, %v7961, %v7163
    %v7965 = vsel %vm7963, %v7962, %v7165
    %vm7966 = vcmask 703488
    %v7967 = vsel %vm7966, %v7964, %v7171
    %v7968 = vsel %vm7966, %v7965, %v7173
    %vm7969 = vcmask 719872
    %v7970 = vsel %vm7969, %v7967, %v7179
    %v7971 = vsel %vm7969, %v7968, %v7181
    %vm7972 = vcmask 736256
    %v7973 = vsel %vm7972, %v7970, %v7187
    %v7974 = vsel %vm7972, %v7971, %v7189
    %vm7975 = vcmask 752640
    %v7976 = vsel %vm7975, %v7973, %v7195
    %v7977 = vsel %vm7975, %v7974, %v7197
    %vm7978 = vcmask 769024
    %v7979 = vsel %vm7978, %v7976, %v7203
    %v7980 = vsel %vm7978, %v7977, %v7205
    %vm7981 = vcmask 785408
    %v7982 = vsel %vm7981, %v7979, %v7211
    %v7983 = vsel %vm7981, %v7980, %v7213
    %vm7984 = vcmask 801792
    %v7985 = vsel %vm7984, %v7982, %v7219
    %v7986 = vsel %vm7984, %v7983, %v7221
    %vm7987 = vcmask 818176
    %v7988 = vsel %vm7987, %v7985, %v7227
    %v7989 = vsel %vm7987, %v7986, %v7229
    %vm7990 = vcmask 834560
    %v7991 = vsel %vm7990, %v7988, %v7235
    %v7992 = vsel %vm7990, %v7989, %v7237
    %vm7993 = vcmask 850944
    %v7994 = vsel %vm7993, %v7991, %v7243
    %v7995 = vsel %vm7993, %v7992, %v7245
    %vm7996 = vcmask 867328
    %v7997 = vsel %vm7996, %v7994, %v7251
    %v7998 = vsel %vm7996, %v7995, %v7253
    %vm7999 = vcmask 883712
    %v8000 = vsel %vm7999, %v7997, %v7259
    %v8001 = vsel %vm7999, %v7998, %v7261
    %vm8002 = vcmask 900096
    %v8003 = vsel %vm8002, %v8000, %v7267
    %v8004 = vsel %vm8002, %v8001, %v7269
    %vm8005 = vcmask 916480
    %v8006 = vsel %vm8005, %v8003, %v7275
    %v8007 = vsel %vm8005, %v8004, %v7277
    %vm8008 = vcmask 932864
    %v8009 = vsel %vm8008, %v8006, %v7283
    %v8010 = vsel %vm8008, %v8007, %v7285
    %vm8011 = vcmask 949248
    %v8012 = vsel %vm8011, %v8009, %v7291
    %v8013 = vsel %vm8011, %v8010, %v7293
    %vm8014 = vcmask 965632
    %v8015 = vsel %vm8014, %v8012, %v7299
    %v8016 = vsel %vm8014, %v8013, %v7301
    %vm8017 = vcmask 982016
    %v8018 = vsel %vm8017, %v8015, %v7307
    %v8019 = vsel %vm8017, %v8016, %v7309
    %vm8020 = vcmask 998400
    %v8021 = vsel %vm8020, %v8018, %v7315
    %v8022 = vsel %vm8020, %v8019, %v7317
    %vm8023 = vcmask 1014784
    %v8024 = vsel %vm8023, %v8021, %v7323
    %v8025 = vsel %vm8023, %v8022, %v7325
    %vm8026 = vcmask 1031168
    %v8027 = vsel %vm8026, %v8024, %v7331
    %v8028 = vsel %vm8026, %v8025, %v7333
    %v8029 = vsel %vm7840, %v4784, %v7339
    %v8030 = vsel %vm7840, %v4920, %v7341
    %v8031 = vsel %vm7843, %v8029, %v7347
    %v8032 = vsel %vm7843, %v8030, %v7349
    %v8033 = vsel %vm7846, %v8031, %v7355
    %v8034 = vsel %vm7846, %v8032, %v7357
    %v8035 = vsel %vm7849, %v8033, %v7363
    %v8036 = vsel %vm7849, %v8034, %v7365
    %v8037 = vsel %vm7852, %v8035, %v7371
    %v8038 = vsel %vm7852, %v8036, %v7373
    %v8039 = vsel %vm7855, %v8037, %v7379
    %v8040 = vsel %vm7855, %v8038, %v7381
    %v8041 = vsel %vm7858, %v8039, %v7387
    %v8042 = vsel %vm7858, %v8040, %v7389
    %v8043 = vsel %vm7861, %v8041, %v7395
    %v8044 = vsel %vm7861, %v8042, %v7397
    %v8045 = vsel %vm7864, %v8043, %v7403
    %v8046 = vsel %vm7864, %v8044, %v7405
    %v8047 = vsel %vm7867, %v8045, %v7411
    %v8048 = vsel %vm7867, %v8046, %v7413
    %v8049 = vsel %vm7870, %v8047, %v7419
    %v8050 = vsel %vm7870, %v8048, %v7421
    %v8051 = vsel %vm7873, %v8049, %v7427
    %v8052 = vsel %vm7873, %v8050, %v7429
    %v8053 = vsel %vm7876, %v8051, %v7435
    %v8054 = vsel %vm7876, %v8052, %v7437
    %v8055 = vsel %vm7879, %v8053, %v7443
    %v8056 = vsel %vm7879, %v8054, %v7445
    %v8057 = vsel %vm7882, %v8055, %v7451
    %v8058 = vsel %vm7882, %v8056, %v7453
    %v8059 = vsel %vm7885, %v8057, %v7459
    %v8060 = vsel %vm7885, %v8058, %v7461
    %v8061 = vsel %vm7888, %v8059, %v7467
    %v8062 = vsel %vm7888, %v8060, %v7469
    %v8063 = vsel %vm7891, %v8061, %v7475
    %v8064 = vsel %vm7891, %v8062, %v7477
    %v8065 = vsel %vm7894, %v8063, %v7483
    %v8066 = vsel %vm7894, %v8064, %v7485
    %v8067 = vsel %vm7897, %v8065, %v7491
    %v8068 = vsel %vm7897, %v8066, %v7493
    %v8069 = vsel %vm7900, %v8067, %v7499
    %v8070 = vsel %vm7900, %v8068, %v7501
    %v8071 = vsel %vm7903, %v8069, %v7507
    %v8072 = vsel %vm7903, %v8070, %v7509
    %v8073 = vsel %vm7906, %v8071, %v7515
    %v8074 = vsel %vm7906, %v8072, %v7517
    %v8075 = vsel %vm7909, %v8073, %v7523
    %v8076 = vsel %vm7909, %v8074, %v7525
    %v8077 = vsel %vm7912, %v8075, %v7531
    %v8078 = vsel %vm7912, %v8076, %v7533
    %v8079 = vsel %vm7915, %v8077, %v7539
    %v8080 = vsel %vm7915, %v8078, %v7541
    %v8081 = vsel %vm7918, %v8079, %v7547
    %v8082 = vsel %vm7918, %v8080, %v7549
    %v8083 = vsel %vm7921, %v8081, %v7555
    %v8084 = vsel %vm7921, %v8082, %v7557
    %v8085 = vsel %vm7924, %v8083, %v7563
    %v8086 = vsel %vm7924, %v8084, %v7565
    %v8087 = vsel %vm7927, %v8085, %v7571
    %v8088 = vsel %vm7927, %v8086, %v7573
    %v8089 = vsel %vm7930, %v8087, %v7579
    %v8090 = vsel %vm7930, %v8088, %v7581
    %v8091 = vsel %vm7933, %v8089, %v7587
    %v8092 = vsel %vm7933, %v8090, %v7589
    %v8093 = vsel %vm7936, %v8091, %v7595
    %v8094 = vsel %vm7936, %v8092, %v7597
    %v8095 = vsel %vm7939, %v8093, %v7603
    %v8096 = vsel %vm7939, %v8094, %v7605
    %v8097 = vsel %vm7942, %v8095, %v7611
    %v8098 = vsel %vm7942, %v8096, %v7613
    %v8099 = vsel %vm7945, %v8097, %v7619
    %v8100 = vsel %vm7945, %v8098, %v7621
    %v8101 = vsel %vm7948, %v8099, %v7627
    %v8102 = vsel %vm7948, %v8100, %v7629
    %v8103 = vsel %vm7951, %v8101, %v7635
    %v8104 = vsel %vm7951, %v8102, %v7637
    %v8105 = vsel %vm7954, %v8103, %v7643
    %v8106 = vsel %vm7954, %v8104, %v7645
    %v8107 = vsel %vm7957, %v8105, %v7651
    %v8108 = vsel %vm7957, %v8106, %v7653
    %v8109 = vsel %vm7960, %v8107, %v7659
    %v8110 = vsel %vm7960, %v8108, %v7661
    %v8111 = vsel %vm7963, %v8109, %v7667
    %v8112 = vsel %vm7963, %v8110, %v7669
    %v8113 = vsel %vm7966, %v8111, %v7675
    %v8114 = vsel %vm7966, %v8112, %v7677
    %v8115 = vsel %vm7969, %v8113, %v7683
    %v8116 = vsel %vm7969, %v8114, %v7685
    %v8117 = vsel %vm7972, %v8115, %v7691
    %v8118 = vsel %vm7972, %v8116, %v7693
    %v8119 = vsel %vm7975, %v8117, %v7699
    %v8120 = vsel %vm7975, %v8118, %v7701
    %v8121 = vsel %vm7978, %v8119, %v7707
    %v8122 = vsel %vm7978, %v8120, %v7709
    %v8123 = vsel %vm7981, %v8121, %v7715
    %v8124 = vsel %vm7981, %v8122, %v7717
    %v8125 = vsel %vm7984, %v8123, %v7723
    %v8126 = vsel %vm7984, %v8124, %v7725
    %v8127 = vsel %vm7987, %v8125, %v7731
    %v8128 = vsel %vm7987, %v8126, %v7733
    %v8129 = vsel %vm7990, %v8127, %v7739
    %v8130 = vsel %vm7990, %v8128, %v7741
    %v8131 = vsel %vm7993, %v8129, %v7747
    %v8132 = vsel %vm7993, %v8130, %v7749
    %v8133 = vsel %vm7996, %v8131, %v7755
    %v8134 = vsel %vm7996, %v8132, %v7757
    %v8135 = vsel %vm7999, %v8133, %v7763
    %v8136 = vsel %vm7999, %v8134, %v7765
    %v8137 = vsel %vm8002, %v8135, %v7771
    %v8138 = vsel %vm8002, %v8136, %v7773
    %v8139 = vsel %vm8005, %v8137, %v7779
    %v8140 = vsel %vm8005, %v8138, %v7781
    %v8141 = vsel %vm8008, %v8139, %v7787
    %v8142 = vsel %vm8008, %v8140, %v7789
    %v8143 = vsel %vm8011, %v8141, %v7795
    %v8144 = vsel %vm8011, %v8142, %v7797
    %v8145 = vsel %vm8014, %v8143, %v7803
    %v8146 = vsel %vm8014, %v8144, %v7805
    %v8147 = vsel %vm8017, %v8145, %v7811
    %v8148 = vsel %vm8017, %v8146, %v7813
    %v8149 = vsel %vm8020, %v8147, %v7819
    %v8150 = vsel %vm8020, %v8148, %v7821
    %v8151 = vsel %vm8023, %v8149, %v7827
    %v8152 = vsel %vm8023, %v8150, %v7829
    %v8153 = vsel %vm8026, %v8151, %v7835
    %v8154 = vsel %vm8026, %v8152, %v7837
    %8155 = vst [vmem:[#allocation5] sm:$0xff] %v8027
    %8156 = vst [vmem:[#allocation5 + $0x8] sm:$0xff] %v8153
    %8157 = vst [vmem:[#allocation5 + $0x10] sm:$0xff] %v8028
    %8158 = vst [vmem:[#allocation5 + $0x18] sm:$0xff] %v8154
    // Predicated region
    $region22: #{tpu_custom_call.1} parent=1 // pred_check
      _
    $region23: #{tpu_custom_call.1} parent=1 // pred_check_branch
      %8160 = sbr.rel (0) target = $region25
    $region24: #{tpu_custom_call.1} parent=1 // pred_region
      %s8162 = ssub.s32 512, 512
      %8163 = vsyncadd [#allocation4], %s8162
      %s8164 = sshll.u32 [#allocation5], 4
      %s8165 = int_to_ptr.vmem [resolvable:$true] %s8164
      %8170 = dma.vmem_to_hbm [thread:$0]  %s8165, 512, %s4, [#allocation4], 256, 256, 16
    $region25: #{tpu_custom_call.1} parent=1 // pred_fallthru
      _
    // Predicated region
    $region26: #{tpu_custom_call.1} parent=1 // pred_check
      _
    $region27: #{tpu_custom_call.1} parent=1 // pred_check_branch
      %8172 = sbr.rel (0) target = $region29
    $region28: #{tpu_custom_call.1} parent=1 // pred_region
      %8173 = dma.done [#allocation4], 512
    $region29: #{tpu_custom_call.1} parent=1 // pred_fallthru
      _
    %8174 = vsyncpa [#allocation3], 1
    %8175 = vsyncpa [#allocation4], 1

// kernel: tpu_custom_call.1
$region0: #{tpu_custom_call.1}
  #allocation0 [shape = 'u32[]', space=smem, size = 0x4, offset = 0x4, fixed_abs, tag = 'smem constant byte address 0x4 - core index']
  #allocation1 [shape = 'u32[144,128]{1,0:T(1,128)}', space=vmem, size = 0x12000, scoped, tag = 'internal scratch']
  %s0 = inlined_call_operand.hbm [shape: f32[16,128], index: 0, kind: input, shape index: {}]
  %s1 = inlined_call_operand.vmem [shape: f32[1,128], index: 1, kind: input, shape index: {}]
  %s2 = inlined_call_operand.vmem [shape: f32[1,128], index: 2, kind: input, shape index: {}]
  %s3 = inlined_call_operand.vmem [shape: f32[1,128], index: 3, kind: input, shape index: {}]
  %s4 = inlined_call_operand.hbm [shape: f32[16,128], index: 4, kind: output, shape index: {0}]
  %s5 = inlined_call_operand.hbm [shape: f32[16,128], index: 5, kind: output, shape index: {1}]
  %6 = xla_tuple %s4, %s5
  %s7 = sld [smem:[#allocation0]]
  $region38: #{tpu_custom_call.1} parent=0
    _
  %s9 = ssub.s32 1, %s7
  %s10 = scalar_select 0, %s9, %s7
  $region1: #{tpu_custom_call.1} parent=0
    #allocation2 [shape = 'u8[8192]{0}', space=vmem, size = 0x2000, scoped, tag = 'input window, operand 0, single buffered']
    #allocation3 [shape = 's32[1]{0}', space=sflag, size = 0x4, scoped, tag = 'scoped memory for tpu_custom_call.1']
    #allocation4 [shape = 's32[1]{0}', space=sflag, size = 0x4, scoped, tag = 'scoped memory for tpu_custom_call.1']
    #allocation5 [shape = 'u8[8192]{0}', space=vmem, size = 0x2000, scoped, tag = 'output window, operand 0, single buffered']
    #allocation6 [shape = 'u8[8192]{0}', space=vmem, size = 0x2000, scoped, tag = 'output window, operand 1, single buffered']
    #allocation7 [shape = 's32[1]{0}', space=sflag, size = 0x4, scoped, tag = 'scoped memory for tpu_custom_call.1']
    %11 = vsyncpa [#allocation3], 0
    %12 = vsyncpa [#allocation4], 0
    %13 = vsyncpa [#allocation7], 0
    // Predicated region
    $region2: #{tpu_custom_call.1} parent=1 // pred_check
      _
    $region3: #{tpu_custom_call.1} parent=1 // pred_check_branch
      %15 = sbr.rel (0) target = $region5
    $region4: #{tpu_custom_call.1} parent=1 // pred_region
      %s17 = ssub.s32 256, 256
      %18 = vsyncadd [#allocation3], %s17
      %s19 = sshll.u32 [#allocation2], 4
      %s20 = int_to_ptr.vmem [resolvable:$true] %s19
      %25 = dma.hbm_to_vmem [thread:$0]  %s0, 256, %s20, [#allocation3], 128, 128, 8
    $region5: #{tpu_custom_call.1} parent=1 // pred_fallthru
      _
    // Predicated region
    $region6: #{tpu_custom_call.1} parent=1 // pred_check
      _
    $region7: #{tpu_custom_call.1} parent=1 // pred_check_branch
      %27 = sbr.rel (0) target = $region9
    $region8: #{tpu_custom_call.1} parent=1 // pred_region
      _
    $region9: #{tpu_custom_call.1} parent=1 // pred_fallthru
      _
    // Predicated region
    $region10: #{tpu_custom_call.1} parent=1 // pred_check
      _
    $region11: #{tpu_custom_call.1} parent=1 // pred_check_branch
      %29 = sbr.rel (0) target = $region13
    $region12: #{tpu_custom_call.1} parent=1 // pred_region
      _
    $region13: #{tpu_custom_call.1} parent=1 // pred_fallthru
      _
    // Predicated region
    $region14: #{tpu_custom_call.1} parent=1 // pred_check
      _
    $region15: #{tpu_custom_call.1} parent=1 // pred_check_branch
      %31 = sbr.rel (0) target = $region17
    $region16: #{tpu_custom_call.1} parent=1 // pred_region
      _
    $region17: #{tpu_custom_call.1} parent=1 // pred_fallthru
      _
    // Predicated region
    $region18: #{tpu_custom_call.1} parent=1 // pred_check
      _
    $region19: #{tpu_custom_call.1} parent=1 // pred_check_branch
      %33 = sbr.rel (0) target = $region21
    $region20: #{tpu_custom_call.1} parent=1 // pred_region
      %34 = dma.done [#allocation3], 256
    $region21: #{tpu_custom_call.1} parent=1 // pred_fallthru
      _
    %v35 = vld [vmem:[#allocation2] sm:$0xff]
    %v36 = vld [vmem:[#allocation2 + $0x8] sm:$0xff]
    %v37 = vld [vmem:[%s1] sm:$0x1]
    %v38 = vld [vmem:[%s2] sm:$0x1]
    %v39 = vld [vmem:[%s3] sm:$0x1]
    %v41 = vlaneseq
    %v42 = vshrl.u32 %v41, 7
    %v43 = vsub.s32 0, %v42
    %v44 = vrot.slane %v37, %v43
    %vm46 = vcmp.gt.f32.partialorder %v35, %v44
    %vm47 = vcmp.gt.f32.partialorder %v36, %v44
    %v48 = vsel %vm46, 1.0, %v35
    %v49 = vsel %vm47, 1.0, %v36
    %vm50 = vcmp.lt.f32.partialorder %v48, %v44
    %vm51 = vcmp.lt.f32.partialorder %v49, %v44
    %v52 = vsel %vm50, 0.0, %v48
    %v53 = vsel %vm51, 0.0, %v49
    %v55 = vlaneseq
    %v56 = vshrl.u32 %v55, 7
    %v57 = vsub.s32 0, %v56
    %v58 = vrot.slane %v38, %v57
    %vm60 = vcmp.gt.f32.partialorder %v35, %v58
    %vm61 = vcmp.gt.f32.partialorder %v36, %v58
    %v62 = vsel %vm60, 1.0, %v35
    %v63 = vsel %vm61, 1.0, %v36
    %v65 = vlaneseq
    %v66 = vshrl.u32 %v65, 7
    %v67 = vsub.s32 0, %v66
    %v68 = vrot.slane %v39, %v67
    %vm70 = vcmp.lt.f32.partialorder %v62, %v68
    %vm71 = vcmp.lt.f32.partialorder %v63, %v68
    %v72 = vsel %vm70, 1.0, %v62
    %v73 = vsel %vm71, 1.0, %v63
    %vm74 = vcmp.lt.f32.partialorder %v72, %v58
    %vm75 = vcmp.lt.f32.partialorder %v73, %v58
    %v76 = vsel %vm74, 0.0, %v72
    %v77 = vsel %vm75, 0.0, %v73
    %vm78 = vcmp.gt.f32.partialorder %v76, %v68
    %vm79 = vcmp.gt.f32.partialorder %v77, %v68
    %v80 = vsel %vm78, 0.0, %v76
    %v81 = vsel %vm79, 0.0, %v77
    %82 = vst [vmem:[#allocation5] sm:$0xff] %v52
    %83 = vst [vmem:[#allocation5 + $0x8] sm:$0xff] %v53
    %84 = vst [vmem:[#allocation6] sm:$0xff] %v80
    %85 = vst [vmem:[#allocation6 + $0x8] sm:$0xff] %v81
    // Predicated region
    $region22: #{tpu_custom_call.1} parent=1 // pred_check
      _
    $region23: #{tpu_custom_call.1} parent=1 // pred_check_branch
      %87 = sbr.rel (0) target = $region25
    $region24: #{tpu_custom_call.1} parent=1 // pred_region
      %s89 = ssub.s32 256, 256
      %90 = vsyncadd [#allocation4], %s89
      %s91 = sshll.u32 [#allocation5], 4
      %s92 = int_to_ptr.vmem [resolvable:$true] %s91
      %97 = dma.vmem_to_hbm [thread:$0]  %s92, 256, %s4, [#allocation4], 128, 128, 8
    $region25: #{tpu_custom_call.1} parent=1 // pred_fallthru
      _
    // Predicated region
    $region26: #{tpu_custom_call.1} parent=1 // pred_check
      _
    $region27: #{tpu_custom_call.1} parent=1 // pred_check_branch
      %99 = sbr.rel (0) target = $region29
    $region28: #{tpu_custom_call.1} parent=1 // pred_region
      %s101 = ssub.s32 256, 256
      %102 = vsyncadd [#allocation7], %s101
      %s103 = sshll.u32 [#allocation6], 4
      %s104 = int_to_ptr.vmem [resolvable:$true] %s103
      %109 = dma.vmem_to_hbm [thread:$0]  %s104, 256, %s5, [#allocation7], 128, 128, 8
    $region29: #{tpu_custom_call.1} parent=1 // pred_fallthru
      _
    // Predicated region
    $region30: #{tpu_custom_call.1} parent=1 // pred_check
      _
    $region31: #{tpu_custom_call.1} parent=1 // pred_check_branch
      %111 = sbr.rel (0) target = $region33
    $region32: #{tpu_custom_call.1} parent=1 // pred_region
      %112 = dma.done [#allocation4], 256
    $region33: #{tpu_custom_call.1} parent=1 // pred_fallthru
      _
    // Predicated region
    $region34: #{tpu_custom_call.1} parent=1 // pred_check
      _
    $region35: #{tpu_custom_call.1} parent=1 // pred_check_branch
      %114 = sbr.rel (0) target = $region37
    $region36: #{tpu_custom_call.1} parent=1 // pred_region
      %115 = dma.done [#allocation7], 256
    $region37: #{tpu_custom_call.1} parent=1 // pred_fallthru
      _
    %116 = vsyncpa [#allocation3], 1
    %117 = vsyncpa [#allocation4], 1
    %118 = vsyncpa [#allocation7], 1

</llo_original>
